<compile_context>
chip_gen: v5e
topology: v5e:2x2
jax: 0.10.0
libtpu: 0.0.40
codegen_flags: <defaults>
</compile_context>

<pallas_src>
import functools
import math

import jax
import jax.numpy as jnp
from jax.experimental import pallas as pl
from jax.experimental.pallas import tpu as pltpu

# ----- small synthetic PL-BERT (ALBERT) config -----
VOCAB = 64          # phoneme vocab
MAX_POS = 64
EMB = 16            # albert embedding_size
HID = 32            # albert hidden_size
INTER = 64          # intermediate_size
NHEAD = 4
HEAD_DIM = HID // NHEAD
NLAYER = 2          # shared-weight ALBERT layers
OUT_HIDDEN = 32     # TextEncoder hidden_dim (fc_global output)
OUT_SEQ = 32        # seq_dim (defaults to hidden_dim)
OUT_PAD = 128       # lane-dense padded output width (sliced back to 32 in the wrapper)
LN_EPS_PLBERT = 1e-12   # Albert layer_norm_eps
LN_EPS_HEAD = 1e-5      # nn.LayerNorm default

_BF16 = jnp.bfloat16


# ---------------- in-kernel helpers ----------------
def _ln(x, g, b, eps):
    x = x.astype(jnp.float32)
    mu = jnp.mean(x, axis=-1, keepdims=True)
    var = jnp.mean(jnp.square(x - mu), axis=-1, keepdims=True)
    return (x - mu) * jax.lax.rsqrt(var + eps) * g + b


def _gelu_new(x):
    # Albert "gelu_new" (tanh approximation)
    return 0.5 * x * (1.0 + jnp.tanh(0.7978845608028654 * (x + 0.044715 * x * x * x)))


def _mm(eq, a, b):
    # bf16 MXU operands, f32 accumulation.
    return jnp.einsum(eq, a.astype(_BF16), b.astype(_BF16),
                      preferred_element_type=jnp.float32)


def _full_spec(arr):
    """Full-array block, same block for every grid step."""
    nd = arr.ndim
    return pl.BlockSpec(arr.shape, lambda i, _nd=nd: (0,) * _nd)


# ---------------- fused TextEncoder kernel ----------------
def text_encoder_kernel(
    emb_ref, amask_ref,
    emb_ln_ref, emb_w_ref, emb_b_ref,
    wqkv_ref, bqkv_ref, wo_ref, bo_ref,
    ln1_ref, w1_ref, b1_ref, w2_ref, b2_ref, ln2_ref,
    seq_ln_ref, ws_ref, bs_ref,
    glob_ln_ref, wg_ref, bg_ref,
    glob_ref, seq_ref,
    *, num_heads, head_dim, num_layers,
):
    hid = num_heads * head_dim

    # ---- ALBERT embedding LayerNorm + projection to hidden size ----
    e = emb_ref[...]                                             # (B, S, E) f32
    xn = _ln(e, emb_ln_ref[0:1, :], emb_ln_ref[1:2, :], LN_EPS_PLBERT)
    x = _mm("bse,eh->bsh", xn, emb_w_ref[...]) + emb_b_ref[...]  # (B, S, H) f32

    amask = amask_ref[...]                                       # (B, 1, S) additive mask, f32
    scale = 1.0 / math.sqrt(head_dim)

    wqkv = wqkv_ref[...]     # (H, 3H) bf16
    bqkv = bqkv_ref[...]     # (1, 3H) f32
    wo = wo_ref[...]         # (H, H)  f32 (sliced per head, cast to bf16 in _mm)
    bo = bo_ref[...]         # (1, H)  f32
    w1 = w1_ref[...]         # (H, I)  bf16
    b1 = b1_ref[...]         # (1, I)  f32
    w2 = w2_ref[...]         # (I, H)  bf16
    b2 = b2_ref[...]         # (1, H)  f32

    # ---- shared-weight ALBERT layers (unrolled; weights stay VMEM-resident) ----
    for _ in range(num_layers):
        qkv = _mm("bsh,hk->bsk", x, wqkv) + bqkv                 # (B, S, 3H) f32
        q = qkv[:, :, 0 * hid:1 * hid]
        k = qkv[:, :, 1 * hid:2 * hid]
        v = qkv[:, :, 2 * hid:3 * hid]

        attn = jnp.zeros_like(x)
        for h in range(num_heads):
            sl = slice(h * head_dim, (h + 1) * head_dim)
            # scores / softmax kept in f32 (mask add + exp), MXU operands in bf16
            s = _mm("bqd,bkd->bqk", q[:, :, sl], k[:, :, sl]) * scale + amask
            s = s - jnp.max(s, axis=-1, keepdims=True)
            p = jnp.exp(s)
            p = p * pl.reciprocal(jnp.sum(p, axis=-1, keepdims=True), approx=True)
            ctx = _mm("bqk,bkd->bqd", p, v[:, :, sl])
            attn = attn + _mm("bqd,dh->bqh", ctx, wo[sl, :])
        attn = attn + bo

        h1 = _ln(x + attn, ln1_ref[0:1, :], ln1_ref[1:2, :], LN_EPS_PLBERT)
        ff = _gelu_new(_mm("bsh,hi->bsi", h1, w1) + b1)
        ff = _mm("bsi,ih->bsh", ff, w2) + b2
        x = _ln(h1 + ff, ln2_ref[0:1, :], ln2_ref[1:2, :], LN_EPS_PLBERT)

    # ---- TextEncoder heads (lane-dense 128-wide padded outputs) ----
    seq_n = _ln(x, seq_ln_ref[0:1, :], seq_ln_ref[1:2, :], LN_EPS_HEAD)
    seq_ref[...] = _mm("bsh,hd->bsd", seq_n, ws_ref[...]) + bs_ref[...]

    cls = x[:, 0, :]                                             # (B, H) — CLS token
    cls_n = _ln(cls, glob_ln_ref[0:1, :], glob_ln_ref[1:2, :], LN_EPS_HEAD)
    glob_ref[...] = _mm("bh,hd->bd", cls_n, wg_ref[...]) + bg_ref[...]


# ---------------- parameter packing (host side) ----------------
def _pack_params(p):
    bf = lambda a: a.astype(_BF16)
    stack2 = lambda g, b: jnp.stack([g.reshape(-1), b.reshape(-1)], axis=0)
    row = lambda b: b.reshape(1, -1)
    pad_w = lambda w: jnp.pad(w, ((0, 0), (0, OUT_PAD - w.shape[1])))
    pad_b = lambda b: jnp.pad(b.reshape(1, -1), ((0, 0), (0, OUT_PAD - b.size)))

    return dict(
        emb_ln=stack2(p["emb_ln_g"], p["emb_ln_b"]),
        emb_w=bf(p["emb_proj_w"]),
        emb_b=row(p["emb_proj_b"]),
        wqkv=bf(jnp.concatenate([p["wq"], p["wk"], p["wv"]], axis=1)),
        bqkv=jnp.concatenate([row(p["bq"]), row(p["bk"]), row(p["bv"])], axis=1),
        wo=p["wo"],                      # f32; per-head slices cast to bf16 inside kernel
        bo=row(p["bo"]),
        ln1=stack2(p["ln1_g"], p["ln1_b"]),
        w1=bf(p["w1"]), b1=row(p["b1"]),
        w2=bf(p["w2"]), b2=row(p["b2"]),
        ln2=stack2(p["ln2_g"], p["ln2_b"]),
        seq_ln=stack2(p["seq_ln_g"], p["seq_ln_b"]),
        ws=bf(pad_w(p["fc_seq_w"])), bs=pad_b(p["fc_seq_b"]),
        glob_ln=stack2(p["glob_ln_g"], p["glob_ln_b"]),
        wg=bf(pad_w(p["fc_glob_w"])), bg=pad_b(p["fc_glob_b"]),
    )


# ---------------- full TextEncoder forward (numeric part) ----------------
@jax.jit
def text_encoder_forward(phoneme_ids, attention_mask, params):
    B, S = phoneme_ids.shape

    # embedding gather (glue, plain JAX): word + position + token_type(0)
    emb = (params["word_emb"][phoneme_ids]
           + params["pos_emb"][jnp.arange(S)][None, :, :]
           + params["type_emb"][0][None, None, :]).astype(jnp.float32)
    add_mask = ((1.0 - attention_mask) * -1e9)[:, None, :]       # (B, 1, S), f32

    kp = _pack_params(params)
    args = [
        emb, add_mask,
        kp["emb_ln"], kp["emb_w"], kp["emb_b"],
        kp["wqkv"], kp["bqkv"], kp["wo"], kp["bo"],
        kp["ln1"], kp["w1"], kp["b1"], kp["w2"], kp["b2"], kp["ln2"],
        kp["seq_ln"], kp["ws"], kp["bs"],
        kp["glob_ln"], kp["wg"], kp["bg"],
    ]

    kernel = functools.partial(text_encoder_kernel, num_heads=NHEAD,
                               head_dim=HEAD_DIM, num_layers=NLAYER)
    glob_pad, seq_pad = pl.pallas_call(
        kernel,
        out_shape=(
            jax.ShapeDtypeStruct((B, OUT_PAD), jnp.float32),
            jax.ShapeDtypeStruct((B, S, OUT_PAD), jnp.float32),
        ),
        grid=(1,),
        in_specs=[_full_spec(a) for a in args],
        out_specs=(
            pl.BlockSpec((B, OUT_PAD), lambda i: (0, 0)),
            pl.BlockSpec((B, S, OUT_PAD), lambda i: (0, 0, 0)),
        ),
        compiler_params=pltpu.CompilerParams(dimension_semantics=("arbitrary",)),
    )(*args)

    global_emb = glob_pad[:, :OUT_HIDDEN]
    seq_emb = seq_pad[:, :, :OUT_SEQ]
    text_key_mask = attention_mask == 0                          # (B, S) bool
    return global_emb, seq_emb, text_key_mask


# ---------------- deterministic parameter init ----------------
def init_params(key):
    ks = jax.random.split(key, 12)

    def normal(k, shape, scale=0.02):
        return scale * jax.random.normal(k, shape, dtype=jnp.float32)

    def xavier(k, fan_in, fan_out):
        lim = math.sqrt(6.0 / (fan_in + fan_out))
        return jax.random.uniform(k, (fan_in, fan_out), jnp.float32, -lim, lim)

    z = lambda *s: jnp.zeros(s, jnp.float32)
    o = lambda *s: jnp.ones(s, jnp.float32)

    p = {}
    # embeddings
    p["word_emb"] = normal(ks[0], (VOCAB, EMB))
    p["pos_emb"] = normal(ks[1], (MAX_POS, EMB))
    p["type_emb"] = normal(ks[2], (2, EMB))
    p["emb_ln_g"], p["emb_ln_b"] = o(EMB), z(EMB)
    p["emb_proj_w"], p["emb_proj_b"] = normal(ks[3], (EMB, HID)), z(HID)
    # shared ALBERT layer
    p["wq"], p["bq"] = normal(ks[4], (HID, HID)), z(HID)
    p["wk"], p["bk"] = normal(ks[5], (HID, HID)), z(HID)
    p["wv"], p["bv"] = normal(ks[6], (HID, HID)), z(HID)
    p["wo"], p["bo"] = normal(ks[7], (HID, HID)), z(HID)
    p["ln1_g"], p["ln1_b"] = o(HID), z(HID)
    p["w1"], p["b1"] = normal(ks[8], (HID, INTER)), z(INTER)
    p["w2"], p["b2"] = normal(ks[9], (INTER, HID)), z(HID)
    p["ln2_g"], p["ln2_b"] = o(HID), z(HID)
    # TextEncoder heads
    p["seq_ln_g"], p["seq_ln_b"] = o(HID), z(HID)
    p["glob_ln_g"], p["glob_ln_b"] = o(HID), z(HID)
    p["fc_seq_w"], p["fc_seq_b"] = xavier(ks[10], HID, OUT_SEQ), z(OUT_SEQ)
    p["fc_glob_w"], p["fc_glob_b"] = xavier(ks[11], HID, OUT_HIDDEN), z(OUT_HIDDEN)
    return p


if __name__ == "__main__":
    key = jax.random.PRNGKey(0)
    pkey, ikey = jax.random.split(key)
    params = init_params(pkey)

    B, S = 2, 8
    # synthetic phoneme token ids (what tokenize() would produce) + padding mask
    phoneme_ids = jax.random.randint(ikey, (B, S), 1, VOCAB, dtype=jnp.int32)
    lengths = jnp.array([S, 5], dtype=jnp.int32)
    attention_mask = (jnp.arange(S)[None, :] < lengths[:, None]).astype(jnp.float32)
    phoneme_ids = phoneme_ids * attention_mask.astype(jnp.int32)   # pad positions -> 0

    global_emb, seq_emb, text_key_mask = text_encoder_forward(
        phoneme_ids, attention_mask, params
    )
    jax.block_until_ready((global_emb, seq_emb, text_key_mask))

    assert global_emb.shape == (B, OUT_HIDDEN)
    assert seq_emb.shape == (B, S, OUT_SEQ)
    assert text_key_mask.shape == (B, S) and text_key_mask.dtype == jnp.bool_
    assert bool(jnp.all(jnp.isfinite(global_emb))) and bool(jnp.all(jnp.isfinite(seq_emb)))
    print("KERNEL_OK")
</pallas_src>

<mosaic_0001>
module attributes {stable_mosaic.version = 11 : i64} {
  func.func @text_encoder_kernel(%arg0: i32, %arg1: memref<2x8x16xf32, #tpu.memory_space<vmem>>, %arg2: memref<2x1x8xf32, #tpu.memory_space<vmem>>, %arg3: memref<2x16xf32, #tpu.memory_space<vmem>>, %arg4: memref<16x32xbf16, #tpu.memory_space<vmem>>, %arg5: memref<1x32xf32, #tpu.memory_space<vmem>>, %arg6: memref<32x96xbf16, #tpu.memory_space<vmem>>, %arg7: memref<1x96xf32, #tpu.memory_space<vmem>>, %arg8: memref<32x32xf32, #tpu.memory_space<vmem>>, %arg9: memref<1x32xf32, #tpu.memory_space<vmem>>, %arg10: memref<2x32xf32, #tpu.memory_space<vmem>>, %arg11: memref<32x64xbf16, #tpu.memory_space<vmem>>, %arg12: memref<1x64xf32, #tpu.memory_space<vmem>>, %arg13: memref<64x32xbf16, #tpu.memory_space<vmem>>, %arg14: memref<1x32xf32, #tpu.memory_space<vmem>>, %arg15: memref<2x32xf32, #tpu.memory_space<vmem>>, %arg16: memref<2x32xf32, #tpu.memory_space<vmem>>, %arg17: memref<32x128xbf16, #tpu.memory_space<vmem>>, %arg18: memref<1x128xf32, #tpu.memory_space<vmem>>, %arg19: memref<2x32xf32, #tpu.memory_space<vmem>>, %arg20: memref<32x128xbf16, #tpu.memory_space<vmem>>, %arg21: memref<1x128xf32, #tpu.memory_space<vmem>>, %arg22: memref<2x128xf32, #tpu.memory_space<vmem>>, %arg23: memref<2x8x128xf32, #tpu.memory_space<vmem>>) attributes {dimension_semantics = [#tpu.dimension_semantics<arbitrary>], iteration_bounds = array<i64: 1>, scalar_prefetch = 0 : i64, scratch_operands = 0 : i64, tpu.core_type = #tpu.core_type<tc>, window_params = [{pipeline_mode = #tpu.pipeline_mode<synchronous>, transform_indices = @transform_0, window_bounds = array<i64: 2, 8, 16>}, {pipeline_mode = #tpu.pipeline_mode<synchronous>, transform_indices = @transform_1, window_bounds = array<i64: 2, 1, 8>}, {pipeline_mode = #tpu.pipeline_mode<synchronous>, transform_indices = @transform_2, window_bounds = array<i64: 2, 16>}, {pipeline_mode = #tpu.pipeline_mode<synchronous>, transform_indices = @transform_3, window_bounds = array<i64: 16, 32>}, {pipeline_mode = #tpu.pipeline_mode<synchronous>, transform_indices = @transform_4, window_bounds = array<i64: 1, 32>}, {pipeline_mode = #tpu.pipeline_mode<synchronous>, transform_indices = @transform_5, window_bounds = array<i64: 32, 96>}, {pipeline_mode = #tpu.pipeline_mode<synchronous>, transform_indices = @transform_6, window_bounds = array<i64: 1, 96>}, {pipeline_mode = #tpu.pipeline_mode<synchronous>, transform_indices = @transform_7, window_bounds = array<i64: 32, 32>}, {pipeline_mode = #tpu.pipeline_mode<synchronous>, transform_indices = @transform_8, window_bounds = array<i64: 1, 32>}, {pipeline_mode = #tpu.pipeline_mode<synchronous>, transform_indices = @transform_9, window_bounds = array<i64: 2, 32>}, {pipeline_mode = #tpu.pipeline_mode<synchronous>, transform_indices = @transform_10, window_bounds = array<i64: 32, 64>}, {pipeline_mode = #tpu.pipeline_mode<synchronous>, transform_indices = @transform_11, window_bounds = array<i64: 1, 64>}, {pipeline_mode = #tpu.pipeline_mode<synchronous>, transform_indices = @transform_12, window_bounds = array<i64: 64, 32>}, {pipeline_mode = #tpu.pipeline_mode<synchronous>, transform_indices = @transform_13, window_bounds = array<i64: 1, 32>}, {pipeline_mode = #tpu.pipeline_mode<synchronous>, transform_indices = @transform_14, window_bounds = array<i64: 2, 32>}, {pipeline_mode = #tpu.pipeline_mode<synchronous>, transform_indices = @transform_15, window_bounds = array<i64: 2, 32>}, {pipeline_mode = #tpu.pipeline_mode<synchronous>, transform_indices = @transform_16, window_bounds = array<i64: 32, 128>}, {pipeline_mode = #tpu.pipeline_mode<synchronous>, transform_indices = @transform_17, window_bounds = array<i64: 1, 128>}, {pipeline_mode = #tpu.pipeline_mode<synchronous>, transform_indices = @transform_18, window_bounds = array<i64: 2, 32>}, {pipeline_mode = #tpu.pipeline_mode<synchronous>, transform_indices = @transform_19, window_bounds = array<i64: 32, 128>}, {pipeline_mode = #tpu.pipeline_mode<synchronous>, transform_indices = @transform_20, window_bounds = array<i64: 1, 128>}, {pipeline_mode = #tpu.pipeline_mode<synchronous>, transform_indices = @transform_21, window_bounds = array<i64: 2, 128>}, {pipeline_mode = #tpu.pipeline_mode<synchronous>, transform_indices = @transform_22, window_bounds = array<i64: 2, 8, 128>}]} {
    %c0 = arith.constant 0 : index
    %c0_0 = arith.constant 0 : index
    %c0_1 = arith.constant 0 : index
    %0 = vector.load %arg1[%c0, %c0_0, %c0_1] : memref<2x8x16xf32, #tpu.memory_space<vmem>>, vector<2x8x16xf32>
    %c0_2 = arith.constant 0 : index
    %c0_3 = arith.constant 0 : index
    %1 = vector.load %arg3[%c0_2, %c0_3] : memref<2x16xf32, #tpu.memory_space<vmem>>, vector<1x16xf32>
    %c1 = arith.constant 1 : index
    %c0_4 = arith.constant 0 : index
    %2 = vector.load %arg3[%c1, %c0_4] : memref<2x16xf32, #tpu.memory_space<vmem>>, vector<1x16xf32>
    %cst = arith.constant dense<0.000000e+00> : vector<2x8xf32>
    %3 = vector.multi_reduction <add>, %0, %cst [2] : vector<2x8x16xf32> to vector<2x8xf32>
    %4 = vector.shape_cast %3 : vector<2x8xf32> to vector<2x8x1xf32>
    %cst_5 = arith.constant 1.600000e+01 : f32
    %5 = vector.broadcast %cst_5 : f32 to vector<2x8x1xf32>
    %6 = arith.divf %4, %5 : vector<2x8x1xf32>
    %7 = vector.broadcast %6 : vector<2x8x1xf32> to vector<2x8x16xf32>
    %8 = arith.subf %0, %7 : vector<2x8x16xf32>
    %9 = arith.mulf %8, %8 : vector<2x8x16xf32>
    %cst_6 = arith.constant dense<0.000000e+00> : vector<2x8xf32>
    %10 = vector.multi_reduction <add>, %9, %cst_6 [2] : vector<2x8x16xf32> to vector<2x8xf32>
    %11 = vector.shape_cast %10 : vector<2x8xf32> to vector<2x8x1xf32>
    %cst_7 = arith.constant 1.600000e+01 : f32
    %12 = vector.broadcast %cst_7 : f32 to vector<2x8x1xf32>
    %13 = arith.divf %11, %12 : vector<2x8x1xf32>
    %14 = vector.broadcast %6 : vector<2x8x1xf32> to vector<2x8x16xf32>
    %15 = arith.subf %0, %14 : vector<2x8x16xf32>
    %cst_8 = arith.constant 9.99999996E-13 : f32
    %16 = vector.broadcast %cst_8 : f32 to vector<2x8x1xf32>
    %17 = arith.addf %13, %16 : vector<2x8x1xf32>
    %18 = math.rsqrt %17 : vector<2x8x1xf32>
    %19 = vector.broadcast %18 : vector<2x8x1xf32> to vector<2x8x16xf32>
    %20 = arith.mulf %15, %19 : vector<2x8x16xf32>
    %21 = vector.shape_cast %1 : vector<1x16xf32> to vector<1x1x16xf32>
    %22 = vector.broadcast %21 : vector<1x1x16xf32> to vector<2x8x16xf32>
    %23 = arith.mulf %20, %22 : vector<2x8x16xf32>
    %24 = vector.shape_cast %2 : vector<1x16xf32> to vector<1x1x16xf32>
    %25 = vector.broadcast %24 : vector<1x1x16xf32> to vector<2x8x16xf32>
    %26 = arith.addf %23, %25 : vector<2x8x16xf32>
    %c0_9 = arith.constant 0 : index
    %c0_10 = arith.constant 0 : index
    %27 = vector.load %arg4[%c0_9, %c0_10] : memref<16x32xbf16, #tpu.memory_space<vmem>>, vector<16x32xbf16>
    %28 = arith.truncf %26 : vector<2x8x16xf32> to vector<2x8x16xbf16>
    "tpu.trace_start"() <{level = 10 : i32, message = "bse,eh->bsh"}> : () -> ()
    %cst_11 = arith.constant dense<0.000000e+00> : vector<2x8x32xf32>
    %29 = tpu.matmul %28, %27, %cst_11 {dimension_numbers = #tpu.dot_dimension_numbers<[2], [0], [0, 1], [1], [0, 0, 0, 1, 1, 1], [], []>} : vector<2x8x16xbf16>, vector<16x32xbf16>, vector<2x8x32xf32> -> vector<2x8x32xf32>
    "tpu.trace_stop"() : () -> ()
    %c0_12 = arith.constant 0 : index
    %c0_13 = arith.constant 0 : index
    %30 = vector.load %arg5[%c0_12, %c0_13] : memref<1x32xf32, #tpu.memory_space<vmem>>, vector<1x32xf32>
    %31 = vector.shape_cast %30 : vector<1x32xf32> to vector<1x1x32xf32>
    %32 = vector.broadcast %31 : vector<1x1x32xf32> to vector<2x8x32xf32>
    %33 = arith.addf %29, %32 : vector<2x8x32xf32>
    %c0_14 = arith.constant 0 : index
    %c0_15 = arith.constant 0 : index
    %c0_16 = arith.constant 0 : index
    %34 = vector.load %arg2[%c0_14, %c0_15, %c0_16] : memref<2x1x8xf32, #tpu.memory_space<vmem>>, vector<2x1x8xf32>
    %c0_17 = arith.constant 0 : index
    %c0_18 = arith.constant 0 : index
    %35 = vector.load %arg6[%c0_17, %c0_18] : memref<32x96xbf16, #tpu.memory_space<vmem>>, vector<32x96xbf16>
    %c0_19 = arith.constant 0 : index
    %c0_20 = arith.constant 0 : index
    %36 = vector.load %arg7[%c0_19, %c0_20] : memref<1x96xf32, #tpu.memory_space<vmem>>, vector<1x96xf32>
    %c0_21 = arith.constant 0 : index
    %c0_22 = arith.constant 0 : index
    %37 = vector.load %arg8[%c0_21, %c0_22] : memref<32x32xf32, #tpu.memory_space<vmem>>, vector<32x32xf32>
    %c0_23 = arith.constant 0 : index
    %c0_24 = arith.constant 0 : index
    %38 = vector.load %arg9[%c0_23, %c0_24] : memref<1x32xf32, #tpu.memory_space<vmem>>, vector<1x32xf32>
    %c0_25 = arith.constant 0 : index
    %c0_26 = arith.constant 0 : index
    %39 = vector.load %arg11[%c0_25, %c0_26] : memref<32x64xbf16, #tpu.memory_space<vmem>>, vector<32x64xbf16>
    %c0_27 = arith.constant 0 : index
    %c0_28 = arith.constant 0 : index
    %40 = vector.load %arg12[%c0_27, %c0_28] : memref<1x64xf32, #tpu.memory_space<vmem>>, vector<1x64xf32>
    %c0_29 = arith.constant 0 : index
    %c0_30 = arith.constant 0 : index
    %41 = vector.load %arg13[%c0_29, %c0_30] : memref<64x32xbf16, #tpu.memory_space<vmem>>, vector<64x32xbf16>
    %c0_31 = arith.constant 0 : index
    %c0_32 = arith.constant 0 : index
    %42 = vector.load %arg14[%c0_31, %c0_32] : memref<1x32xf32, #tpu.memory_space<vmem>>, vector<1x32xf32>
    %43 = arith.truncf %33 : vector<2x8x32xf32> to vector<2x8x32xbf16>
    "tpu.trace_start"() <{level = 10 : i32, message = "bsh,hk->bsk"}> : () -> ()
    %cst_33 = arith.constant dense<0.000000e+00> : vector<2x8x96xf32>
    %44 = tpu.matmul %43, %35, %cst_33 {dimension_numbers = #tpu.dot_dimension_numbers<[2], [0], [0, 1], [1], [0, 0, 0, 1, 1, 1], [], []>} : vector<2x8x32xbf16>, vector<32x96xbf16>, vector<2x8x96xf32> -> vector<2x8x96xf32>
    "tpu.trace_stop"() : () -> ()
    %45 = vector.shape_cast %36 : vector<1x96xf32> to vector<1x1x96xf32>
    %46 = vector.broadcast %45 : vector<1x1x96xf32> to vector<2x8x96xf32>
    %47 = arith.addf %44, %46 : vector<2x8x96xf32>
    %48 = vector.extract_strided_slice %47 {offsets = [0, 0, 0], sizes = [2, 8, 32], strides = [1, 1, 1]} : vector<2x8x96xf32> to vector<2x8x32xf32>
    %49 = vector.extract_strided_slice %47 {offsets = [0, 0, 32], sizes = [2, 8, 32], strides = [1, 1, 1]} : vector<2x8x96xf32> to vector<2x8x32xf32>
    %50 = vector.extract_strided_slice %47 {offsets = [0, 0, 64], sizes = [2, 8, 32], strides = [1, 1, 1]} : vector<2x8x96xf32> to vector<2x8x32xf32>
    %cst_34 = arith.constant 0.000000e+00 : f32
    %51 = vector.broadcast %cst_34 : f32 to vector<2x8x32xf32>
    %52 = vector.extract_strided_slice %48 {offsets = [0, 0, 0], sizes = [2, 8, 8], strides = [1, 1, 1]} : vector<2x8x32xf32> to vector<2x8x8xf32>
    %53 = vector.extract_strided_slice %49 {offsets = [0, 0, 0], sizes = [2, 8, 8], strides = [1, 1, 1]} : vector<2x8x32xf32> to vector<2x8x8xf32>
    %54 = arith.truncf %52 : vector<2x8x8xf32> to vector<2x8x8xbf16>
    %55 = arith.truncf %53 : vector<2x8x8xf32> to vector<2x8x8xbf16>
    "tpu.trace_start"() <{level = 10 : i32, message = "bqd,bkd->bqk"}> : () -> ()
    %cst_35 = arith.constant dense<0.000000e+00> : vector<2x8x8xf32>
    %56 = tpu.matmul %54, %55, %cst_35 {dimension_numbers = #tpu.dot_dimension_numbers<[2], [2], [1], [1], [0, 0, 0, 1, 1, 1], [0], [0]>} : vector<2x8x8xbf16>, vector<2x8x8xbf16>, vector<2x8x8xf32> -> vector<2x8x8xf32>
    "tpu.trace_stop"() : () -> ()
    %cst_36 = arith.constant 0.353553385 : f32
    %57 = vector.broadcast %cst_36 : f32 to vector<2x8x8xf32>
    %58 = arith.mulf %56, %57 : vector<2x8x8xf32>
    %59 = vector.broadcast %34 : vector<2x1x8xf32> to vector<2x8x8xf32>
    %60 = arith.addf %58, %59 : vector<2x8x8xf32>
    %cst_37 = arith.constant dense<0xFF800000> : vector<2x8xf32>
    %61 = vector.multi_reduction <maximumf>, %60, %cst_37 [2] : vector<2x8x8xf32> to vector<2x8xf32>
    %62 = vector.shape_cast %61 : vector<2x8xf32> to vector<2x8x1xf32>
    %63 = vector.broadcast %62 : vector<2x8x1xf32> to vector<2x8x8xf32>
    %64 = arith.subf %60, %63 : vector<2x8x8xf32>
    %65 = math.exp %64 : vector<2x8x8xf32>
    %cst_38 = arith.constant dense<0.000000e+00> : vector<2x8xf32>
    %66 = vector.multi_reduction <add>, %65, %cst_38 [2] : vector<2x8x8xf32> to vector<2x8xf32>
    %67 = vector.shape_cast %66 : vector<2x8xf32> to vector<2x8x1xf32>
    %68 = tpu.reciprocal %67 {approx = true} : vector<2x8x1xf32> -> vector<2x8x1xf32>
    %69 = vector.broadcast %68 : vector<2x8x1xf32> to vector<2x8x8xf32>
    %70 = arith.mulf %65, %69 : vector<2x8x8xf32>
    %71 = vector.extract_strided_slice %50 {offsets = [0, 0, 0], sizes = [2, 8, 8], strides = [1, 1, 1]} : vector<2x8x32xf32> to vector<2x8x8xf32>
    %72 = arith.truncf %70 : vector<2x8x8xf32> to vector<2x8x8xbf16>
    %73 = arith.truncf %71 : vector<2x8x8xf32> to vector<2x8x8xbf16>
    "tpu.trace_start"() <{level = 10 : i32, message = "bqk,bkd->bqd"}> : () -> ()
    %cst_39 = arith.constant dense<0.000000e+00> : vector<2x8x8xf32>
    %74 = tpu.matmul %72, %73, %cst_39 {dimension_numbers = #tpu.dot_dimension_numbers<[2], [1], [1], [2], [0, 0, 0, 1, 1, 2], [0], [0]>} : vector<2x8x8xbf16>, vector<2x8x8xbf16>, vector<2x8x8xf32> -> vector<2x8x8xf32>
    "tpu.trace_stop"() : () -> ()
    %75 = vector.extract_strided_slice %37 {offsets = [0, 0], sizes = [8, 32], strides = [1, 1]} : vector<32x32xf32> to vector<8x32xf32>
    %76 = arith.truncf %74 : vector<2x8x8xf32> to vector<2x8x8xbf16>
    %77 = arith.truncf %75 : vector<8x32xf32> to vector<8x32xbf16>
    "tpu.trace_start"() <{level = 10 : i32, message = "bqd,dh->bqh"}> : () -> ()
    %cst_40 = arith.constant dense<0.000000e+00> : vector<2x8x32xf32>
    %78 = tpu.matmul %76, %77, %cst_40 {dimension_numbers = #tpu.dot_dimension_numbers<[2], [0], [0, 1], [1], [0, 0, 0, 1, 1, 1], [], []>} : vector<2x8x8xbf16>, vector<8x32xbf16>, vector<2x8x32xf32> -> vector<2x8x32xf32>
    "tpu.trace_stop"() : () -> ()
    %79 = arith.addf %51, %78 : vector<2x8x32xf32>
    %80 = vector.extract_strided_slice %48 {offsets = [0, 0, 8], sizes = [2, 8, 8], strides = [1, 1, 1]} : vector<2x8x32xf32> to vector<2x8x8xf32>
    %81 = vector.extract_strided_slice %49 {offsets = [0, 0, 8], sizes = [2, 8, 8], strides = [1, 1, 1]} : vector<2x8x32xf32> to vector<2x8x8xf32>
    %82 = arith.truncf %80 : vector<2x8x8xf32> to vector<2x8x8xbf16>
    %83 = arith.truncf %81 : vector<2x8x8xf32> to vector<2x8x8xbf16>
    "tpu.trace_start"() <{level = 10 : i32, message = "bqd,bkd->bqk"}> : () -> ()
    %cst_41 = arith.constant dense<0.000000e+00> : vector<2x8x8xf32>
    %84 = tpu.matmul %82, %83, %cst_41 {dimension_numbers = #tpu.dot_dimension_numbers<[2], [2], [1], [1], [0, 0, 0, 1, 1, 1], [0], [0]>} : vector<2x8x8xbf16>, vector<2x8x8xbf16>, vector<2x8x8xf32> -> vector<2x8x8xf32>
    "tpu.trace_stop"() : () -> ()
    %cst_42 = arith.constant 0.353553385 : f32
    %85 = vector.broadcast %cst_42 : f32 to vector<2x8x8xf32>
    %86 = arith.mulf %84, %85 : vector<2x8x8xf32>
    %87 = vector.broadcast %34 : vector<2x1x8xf32> to vector<2x8x8xf32>
    %88 = arith.addf %86, %87 : vector<2x8x8xf32>
    %cst_43 = arith.constant dense<0xFF800000> : vector<2x8xf32>
    %89 = vector.multi_reduction <maximumf>, %88, %cst_43 [2] : vector<2x8x8xf32> to vector<2x8xf32>
    %90 = vector.shape_cast %89 : vector<2x8xf32> to vector<2x8x1xf32>
    %91 = vector.broadcast %90 : vector<2x8x1xf32> to vector<2x8x8xf32>
    %92 = arith.subf %88, %91 : vector<2x8x8xf32>
    %93 = math.exp %92 : vector<2x8x8xf32>
    %cst_44 = arith.constant dense<0.000000e+00> : vector<2x8xf32>
    %94 = vector.multi_reduction <add>, %93, %cst_44 [2] : vector<2x8x8xf32> to vector<2x8xf32>
    %95 = vector.shape_cast %94 : vector<2x8xf32> to vector<2x8x1xf32>
    %96 = tpu.reciprocal %95 {approx = true} : vector<2x8x1xf32> -> vector<2x8x1xf32>
    %97 = vector.broadcast %96 : vector<2x8x1xf32> to vector<2x8x8xf32>
    %98 = arith.mulf %93, %97 : vector<2x8x8xf32>
    %99 = vector.extract_strided_slice %50 {offsets = [0, 0, 8], sizes = [2, 8, 8], strides = [1, 1, 1]} : vector<2x8x32xf32> to vector<2x8x8xf32>
    %100 = arith.truncf %98 : vector<2x8x8xf32> to vector<2x8x8xbf16>
    %101 = arith.truncf %99 : vector<2x8x8xf32> to vector<2x8x8xbf16>
    "tpu.trace_start"() <{level = 10 : i32, message = "bqk,bkd->bqd"}> : () -> ()
    %cst_45 = arith.constant dense<0.000000e+00> : vector<2x8x8xf32>
    %102 = tpu.matmul %100, %101, %cst_45 {dimension_numbers = #tpu.dot_dimension_numbers<[2], [1], [1], [2], [0, 0, 0, 1, 1, 2], [0], [0]>} : vector<2x8x8xbf16>, vector<2x8x8xbf16>, vector<2x8x8xf32> -> vector<2x8x8xf32>
    "tpu.trace_stop"() : () -> ()
    %103 = vector.extract_strided_slice %37 {offsets = [8, 0], sizes = [8, 32], strides = [1, 1]} : vector<32x32xf32> to vector<8x32xf32>
    %104 = arith.truncf %102 : vector<2x8x8xf32> to vector<2x8x8xbf16>
    %105 = arith.truncf %103 : vector<8x32xf32> to vector<8x32xbf16>
    "tpu.trace_start"() <{level = 10 : i32, message = "bqd,dh->bqh"}> : () -> ()
    %cst_46 = arith.constant dense<0.000000e+00> : vector<2x8x32xf32>
    %106 = tpu.matmul %104, %105, %cst_46 {dimension_numbers = #tpu.dot_dimension_numbers<[2], [0], [0, 1], [1], [0, 0, 0, 1, 1, 1], [], []>} : vector<2x8x8xbf16>, vector<8x32xbf16>, vector<2x8x32xf32> -> vector<2x8x32xf32>
    "tpu.trace_stop"() : () -> ()
    %107 = arith.addf %79, %106 : vector<2x8x32xf32>
    %108 = vector.extract_strided_slice %48 {offsets = [0, 0, 16], sizes = [2, 8, 8], strides = [1, 1, 1]} : vector<2x8x32xf32> to vector<2x8x8xf32>
    %109 = vector.extract_strided_slice %49 {offsets = [0, 0, 16], sizes = [2, 8, 8], strides = [1, 1, 1]} : vector<2x8x32xf32> to vector<2x8x8xf32>
    %110 = arith.truncf %108 : vector<2x8x8xf32> to vector<2x8x8xbf16>
    %111 = arith.truncf %109 : vector<2x8x8xf32> to vector<2x8x8xbf16>
    "tpu.trace_start"() <{level = 10 : i32, message = "bqd,bkd->bqk"}> : () -> ()
    %cst_47 = arith.constant dense<0.000000e+00> : vector<2x8x8xf32>
    %112 = tpu.matmul %110, %111, %cst_47 {dimension_numbers = #tpu.dot_dimension_numbers<[2], [2], [1], [1], [0, 0, 0, 1, 1, 1], [0], [0]>} : vector<2x8x8xbf16>, vector<2x8x8xbf16>, vector<2x8x8xf32> -> vector<2x8x8xf32>
    "tpu.trace_stop"() : () -> ()
    %cst_48 = arith.constant 0.353553385 : f32
    %113 = vector.broadcast %cst_48 : f32 to vector<2x8x8xf32>
    %114 = arith.mulf %112, %113 : vector<2x8x8xf32>
    %115 = vector.broadcast %34 : vector<2x1x8xf32> to vector<2x8x8xf32>
    %116 = arith.addf %114, %115 : vector<2x8x8xf32>
    %cst_49 = arith.constant dense<0xFF800000> : vector<2x8xf32>
    %117 = vector.multi_reduction <maximumf>, %116, %cst_49 [2] : vector<2x8x8xf32> to vector<2x8xf32>
    %118 = vector.shape_cast %117 : vector<2x8xf32> to vector<2x8x1xf32>
    %119 = vector.broadcast %118 : vector<2x8x1xf32> to vector<2x8x8xf32>
    %120 = arith.subf %116, %119 : vector<2x8x8xf32>
    %121 = math.exp %120 : vector<2x8x8xf32>
    %cst_50 = arith.constant dense<0.000000e+00> : vector<2x8xf32>
    %122 = vector.multi_reduction <add>, %121, %cst_50 [2] : vector<2x8x8xf32> to vector<2x8xf32>
    %123 = vector.shape_cast %122 : vector<2x8xf32> to vector<2x8x1xf32>
    %124 = tpu.reciprocal %123 {approx = true} : vector<2x8x1xf32> -> vector<2x8x1xf32>
    %125 = vector.broadcast %124 : vector<2x8x1xf32> to vector<2x8x8xf32>
    %126 = arith.mulf %121, %125 : vector<2x8x8xf32>
    %127 = vector.extract_strided_slice %50 {offsets = [0, 0, 16], sizes = [2, 8, 8], strides = [1, 1, 1]} : vector<2x8x32xf32> to vector<2x8x8xf32>
    %128 = arith.truncf %126 : vector<2x8x8xf32> to vector<2x8x8xbf16>
    %129 = arith.truncf %127 : vector<2x8x8xf32> to vector<2x8x8xbf16>
    "tpu.trace_start"() <{level = 10 : i32, message = "bqk,bkd->bqd"}> : () -> ()
    %cst_51 = arith.constant dense<0.000000e+00> : vector<2x8x8xf32>
    %130 = tpu.matmul %128, %129, %cst_51 {dimension_numbers = #tpu.dot_dimension_numbers<[2], [1], [1], [2], [0, 0, 0, 1, 1, 2], [0], [0]>} : vector<2x8x8xbf16>, vector<2x8x8xbf16>, vector<2x8x8xf32> -> vector<2x8x8xf32>
    "tpu.trace_stop"() : () -> ()
    %131 = vector.extract_strided_slice %37 {offsets = [16, 0], sizes = [8, 32], strides = [1, 1]} : vector<32x32xf32> to vector<8x32xf32>
    %132 = arith.truncf %130 : vector<2x8x8xf32> to vector<2x8x8xbf16>
    %133 = arith.truncf %131 : vector<8x32xf32> to vector<8x32xbf16>
    "tpu.trace_start"() <{level = 10 : i32, message = "bqd,dh->bqh"}> : () -> ()
    %cst_52 = arith.constant dense<0.000000e+00> : vector<2x8x32xf32>
    %134 = tpu.matmul %132, %133, %cst_52 {dimension_numbers = #tpu.dot_dimension_numbers<[2], [0], [0, 1], [1], [0, 0, 0, 1, 1, 1], [], []>} : vector<2x8x8xbf16>, vector<8x32xbf16>, vector<2x8x32xf32> -> vector<2x8x32xf32>
    "tpu.trace_stop"() : () -> ()
    %135 = arith.addf %107, %134 : vector<2x8x32xf32>
    %136 = vector.extract_strided_slice %48 {offsets = [0, 0, 24], sizes = [2, 8, 8], strides = [1, 1, 1]} : vector<2x8x32xf32> to vector<2x8x8xf32>
    %137 = vector.extract_strided_slice %49 {offsets = [0, 0, 24], sizes = [2, 8, 8], strides = [1, 1, 1]} : vector<2x8x32xf32> to vector<2x8x8xf32>
    %138 = arith.truncf %136 : vector<2x8x8xf32> to vector<2x8x8xbf16>
    %139 = arith.truncf %137 : vector<2x8x8xf32> to vector<2x8x8xbf16>
    "tpu.trace_start"() <{level = 10 : i32, message = "bqd,bkd->bqk"}> : () -> ()
    %cst_53 = arith.constant dense<0.000000e+00> : vector<2x8x8xf32>
    %140 = tpu.matmul %138, %139, %cst_53 {dimension_numbers = #tpu.dot_dimension_numbers<[2], [2], [1], [1], [0, 0, 0, 1, 1, 1], [0], [0]>} : vector<2x8x8xbf16>, vector<2x8x8xbf16>, vector<2x8x8xf32> -> vector<2x8x8xf32>
    "tpu.trace_stop"() : () -> ()
    %cst_54 = arith.constant 0.353553385 : f32
    %141 = vector.broadcast %cst_54 : f32 to vector<2x8x8xf32>
    %142 = arith.mulf %140, %141 : vector<2x8x8xf32>
    %143 = vector.broadcast %34 : vector<2x1x8xf32> to vector<2x8x8xf32>
    %144 = arith.addf %142, %143 : vector<2x8x8xf32>
    %cst_55 = arith.constant dense<0xFF800000> : vector<2x8xf32>
    %145 = vector.multi_reduction <maximumf>, %144, %cst_55 [2] : vector<2x8x8xf32> to vector<2x8xf32>
    %146 = vector.shape_cast %145 : vector<2x8xf32> to vector<2x8x1xf32>
    %147 = vector.broadcast %146 : vector<2x8x1xf32> to vector<2x8x8xf32>
    %148 = arith.subf %144, %147 : vector<2x8x8xf32>
    %149 = math.exp %148 : vector<2x8x8xf32>
    %cst_56 = arith.constant dense<0.000000e+00> : vector<2x8xf32>
    %150 = vector.multi_reduction <add>, %149, %cst_56 [2] : vector<2x8x8xf32> to vector<2x8xf32>
    %151 = vector.shape_cast %150 : vector<2x8xf32> to vector<2x8x1xf32>
    %152 = tpu.reciprocal %151 {approx = true} : vector<2x8x1xf32> -> vector<2x8x1xf32>
    %153 = vector.broadcast %152 : vector<2x8x1xf32> to vector<2x8x8xf32>
    %154 = arith.mulf %149, %153 : vector<2x8x8xf32>
    %155 = vector.extract_strided_slice %50 {offsets = [0, 0, 24], sizes = [2, 8, 8], strides = [1, 1, 1]} : vector<2x8x32xf32> to vector<2x8x8xf32>
    %156 = arith.truncf %154 : vector<2x8x8xf32> to vector<2x8x8xbf16>
    %157 = arith.truncf %155 : vector<2x8x8xf32> to vector<2x8x8xbf16>
    "tpu.trace_start"() <{level = 10 : i32, message = "bqk,bkd->bqd"}> : () -> ()
    %cst_57 = arith.constant dense<0.000000e+00> : vector<2x8x8xf32>
    %158 = tpu.matmul %156, %157, %cst_57 {dimension_numbers = #tpu.dot_dimension_numbers<[2], [1], [1], [2], [0, 0, 0, 1, 1, 2], [0], [0]>} : vector<2x8x8xbf16>, vector<2x8x8xbf16>, vector<2x8x8xf32> -> vector<2x8x8xf32>
    "tpu.trace_stop"() : () -> ()
    %159 = vector.extract_strided_slice %37 {offsets = [24, 0], sizes = [8, 32], strides = [1, 1]} : vector<32x32xf32> to vector<8x32xf32>
    %160 = arith.truncf %158 : vector<2x8x8xf32> to vector<2x8x8xbf16>
    %161 = arith.truncf %159 : vector<8x32xf32> to vector<8x32xbf16>
    "tpu.trace_start"() <{level = 10 : i32, message = "bqd,dh->bqh"}> : () -> ()
    %cst_58 = arith.constant dense<0.000000e+00> : vector<2x8x32xf32>
    %162 = tpu.matmul %160, %161, %cst_58 {dimension_numbers = #tpu.dot_dimension_numbers<[2], [0], [0, 1], [1], [0, 0, 0, 1, 1, 1], [], []>} : vector<2x8x8xbf16>, vector<8x32xbf16>, vector<2x8x32xf32> -> vector<2x8x32xf32>
    "tpu.trace_stop"() : () -> ()
    %163 = arith.addf %135, %162 : vector<2x8x32xf32>
    %164 = vector.shape_cast %38 : vector<1x32xf32> to vector<1x1x32xf32>
    %165 = vector.broadcast %164 : vector<1x1x32xf32> to vector<2x8x32xf32>
    %166 = arith.addf %163, %165 : vector<2x8x32xf32>
    %167 = arith.addf %33, %166 : vector<2x8x32xf32>
    %c0_59 = arith.constant 0 : index
    %c0_60 = arith.constant 0 : index
    %168 = vector.load %arg10[%c0_59, %c0_60] : memref<2x32xf32, #tpu.memory_space<vmem>>, vector<1x32xf32>
    %c1_61 = arith.constant 1 : index
    %c0_62 = arith.constant 0 : index
    %169 = vector.load %arg10[%c1_61, %c0_62] : memref<2x32xf32, #tpu.memory_space<vmem>>, vector<1x32xf32>
    %cst_63 = arith.constant dense<0.000000e+00> : vector<2x8xf32>
    %170 = vector.multi_reduction <add>, %167, %cst_63 [2] : vector<2x8x32xf32> to vector<2x8xf32>
    %171 = vector.shape_cast %170 : vector<2x8xf32> to vector<2x8x1xf32>
    %cst_64 = arith.constant 3.200000e+01 : f32
    %172 = vector.broadcast %cst_64 : f32 to vector<2x8x1xf32>
    %173 = arith.divf %171, %172 : vector<2x8x1xf32>
    %174 = vector.broadcast %173 : vector<2x8x1xf32> to vector<2x8x32xf32>
    %175 = arith.subf %167, %174 : vector<2x8x32xf32>
    %176 = arith.mulf %175, %175 : vector<2x8x32xf32>
    %cst_65 = arith.constant dense<0.000000e+00> : vector<2x8xf32>
    %177 = vector.multi_reduction <add>, %176, %cst_65 [2] : vector<2x8x32xf32> to vector<2x8xf32>
    %178 = vector.shape_cast %177 : vector<2x8xf32> to vector<2x8x1xf32>
    %cst_66 = arith.constant 3.200000e+01 : f32
    %179 = vector.broadcast %cst_66 : f32 to vector<2x8x1xf32>
    %180 = arith.divf %178, %179 : vector<2x8x1xf32>
    %181 = vector.broadcast %173 : vector<2x8x1xf32> to vector<2x8x32xf32>
    %182 = arith.subf %167, %181 : vector<2x8x32xf32>
    %cst_67 = arith.constant 9.99999996E-13 : f32
    %183 = vector.broadcast %cst_67 : f32 to vector<2x8x1xf32>
    %184 = arith.addf %180, %183 : vector<2x8x1xf32>
    %185 = math.rsqrt %184 : vector<2x8x1xf32>
    %186 = vector.broadcast %185 : vector<2x8x1xf32> to vector<2x8x32xf32>
    %187 = arith.mulf %182, %186 : vector<2x8x32xf32>
    %188 = vector.shape_cast %168 : vector<1x32xf32> to vector<1x1x32xf32>
    %189 = vector.broadcast %188 : vector<1x1x32xf32> to vector<2x8x32xf32>
    %190 = arith.mulf %187, %189 : vector<2x8x32xf32>
    %191 = vector.shape_cast %169 : vector<1x32xf32> to vector<1x1x32xf32>
    %192 = vector.broadcast %191 : vector<1x1x32xf32> to vector<2x8x32xf32>
    %193 = arith.addf %190, %192 : vector<2x8x32xf32>
    %194 = arith.truncf %193 : vector<2x8x32xf32> to vector<2x8x32xbf16>
    "tpu.trace_start"() <{level = 10 : i32, message = "bsh,hi->bsi"}> : () -> ()
    %cst_68 = arith.constant dense<0.000000e+00> : vector<2x8x64xf32>
    %195 = tpu.matmul %194, %39, %cst_68 {dimension_numbers = #tpu.dot_dimension_numbers<[2], [0], [0, 1], [1], [0, 0, 0, 1, 1, 1], [], []>} : vector<2x8x32xbf16>, vector<32x64xbf16>, vector<2x8x64xf32> -> vector<2x8x64xf32>
    "tpu.trace_stop"() : () -> ()
    %196 = vector.shape_cast %40 : vector<1x64xf32> to vector<1x1x64xf32>
    %197 = vector.broadcast %196 : vector<1x1x64xf32> to vector<2x8x64xf32>
    %198 = arith.addf %195, %197 : vector<2x8x64xf32>
    %cst_69 = arith.constant 5.000000e-01 : f32
    %199 = vector.broadcast %cst_69 : f32 to vector<2x8x64xf32>
    %200 = arith.mulf %199, %198 : vector<2x8x64xf32>
    %cst_70 = arith.constant 4.471500e-02 : f32
    %201 = vector.broadcast %cst_70 : f32 to vector<2x8x64xf32>
    %202 = arith.mulf %201, %198 : vector<2x8x64xf32>
    %203 = arith.mulf %202, %198 : vector<2x8x64xf32>
    %204 = arith.mulf %203, %198 : vector<2x8x64xf32>
    %205 = arith.addf %198, %204 : vector<2x8x64xf32>
    %cst_71 = arith.constant 0.797884583 : f32
    %206 = vector.broadcast %cst_71 : f32 to vector<2x8x64xf32>
    %207 = arith.mulf %206, %205 : vector<2x8x64xf32>
    %208 = math.tanh %207 : vector<2x8x64xf32>
    %cst_72 = arith.constant 1.000000e+00 : f32
    %209 = vector.broadcast %cst_72 : f32 to vector<2x8x64xf32>
    %210 = arith.addf %209, %208 : vector<2x8x64xf32>
    %211 = arith.mulf %200, %210 : vector<2x8x64xf32>
    %212 = arith.truncf %211 : vector<2x8x64xf32> to vector<2x8x64xbf16>
    "tpu.trace_start"() <{level = 10 : i32, message = "bsi,ih->bsh"}> : () -> ()
    %cst_73 = arith.constant dense<0.000000e+00> : vector<2x8x32xf32>
    %213 = tpu.matmul %212, %41, %cst_73 {dimension_numbers = #tpu.dot_dimension_numbers<[2], [0], [0, 1], [1], [0, 0, 0, 1, 1, 1], [], []>} : vector<2x8x64xbf16>, vector<64x32xbf16>, vector<2x8x32xf32> -> vector<2x8x32xf32>
    "tpu.trace_stop"() : () -> ()
    %214 = vector.shape_cast %42 : vector<1x32xf32> to vector<1x1x32xf32>
    %215 = vector.broadcast %214 : vector<1x1x32xf32> to vector<2x8x32xf32>
    %216 = arith.addf %213, %215 : vector<2x8x32xf32>
    %217 = arith.addf %193, %216 : vector<2x8x32xf32>
    %c0_74 = arith.constant 0 : index
    %c0_75 = arith.constant 0 : index
    %218 = vector.load %arg15[%c0_74, %c0_75] : memref<2x32xf32, #tpu.memory_space<vmem>>, vector<1x32xf32>
    %c1_76 = arith.constant 1 : index
    %c0_77 = arith.constant 0 : index
    %219 = vector.load %arg15[%c1_76, %c0_77] : memref<2x32xf32, #tpu.memory_space<vmem>>, vector<1x32xf32>
    %cst_78 = arith.constant dense<0.000000e+00> : vector<2x8xf32>
    %220 = vector.multi_reduction <add>, %217, %cst_78 [2] : vector<2x8x32xf32> to vector<2x8xf32>
    %221 = vector.shape_cast %220 : vector<2x8xf32> to vector<2x8x1xf32>
    %cst_79 = arith.constant 3.200000e+01 : f32
    %222 = vector.broadcast %cst_79 : f32 to vector<2x8x1xf32>
    %223 = arith.divf %221, %222 : vector<2x8x1xf32>
    %224 = vector.broadcast %223 : vector<2x8x1xf32> to vector<2x8x32xf32>
    %225 = arith.subf %217, %224 : vector<2x8x32xf32>
    %226 = arith.mulf %225, %225 : vector<2x8x32xf32>
    %cst_80 = arith.constant dense<0.000000e+00> : vector<2x8xf32>
    %227 = vector.multi_reduction <add>, %226, %cst_80 [2] : vector<2x8x32xf32> to vector<2x8xf32>
    %228 = vector.shape_cast %227 : vector<2x8xf32> to vector<2x8x1xf32>
    %cst_81 = arith.constant 3.200000e+01 : f32
    %229 = vector.broadcast %cst_81 : f32 to vector<2x8x1xf32>
    %230 = arith.divf %228, %229 : vector<2x8x1xf32>
    %231 = vector.broadcast %223 : vector<2x8x1xf32> to vector<2x8x32xf32>
    %232 = arith.subf %217, %231 : vector<2x8x32xf32>
    %cst_82 = arith.constant 9.99999996E-13 : f32
    %233 = vector.broadcast %cst_82 : f32 to vector<2x8x1xf32>
    %234 = arith.addf %230, %233 : vector<2x8x1xf32>
    %235 = math.rsqrt %234 : vector<2x8x1xf32>
    %236 = vector.broadcast %235 : vector<2x8x1xf32> to vector<2x8x32xf32>
    %237 = arith.mulf %232, %236 : vector<2x8x32xf32>
    %238 = vector.shape_cast %218 : vector<1x32xf32> to vector<1x1x32xf32>
    %239 = vector.broadcast %238 : vector<1x1x32xf32> to vector<2x8x32xf32>
    %240 = arith.mulf %237, %239 : vector<2x8x32xf32>
    %241 = vector.shape_cast %219 : vector<1x32xf32> to vector<1x1x32xf32>
    %242 = vector.broadcast %241 : vector<1x1x32xf32> to vector<2x8x32xf32>
    %243 = arith.addf %240, %242 : vector<2x8x32xf32>
    %244 = arith.truncf %243 : vector<2x8x32xf32> to vector<2x8x32xbf16>
    "tpu.trace_start"() <{level = 10 : i32, message = "bsh,hk->bsk"}> : () -> ()
    %cst_83 = arith.constant dense<0.000000e+00> : vector<2x8x96xf32>
    %245 = tpu.matmul %244, %35, %cst_83 {dimension_numbers = #tpu.dot_dimension_numbers<[2], [0], [0, 1], [1], [0, 0, 0, 1, 1, 1], [], []>} : vector<2x8x32xbf16>, vector<32x96xbf16>, vector<2x8x96xf32> -> vector<2x8x96xf32>
    "tpu.trace_stop"() : () -> ()
    %246 = vector.shape_cast %36 : vector<1x96xf32> to vector<1x1x96xf32>
    %247 = vector.broadcast %246 : vector<1x1x96xf32> to vector<2x8x96xf32>
    %248 = arith.addf %245, %247 : vector<2x8x96xf32>
    %249 = vector.extract_strided_slice %248 {offsets = [0, 0, 0], sizes = [2, 8, 32], strides = [1, 1, 1]} : vector<2x8x96xf32> to vector<2x8x32xf32>
    %250 = vector.extract_strided_slice %248 {offsets = [0, 0, 32], sizes = [2, 8, 32], strides = [1, 1, 1]} : vector<2x8x96xf32> to vector<2x8x32xf32>
    %251 = vector.extract_strided_slice %248 {offsets = [0, 0, 64], sizes = [2, 8, 32], strides = [1, 1, 1]} : vector<2x8x96xf32> to vector<2x8x32xf32>
    %cst_84 = arith.constant 0.000000e+00 : f32
    %252 = vector.broadcast %cst_84 : f32 to vector<2x8x32xf32>
    %253 = vector.extract_strided_slice %249 {offsets = [0, 0, 0], sizes = [2, 8, 8], strides = [1, 1, 1]} : vector<2x8x32xf32> to vector<2x8x8xf32>
    %254 = vector.extract_strided_slice %250 {offsets = [0, 0, 0], sizes = [2, 8, 8], strides = [1, 1, 1]} : vector<2x8x32xf32> to vector<2x8x8xf32>
    %255 = arith.truncf %253 : vector<2x8x8xf32> to vector<2x8x8xbf16>
    %256 = arith.truncf %254 : vector<2x8x8xf32> to vector<2x8x8xbf16>
    "tpu.trace_start"() <{level = 10 : i32, message = "bqd,bkd->bqk"}> : () -> ()
    %cst_85 = arith.constant dense<0.000000e+00> : vector<2x8x8xf32>
    %257 = tpu.matmul %255, %256, %cst_85 {dimension_numbers = #tpu.dot_dimension_numbers<[2], [2], [1], [1], [0, 0, 0, 1, 1, 1], [0], [0]>} : vector<2x8x8xbf16>, vector<2x8x8xbf16>, vector<2x8x8xf32> -> vector<2x8x8xf32>
    "tpu.trace_stop"() : () -> ()
    %cst_86 = arith.constant 0.353553385 : f32
    %258 = vector.broadcast %cst_86 : f32 to vector<2x8x8xf32>
    %259 = arith.mulf %257, %258 : vector<2x8x8xf32>
    %260 = vector.broadcast %34 : vector<2x1x8xf32> to vector<2x8x8xf32>
    %261 = arith.addf %259, %260 : vector<2x8x8xf32>
    %cst_87 = arith.constant dense<0xFF800000> : vector<2x8xf32>
    %262 = vector.multi_reduction <maximumf>, %261, %cst_87 [2] : vector<2x8x8xf32> to vector<2x8xf32>
    %263 = vector.shape_cast %262 : vector<2x8xf32> to vector<2x8x1xf32>
    %264 = vector.broadcast %263 : vector<2x8x1xf32> to vector<2x8x8xf32>
    %265 = arith.subf %261, %264 : vector<2x8x8xf32>
    %266 = math.exp %265 : vector<2x8x8xf32>
    %cst_88 = arith.constant dense<0.000000e+00> : vector<2x8xf32>
    %267 = vector.multi_reduction <add>, %266, %cst_88 [2] : vector<2x8x8xf32> to vector<2x8xf32>
    %268 = vector.shape_cast %267 : vector<2x8xf32> to vector<2x8x1xf32>
    %269 = tpu.reciprocal %268 {approx = true} : vector<2x8x1xf32> -> vector<2x8x1xf32>
    %270 = vector.broadcast %269 : vector<2x8x1xf32> to vector<2x8x8xf32>
    %271 = arith.mulf %266, %270 : vector<2x8x8xf32>
    %272 = vector.extract_strided_slice %251 {offsets = [0, 0, 0], sizes = [2, 8, 8], strides = [1, 1, 1]} : vector<2x8x32xf32> to vector<2x8x8xf32>
    %273 = arith.truncf %271 : vector<2x8x8xf32> to vector<2x8x8xbf16>
    %274 = arith.truncf %272 : vector<2x8x8xf32> to vector<2x8x8xbf16>
    "tpu.trace_start"() <{level = 10 : i32, message = "bqk,bkd->bqd"}> : () -> ()
    %cst_89 = arith.constant dense<0.000000e+00> : vector<2x8x8xf32>
    %275 = tpu.matmul %273, %274, %cst_89 {dimension_numbers = #tpu.dot_dimension_numbers<[2], [1], [1], [2], [0, 0, 0, 1, 1, 2], [0], [0]>} : vector<2x8x8xbf16>, vector<2x8x8xbf16>, vector<2x8x8xf32> -> vector<2x8x8xf32>
    "tpu.trace_stop"() : () -> ()
    %276 = vector.extract_strided_slice %37 {offsets = [0, 0], sizes = [8, 32], strides = [1, 1]} : vector<32x32xf32> to vector<8x32xf32>
    %277 = arith.truncf %275 : vector<2x8x8xf32> to vector<2x8x8xbf16>
    %278 = arith.truncf %276 : vector<8x32xf32> to vector<8x32xbf16>
    "tpu.trace_start"() <{level = 10 : i32, message = "bqd,dh->bqh"}> : () -> ()
    %cst_90 = arith.constant dense<0.000000e+00> : vector<2x8x32xf32>
    %279 = tpu.matmul %277, %278, %cst_90 {dimension_numbers = #tpu.dot_dimension_numbers<[2], [0], [0, 1], [1], [0, 0, 0, 1, 1, 1], [], []>} : vector<2x8x8xbf16>, vector<8x32xbf16>, vector<2x8x32xf32> -> vector<2x8x32xf32>
    "tpu.trace_stop"() : () -> ()
    %280 = arith.addf %252, %279 : vector<2x8x32xf32>
    %281 = vector.extract_strided_slice %249 {offsets = [0, 0, 8], sizes = [2, 8, 8], strides = [1, 1, 1]} : vector<2x8x32xf32> to vector<2x8x8xf32>
    %282 = vector.extract_strided_slice %250 {offsets = [0, 0, 8], sizes = [2, 8, 8], strides = [1, 1, 1]} : vector<2x8x32xf32> to vector<2x8x8xf32>
    %283 = arith.truncf %281 : vector<2x8x8xf32> to vector<2x8x8xbf16>
    %284 = arith.truncf %282 : vector<2x8x8xf32> to vector<2x8x8xbf16>
    "tpu.trace_start"() <{level = 10 : i32, message = "bqd,bkd->bqk"}> : () -> ()
    %cst_91 = arith.constant dense<0.000000e+00> : vector<2x8x8xf32>
    %285 = tpu.matmul %283, %284, %cst_91 {dimension_numbers = #tpu.dot_dimension_numbers<[2], [2], [1], [1], [0, 0, 0, 1, 1, 1], [0], [0]>} : vector<2x8x8xbf16>, vector<2x8x8xbf16>, vector<2x8x8xf32> -> vector<2x8x8xf32>
    "tpu.trace_stop"() : () -> ()
    %cst_92 = arith.constant 0.353553385 : f32
    %286 = vector.broadcast %cst_92 : f32 to vector<2x8x8xf32>
    %287 = arith.mulf %285, %286 : vector<2x8x8xf32>
    %288 = vector.broadcast %34 : vector<2x1x8xf32> to vector<2x8x8xf32>
    %289 = arith.addf %287, %288 : vector<2x8x8xf32>
    %cst_93 = arith.constant dense<0xFF800000> : vector<2x8xf32>
    %290 = vector.multi_reduction <maximumf>, %289, %cst_93 [2] : vector<2x8x8xf32> to vector<2x8xf32>
    %291 = vector.shape_cast %290 : vector<2x8xf32> to vector<2x8x1xf32>
    %292 = vector.broadcast %291 : vector<2x8x1xf32> to vector<2x8x8xf32>
    %293 = arith.subf %289, %292 : vector<2x8x8xf32>
    %294 = math.exp %293 : vector<2x8x8xf32>
    %cst_94 = arith.constant dense<0.000000e+00> : vector<2x8xf32>
    %295 = vector.multi_reduction <add>, %294, %cst_94 [2] : vector<2x8x8xf32> to vector<2x8xf32>
    %296 = vector.shape_cast %295 : vector<2x8xf32> to vector<2x8x1xf32>
    %297 = tpu.reciprocal %296 {approx = true} : vector<2x8x1xf32> -> vector<2x8x1xf32>
    %298 = vector.broadcast %297 : vector<2x8x1xf32> to vector<2x8x8xf32>
    %299 = arith.mulf %294, %298 : vector<2x8x8xf32>
    %300 = vector.extract_strided_slice %251 {offsets = [0, 0, 8], sizes = [2, 8, 8], strides = [1, 1, 1]} : vector<2x8x32xf32> to vector<2x8x8xf32>
    %301 = arith.truncf %299 : vector<2x8x8xf32> to vector<2x8x8xbf16>
    %302 = arith.truncf %300 : vector<2x8x8xf32> to vector<2x8x8xbf16>
    "tpu.trace_start"() <{level = 10 : i32, message = "bqk,bkd->bqd"}> : () -> ()
    %cst_95 = arith.constant dense<0.000000e+00> : vector<2x8x8xf32>
    %303 = tpu.matmul %301, %302, %cst_95 {dimension_numbers = #tpu.dot_dimension_numbers<[2], [1], [1], [2], [0, 0, 0, 1, 1, 2], [0], [0]>} : vector<2x8x8xbf16>, vector<2x8x8xbf16>, vector<2x8x8xf32> -> vector<2x8x8xf32>
    "tpu.trace_stop"() : () -> ()
    %304 = vector.extract_strided_slice %37 {offsets = [8, 0], sizes = [8, 32], strides = [1, 1]} : vector<32x32xf32> to vector<8x32xf32>
    %305 = arith.truncf %303 : vector<2x8x8xf32> to vector<2x8x8xbf16>
    %306 = arith.truncf %304 : vector<8x32xf32> to vector<8x32xbf16>
    "tpu.trace_start"() <{level = 10 : i32, message = "bqd,dh->bqh"}> : () -> ()
    %cst_96 = arith.constant dense<0.000000e+00> : vector<2x8x32xf32>
    %307 = tpu.matmul %305, %306, %cst_96 {dimension_numbers = #tpu.dot_dimension_numbers<[2], [0], [0, 1], [1], [0, 0, 0, 1, 1, 1], [], []>} : vector<2x8x8xbf16>, vector<8x32xbf16>, vector<2x8x32xf32> -> vector<2x8x32xf32>
    "tpu.trace_stop"() : () -> ()
    %308 = arith.addf %280, %307 : vector<2x8x32xf32>
    %309 = vector.extract_strided_slice %249 {offsets = [0, 0, 16], sizes = [2, 8, 8], strides = [1, 1, 1]} : vector<2x8x32xf32> to vector<2x8x8xf32>
    %310 = vector.extract_strided_slice %250 {offsets = [0, 0, 16], sizes = [2, 8, 8], strides = [1, 1, 1]} : vector<2x8x32xf32> to vector<2x8x8xf32>
    %311 = arith.truncf %309 : vector<2x8x8xf32> to vector<2x8x8xbf16>
    %312 = arith.truncf %310 : vector<2x8x8xf32> to vector<2x8x8xbf16>
    "tpu.trace_start"() <{level = 10 : i32, message = "bqd,bkd->bqk"}> : () -> ()
    %cst_97 = arith.constant dense<0.000000e+00> : vector<2x8x8xf32>
    %313 = tpu.matmul %311, %312, %cst_97 {dimension_numbers = #tpu.dot_dimension_numbers<[2], [2], [1], [1], [0, 0, 0, 1, 1, 1], [0], [0]>} : vector<2x8x8xbf16>, vector<2x8x8xbf16>, vector<2x8x8xf32> -> vector<2x8x8xf32>
    "tpu.trace_stop"() : () -> ()
    %cst_98 = arith.constant 0.353553385 : f32
    %314 = vector.broadcast %cst_98 : f32 to vector<2x8x8xf32>
    %315 = arith.mulf %313, %314 : vector<2x8x8xf32>
    %316 = vector.broadcast %34 : vector<2x1x8xf32> to vector<2x8x8xf32>
    %317 = arith.addf %315, %316 : vector<2x8x8xf32>
    %cst_99 = arith.constant dense<0xFF800000> : vector<2x8xf32>
    %318 = vector.multi_reduction <maximumf>, %317, %cst_99 [2] : vector<2x8x8xf32> to vector<2x8xf32>
    %319 = vector.shape_cast %318 : vector<2x8xf32> to vector<2x8x1xf32>
    %320 = vector.broadcast %319 : vector<2x8x1xf32> to vector<2x8x8xf32>
    %321 = arith.subf %317, %320 : vector<2x8x8xf32>
    %322 = math.exp %321 : vector<2x8x8xf32>
    %cst_100 = arith.constant dense<0.000000e+00> : vector<2x8xf32>
    %323 = vector.multi_reduction <add>, %322, %cst_100 [2] : vector<2x8x8xf32> to vector<2x8xf32>
    %324 = vector.shape_cast %323 : vector<2x8xf32> to vector<2x8x1xf32>
    %325 = tpu.reciprocal %324 {approx = true} : vector<2x8x1xf32> -> vector<2x8x1xf32>
    %326 = vector.broadcast %325 : vector<2x8x1xf32> to vector<2x8x8xf32>
    %327 = arith.mulf %322, %326 : vector<2x8x8xf32>
    %328 = vector.extract_strided_slice %251 {offsets = [0, 0, 16], sizes = [2, 8, 8], strides = [1, 1, 1]} : vector<2x8x32xf32> to vector<2x8x8xf32>
    %329 = arith.truncf %327 : vector<2x8x8xf32> to vector<2x8x8xbf16>
    %330 = arith.truncf %328 : vector<2x8x8xf32> to vector<2x8x8xbf16>
    "tpu.trace_start"() <{level = 10 : i32, message = "bqk,bkd->bqd"}> : () -> ()
    %cst_101 = arith.constant dense<0.000000e+00> : vector<2x8x8xf32>
    %331 = tpu.matmul %329, %330, %cst_101 {dimension_numbers = #tpu.dot_dimension_numbers<[2], [1], [1], [2], [0, 0, 0, 1, 1, 2], [0], [0]>} : vector<2x8x8xbf16>, vector<2x8x8xbf16>, vector<2x8x8xf32> -> vector<2x8x8xf32>
    "tpu.trace_stop"() : () -> ()
    %332 = vector.extract_strided_slice %37 {offsets = [16, 0], sizes = [8, 32], strides = [1, 1]} : vector<32x32xf32> to vector<8x32xf32>
    %333 = arith.truncf %331 : vector<2x8x8xf32> to vector<2x8x8xbf16>
    %334 = arith.truncf %332 : vector<8x32xf32> to vector<8x32xbf16>
    "tpu.trace_start"() <{level = 10 : i32, message = "bqd,dh->bqh"}> : () -> ()
    %cst_102 = arith.constant dense<0.000000e+00> : vector<2x8x32xf32>
    %335 = tpu.matmul %333, %334, %cst_102 {dimension_numbers = #tpu.dot_dimension_numbers<[2], [0], [0, 1], [1], [0, 0, 0, 1, 1, 1], [], []>} : vector<2x8x8xbf16>, vector<8x32xbf16>, vector<2x8x32xf32> -> vector<2x8x32xf32>
    "tpu.trace_stop"() : () -> ()
    %336 = arith.addf %308, %335 : vector<2x8x32xf32>
    %337 = vector.extract_strided_slice %249 {offsets = [0, 0, 24], sizes = [2, 8, 8], strides = [1, 1, 1]} : vector<2x8x32xf32> to vector<2x8x8xf32>
    %338 = vector.extract_strided_slice %250 {offsets = [0, 0, 24], sizes = [2, 8, 8], strides = [1, 1, 1]} : vector<2x8x32xf32> to vector<2x8x8xf32>
    %339 = arith.truncf %337 : vector<2x8x8xf32> to vector<2x8x8xbf16>
    %340 = arith.truncf %338 : vector<2x8x8xf32> to vector<2x8x8xbf16>
    "tpu.trace_start"() <{level = 10 : i32, message = "bqd,bkd->bqk"}> : () -> ()
    %cst_103 = arith.constant dense<0.000000e+00> : vector<2x8x8xf32>
    %341 = tpu.matmul %339, %340, %cst_103 {dimension_numbers = #tpu.dot_dimension_numbers<[2], [2], [1], [1], [0, 0, 0, 1, 1, 1], [0], [0]>} : vector<2x8x8xbf16>, vector<2x8x8xbf16>, vector<2x8x8xf32> -> vector<2x8x8xf32>
    "tpu.trace_stop"() : () -> ()
    %cst_104 = arith.constant 0.353553385 : f32
    %342 = vector.broadcast %cst_104 : f32 to vector<2x8x8xf32>
    %343 = arith.mulf %341, %342 : vector<2x8x8xf32>
    %344 = vector.broadcast %34 : vector<2x1x8xf32> to vector<2x8x8xf32>
    %345 = arith.addf %343, %344 : vector<2x8x8xf32>
    %cst_105 = arith.constant dense<0xFF800000> : vector<2x8xf32>
    %346 = vector.multi_reduction <maximumf>, %345, %cst_105 [2] : vector<2x8x8xf32> to vector<2x8xf32>
    %347 = vector.shape_cast %346 : vector<2x8xf32> to vector<2x8x1xf32>
    %348 = vector.broadcast %347 : vector<2x8x1xf32> to vector<2x8x8xf32>
    %349 = arith.subf %345, %348 : vector<2x8x8xf32>
    %350 = math.exp %349 : vector<2x8x8xf32>
    %cst_106 = arith.constant dense<0.000000e+00> : vector<2x8xf32>
    %351 = vector.multi_reduction <add>, %350, %cst_106 [2] : vector<2x8x8xf32> to vector<2x8xf32>
    %352 = vector.shape_cast %351 : vector<2x8xf32> to vector<2x8x1xf32>
    %353 = tpu.reciprocal %352 {approx = true} : vector<2x8x1xf32> -> vector<2x8x1xf32>
    %354 = vector.broadcast %353 : vector<2x8x1xf32> to vector<2x8x8xf32>
    %355 = arith.mulf %350, %354 : vector<2x8x8xf32>
    %356 = vector.extract_strided_slice %251 {offsets = [0, 0, 24], sizes = [2, 8, 8], strides = [1, 1, 1]} : vector<2x8x32xf32> to vector<2x8x8xf32>
    %357 = arith.truncf %355 : vector<2x8x8xf32> to vector<2x8x8xbf16>
    %358 = arith.truncf %356 : vector<2x8x8xf32> to vector<2x8x8xbf16>
    "tpu.trace_start"() <{level = 10 : i32, message = "bqk,bkd->bqd"}> : () -> ()
    %cst_107 = arith.constant dense<0.000000e+00> : vector<2x8x8xf32>
    %359 = tpu.matmul %357, %358, %cst_107 {dimension_numbers = #tpu.dot_dimension_numbers<[2], [1], [1], [2], [0, 0, 0, 1, 1, 2], [0], [0]>} : vector<2x8x8xbf16>, vector<2x8x8xbf16>, vector<2x8x8xf32> -> vector<2x8x8xf32>
    "tpu.trace_stop"() : () -> ()
    %360 = vector.extract_strided_slice %37 {offsets = [24, 0], sizes = [8, 32], strides = [1, 1]} : vector<32x32xf32> to vector<8x32xf32>
    %361 = arith.truncf %359 : vector<2x8x8xf32> to vector<2x8x8xbf16>
    %362 = arith.truncf %360 : vector<8x32xf32> to vector<8x32xbf16>
    "tpu.trace_start"() <{level = 10 : i32, message = "bqd,dh->bqh"}> : () -> ()
    %cst_108 = arith.constant dense<0.000000e+00> : vector<2x8x32xf32>
    %363 = tpu.matmul %361, %362, %cst_108 {dimension_numbers = #tpu.dot_dimension_numbers<[2], [0], [0, 1], [1], [0, 0, 0, 1, 1, 1], [], []>} : vector<2x8x8xbf16>, vector<8x32xbf16>, vector<2x8x32xf32> -> vector<2x8x32xf32>
    "tpu.trace_stop"() : () -> ()
    %364 = arith.addf %336, %363 : vector<2x8x32xf32>
    %365 = vector.shape_cast %38 : vector<1x32xf32> to vector<1x1x32xf32>
    %366 = vector.broadcast %365 : vector<1x1x32xf32> to vector<2x8x32xf32>
    %367 = arith.addf %364, %366 : vector<2x8x32xf32>
    %368 = arith.addf %243, %367 : vector<2x8x32xf32>
    %c0_109 = arith.constant 0 : index
    %c0_110 = arith.constant 0 : index
    %369 = vector.load %arg10[%c0_109, %c0_110] : memref<2x32xf32, #tpu.memory_space<vmem>>, vector<1x32xf32>
    %c1_111 = arith.constant 1 : index
    %c0_112 = arith.constant 0 : index
    %370 = vector.load %arg10[%c1_111, %c0_112] : memref<2x32xf32, #tpu.memory_space<vmem>>, vector<1x32xf32>
    %cst_113 = arith.constant dense<0.000000e+00> : vector<2x8xf32>
    %371 = vector.multi_reduction <add>, %368, %cst_113 [2] : vector<2x8x32xf32> to vector<2x8xf32>
    %372 = vector.shape_cast %371 : vector<2x8xf32> to vector<2x8x1xf32>
    %cst_114 = arith.constant 3.200000e+01 : f32
    %373 = vector.broadcast %cst_114 : f32 to vector<2x8x1xf32>
    %374 = arith.divf %372, %373 : vector<2x8x1xf32>
    %375 = vector.broadcast %374 : vector<2x8x1xf32> to vector<2x8x32xf32>
    %376 = arith.subf %368, %375 : vector<2x8x32xf32>
    %377 = arith.mulf %376, %376 : vector<2x8x32xf32>
    %cst_115 = arith.constant dense<0.000000e+00> : vector<2x8xf32>
    %378 = vector.multi_reduction <add>, %377, %cst_115 [2] : vector<2x8x32xf32> to vector<2x8xf32>
    %379 = vector.shape_cast %378 : vector<2x8xf32> to vector<2x8x1xf32>
    %cst_116 = arith.constant 3.200000e+01 : f32
    %380 = vector.broadcast %cst_116 : f32 to vector<2x8x1xf32>
    %381 = arith.divf %379, %380 : vector<2x8x1xf32>
    %382 = vector.broadcast %374 : vector<2x8x1xf32> to vector<2x8x32xf32>
    %383 = arith.subf %368, %382 : vector<2x8x32xf32>
    %cst_117 = arith.constant 9.99999996E-13 : f32
    %384 = vector.broadcast %cst_117 : f32 to vector<2x8x1xf32>
    %385 = arith.addf %381, %384 : vector<2x8x1xf32>
    %386 = math.rsqrt %385 : vector<2x8x1xf32>
    %387 = vector.broadcast %386 : vector<2x8x1xf32> to vector<2x8x32xf32>
    %388 = arith.mulf %383, %387 : vector<2x8x32xf32>
    %389 = vector.shape_cast %369 : vector<1x32xf32> to vector<1x1x32xf32>
    %390 = vector.broadcast %389 : vector<1x1x32xf32> to vector<2x8x32xf32>
    %391 = arith.mulf %388, %390 : vector<2x8x32xf32>
    %392 = vector.shape_cast %370 : vector<1x32xf32> to vector<1x1x32xf32>
    %393 = vector.broadcast %392 : vector<1x1x32xf32> to vector<2x8x32xf32>
    %394 = arith.addf %391, %393 : vector<2x8x32xf32>
    %395 = arith.truncf %394 : vector<2x8x32xf32> to vector<2x8x32xbf16>
    "tpu.trace_start"() <{level = 10 : i32, message = "bsh,hi->bsi"}> : () -> ()
    %cst_118 = arith.constant dense<0.000000e+00> : vector<2x8x64xf32>
    %396 = tpu.matmul %395, %39, %cst_118 {dimension_numbers = #tpu.dot_dimension_numbers<[2], [0], [0, 1], [1], [0, 0, 0, 1, 1, 1], [], []>} : vector<2x8x32xbf16>, vector<32x64xbf16>, vector<2x8x64xf32> -> vector<2x8x64xf32>
    "tpu.trace_stop"() : () -> ()
    %397 = vector.shape_cast %40 : vector<1x64xf32> to vector<1x1x64xf32>
    %398 = vector.broadcast %397 : vector<1x1x64xf32> to vector<2x8x64xf32>
    %399 = arith.addf %396, %398 : vector<2x8x64xf32>
    %cst_119 = arith.constant 5.000000e-01 : f32
    %400 = vector.broadcast %cst_119 : f32 to vector<2x8x64xf32>
    %401 = arith.mulf %400, %399 : vector<2x8x64xf32>
    %cst_120 = arith.constant 4.471500e-02 : f32
    %402 = vector.broadcast %cst_120 : f32 to vector<2x8x64xf32>
    %403 = arith.mulf %402, %399 : vector<2x8x64xf32>
    %404 = arith.mulf %403, %399 : vector<2x8x64xf32>
    %405 = arith.mulf %404, %399 : vector<2x8x64xf32>
    %406 = arith.addf %399, %405 : vector<2x8x64xf32>
    %cst_121 = arith.constant 0.797884583 : f32
    %407 = vector.broadcast %cst_121 : f32 to vector<2x8x64xf32>
    %408 = arith.mulf %407, %406 : vector<2x8x64xf32>
    %409 = math.tanh %408 : vector<2x8x64xf32>
    %cst_122 = arith.constant 1.000000e+00 : f32
    %410 = vector.broadcast %cst_122 : f32 to vector<2x8x64xf32>
    %411 = arith.addf %410, %409 : vector<2x8x64xf32>
    %412 = arith.mulf %401, %411 : vector<2x8x64xf32>
    %413 = arith.truncf %412 : vector<2x8x64xf32> to vector<2x8x64xbf16>
    "tpu.trace_start"() <{level = 10 : i32, message = "bsi,ih->bsh"}> : () -> ()
    %cst_123 = arith.constant dense<0.000000e+00> : vector<2x8x32xf32>
    %414 = tpu.matmul %413, %41, %cst_123 {dimension_numbers = #tpu.dot_dimension_numbers<[2], [0], [0, 1], [1], [0, 0, 0, 1, 1, 1], [], []>} : vector<2x8x64xbf16>, vector<64x32xbf16>, vector<2x8x32xf32> -> vector<2x8x32xf32>
    "tpu.trace_stop"() : () -> ()
    %415 = vector.shape_cast %42 : vector<1x32xf32> to vector<1x1x32xf32>
    %416 = vector.broadcast %415 : vector<1x1x32xf32> to vector<2x8x32xf32>
    %417 = arith.addf %414, %416 : vector<2x8x32xf32>
    %418 = arith.addf %394, %417 : vector<2x8x32xf32>
    %c0_124 = arith.constant 0 : index
    %c0_125 = arith.constant 0 : index
    %419 = vector.load %arg15[%c0_124, %c0_125] : memref<2x32xf32, #tpu.memory_space<vmem>>, vector<1x32xf32>
    %c1_126 = arith.constant 1 : index
    %c0_127 = arith.constant 0 : index
    %420 = vector.load %arg15[%c1_126, %c0_127] : memref<2x32xf32, #tpu.memory_space<vmem>>, vector<1x32xf32>
    %cst_128 = arith.constant dense<0.000000e+00> : vector<2x8xf32>
    %421 = vector.multi_reduction <add>, %418, %cst_128 [2] : vector<2x8x32xf32> to vector<2x8xf32>
    %422 = vector.shape_cast %421 : vector<2x8xf32> to vector<2x8x1xf32>
    %cst_129 = arith.constant 3.200000e+01 : f32
    %423 = vector.broadcast %cst_129 : f32 to vector<2x8x1xf32>
    %424 = arith.divf %422, %423 : vector<2x8x1xf32>
    %425 = vector.broadcast %424 : vector<2x8x1xf32> to vector<2x8x32xf32>
    %426 = arith.subf %418, %425 : vector<2x8x32xf32>
    %427 = arith.mulf %426, %426 : vector<2x8x32xf32>
    %cst_130 = arith.constant dense<0.000000e+00> : vector<2x8xf32>
    %428 = vector.multi_reduction <add>, %427, %cst_130 [2] : vector<2x8x32xf32> to vector<2x8xf32>
    %429 = vector.shape_cast %428 : vector<2x8xf32> to vector<2x8x1xf32>
    %cst_131 = arith.constant 3.200000e+01 : f32
    %430 = vector.broadcast %cst_131 : f32 to vector<2x8x1xf32>
    %431 = arith.divf %429, %430 : vector<2x8x1xf32>
    %432 = vector.broadcast %424 : vector<2x8x1xf32> to vector<2x8x32xf32>
    %433 = arith.subf %418, %432 : vector<2x8x32xf32>
    %cst_132 = arith.constant 9.99999996E-13 : f32
    %434 = vector.broadcast %cst_132 : f32 to vector<2x8x1xf32>
    %435 = arith.addf %431, %434 : vector<2x8x1xf32>
    %436 = math.rsqrt %435 : vector<2x8x1xf32>
    %437 = vector.broadcast %436 : vector<2x8x1xf32> to vector<2x8x32xf32>
    %438 = arith.mulf %433, %437 : vector<2x8x32xf32>
    %439 = vector.shape_cast %419 : vector<1x32xf32> to vector<1x1x32xf32>
    %440 = vector.broadcast %439 : vector<1x1x32xf32> to vector<2x8x32xf32>
    %441 = arith.mulf %438, %440 : vector<2x8x32xf32>
    %442 = vector.shape_cast %420 : vector<1x32xf32> to vector<1x1x32xf32>
    %443 = vector.broadcast %442 : vector<1x1x32xf32> to vector<2x8x32xf32>
    %444 = arith.addf %441, %443 : vector<2x8x32xf32>
    %c0_133 = arith.constant 0 : index
    %c0_134 = arith.constant 0 : index
    %445 = vector.load %arg16[%c0_133, %c0_134] : memref<2x32xf32, #tpu.memory_space<vmem>>, vector<1x32xf32>
    %c1_135 = arith.constant 1 : index
    %c0_136 = arith.constant 0 : index
    %446 = vector.load %arg16[%c1_135, %c0_136] : memref<2x32xf32, #tpu.memory_space<vmem>>, vector<1x32xf32>
    %cst_137 = arith.constant dense<0.000000e+00> : vector<2x8xf32>
    %447 = vector.multi_reduction <add>, %444, %cst_137 [2] : vector<2x8x32xf32> to vector<2x8xf32>
    %448 = vector.shape_cast %447 : vector<2x8xf32> to vector<2x8x1xf32>
    %cst_138 = arith.constant 3.200000e+01 : f32
    %449 = vector.broadcast %cst_138 : f32 to vector<2x8x1xf32>
    %450 = arith.divf %448, %449 : vector<2x8x1xf32>
    %451 = vector.broadcast %450 : vector<2x8x1xf32> to vector<2x8x32xf32>
    %452 = arith.subf %444, %451 : vector<2x8x32xf32>
    %453 = arith.mulf %452, %452 : vector<2x8x32xf32>
    %cst_139 = arith.constant dense<0.000000e+00> : vector<2x8xf32>
    %454 = vector.multi_reduction <add>, %453, %cst_139 [2] : vector<2x8x32xf32> to vector<2x8xf32>
    %455 = vector.shape_cast %454 : vector<2x8xf32> to vector<2x8x1xf32>
    %cst_140 = arith.constant 3.200000e+01 : f32
    %456 = vector.broadcast %cst_140 : f32 to vector<2x8x1xf32>
    %457 = arith.divf %455, %456 : vector<2x8x1xf32>
    %458 = vector.broadcast %450 : vector<2x8x1xf32> to vector<2x8x32xf32>
    %459 = arith.subf %444, %458 : vector<2x8x32xf32>
    %cst_141 = arith.constant 9.99999974E-6 : f32
    %460 = vector.broadcast %cst_141 : f32 to vector<2x8x1xf32>
    %461 = arith.addf %457, %460 : vector<2x8x1xf32>
    %462 = math.rsqrt %461 : vector<2x8x1xf32>
    %463 = vector.broadcast %462 : vector<2x8x1xf32> to vector<2x8x32xf32>
    %464 = arith.mulf %459, %463 : vector<2x8x32xf32>
    %465 = vector.shape_cast %445 : vector<1x32xf32> to vector<1x1x32xf32>
    %466 = vector.broadcast %465 : vector<1x1x32xf32> to vector<2x8x32xf32>
    %467 = arith.mulf %464, %466 : vector<2x8x32xf32>
    %468 = vector.shape_cast %446 : vector<1x32xf32> to vector<1x1x32xf32>
    %469 = vector.broadcast %468 : vector<1x1x32xf32> to vector<2x8x32xf32>
    %470 = arith.addf %467, %469 : vector<2x8x32xf32>
    %c0_142 = arith.constant 0 : index
    %c0_143 = arith.constant 0 : index
    %471 = vector.load %arg17[%c0_142, %c0_143] : memref<32x128xbf16, #tpu.memory_space<vmem>>, vector<32x128xbf16>
    %472 = arith.truncf %470 : vector<2x8x32xf32> to vector<2x8x32xbf16>
    "tpu.trace_start"() <{level = 10 : i32, message = "bsh,hd->bsd"}> : () -> ()
    %cst_144 = arith.constant dense<0.000000e+00> : vector<2x8x128xf32>
    %473 = tpu.matmul %472, %471, %cst_144 {dimension_numbers = #tpu.dot_dimension_numbers<[2], [0], [0, 1], [1], [0, 0, 0, 1, 1, 1], [], []>} : vector<2x8x32xbf16>, vector<32x128xbf16>, vector<2x8x128xf32> -> vector<2x8x128xf32>
    "tpu.trace_stop"() : () -> ()
    %c0_145 = arith.constant 0 : index
    %c0_146 = arith.constant 0 : index
    %474 = vector.load %arg18[%c0_145, %c0_146] : memref<1x128xf32, #tpu.memory_space<vmem>>, vector<1x128xf32>
    %475 = vector.shape_cast %474 : vector<1x128xf32> to vector<1x1x128xf32>
    %476 = vector.broadcast %475 : vector<1x1x128xf32> to vector<2x8x128xf32>
    %477 = arith.addf %473, %476 : vector<2x8x128xf32>
    %c0_147 = arith.constant 0 : index
    %c0_148 = arith.constant 0 : index
    %c0_149 = arith.constant 0 : index
    %478 = vector.load %arg23[%c0_147, %c0_148, %c0_149] : memref<2x8x128xf32, #tpu.memory_space<vmem>>, vector<2x8x128xf32>
    tpu.vector_store %arg23[%c0_147, %c0_148, %c0_149], %477 {strides = array<i32>} : memref<2x8x128xf32, #tpu.memory_space<vmem>>, vector<2x8x128xf32>,
    %479 = vector.extract_strided_slice %444 {offsets = [0, 0, 0], sizes = [2, 1, 32], strides = [1, 1, 1]} : vector<2x8x32xf32> to vector<2x1x32xf32>
    %480 = vector.shape_cast %479 : vector<2x1x32xf32> to vector<2x32xf32>
    %c0_150 = arith.constant 0 : index
    %c0_151 = arith.constant 0 : index
    %481 = vector.load %arg19[%c0_150, %c0_151] : memref<2x32xf32, #tpu.memory_space<vmem>>, vector<1x32xf32>
    %c1_152 = arith.constant 1 : index
    %c0_153 = arith.constant 0 : index
    %482 = vector.load %arg19[%c1_152, %c0_153] : memref<2x32xf32, #tpu.memory_space<vmem>>, vector<1x32xf32>
    %cst_154 = arith.constant dense<0.000000e+00> : vector<2xf32>
    %483 = vector.multi_reduction <add>, %480, %cst_154 [1] : vector<2x32xf32> to vector<2xf32>
    %484 = vector.shape_cast %483 : vector<2xf32> to vector<2x1xf32>
    %cst_155 = arith.constant 3.200000e+01 : f32
    %485 = vector.broadcast %cst_155 : f32 to vector<2x1xf32>
    %486 = arith.divf %484, %485 : vector<2x1xf32>
    %487 = vector.broadcast %486 : vector<2x1xf32> to vector<2x32xf32>
    %488 = arith.subf %480, %487 : vector<2x32xf32>
    %489 = arith.mulf %488, %488 : vector<2x32xf32>
    %cst_156 = arith.constant dense<0.000000e+00> : vector<2xf32>
    %490 = vector.multi_reduction <add>, %489, %cst_156 [1] : vector<2x32xf32> to vector<2xf32>
    %491 = vector.shape_cast %490 : vector<2xf32> to vector<2x1xf32>
    %cst_157 = arith.constant 3.200000e+01 : f32
    %492 = vector.broadcast %cst_157 : f32 to vector<2x1xf32>
    %493 = arith.divf %491, %492 : vector<2x1xf32>
    %494 = vector.broadcast %486 : vector<2x1xf32> to vector<2x32xf32>
    %495 = arith.subf %480, %494 : vector<2x32xf32>
    %cst_158 = arith.constant 9.99999974E-6 : f32
    %496 = vector.broadcast %cst_158 : f32 to vector<2x1xf32>
    %497 = arith.addf %493, %496 : vector<2x1xf32>
    %498 = math.rsqrt %497 : vector<2x1xf32>
    %499 = vector.broadcast %498 : vector<2x1xf32> to vector<2x32xf32>
    %500 = arith.mulf %495, %499 : vector<2x32xf32>
    %501 = vector.broadcast %481 : vector<1x32xf32> to vector<2x32xf32>
    %502 = arith.mulf %500, %501 : vector<2x32xf32>
    %503 = vector.broadcast %482 : vector<1x32xf32> to vector<2x32xf32>
    %504 = arith.addf %502, %503 : vector<2x32xf32>
    %c0_159 = arith.constant 0 : index
    %c0_160 = arith.constant 0 : index
    %505 = vector.load %arg20[%c0_159, %c0_160] : memref<32x128xbf16, #tpu.memory_space<vmem>>, vector<32x128xbf16>
    %506 = arith.truncf %504 : vector<2x32xf32> to vector<2x32xbf16>
    "tpu.trace_start"() <{level = 10 : i32, message = "bh,hd->bd"}> : () -> ()
    %cst_161 = arith.constant dense<0.000000e+00> : vector<2x128xf32>
    %507 = tpu.matmul %506, %505, %cst_161 {dimension_numbers = #tpu.dot_dimension_numbers<[1], [0], [0], [1], [0, 0, 1, 1], [], []>} : vector<2x32xbf16>, vector<32x128xbf16>, vector<2x128xf32> -> vector<2x128xf32>
    "tpu.trace_stop"() : () -> ()
    %c0_162 = arith.constant 0 : index
    %c0_163 = arith.constant 0 : index
    %508 = vector.load %arg21[%c0_162, %c0_163] : memref<1x128xf32, #tpu.memory_space<vmem>>, vector<1x128xf32>
    %509 = vector.broadcast %508 : vector<1x128xf32> to vector<2x128xf32>
    %510 = arith.addf %507, %509 : vector<2x128xf32>
    %c0_164 = arith.constant 0 : index
    %c0_165 = arith.constant 0 : index
    %511 = vector.load %arg22[%c0_164, %c0_165] : memref<2x128xf32, #tpu.memory_space<vmem>>, vector<2x128xf32>
    tpu.vector_store %arg22[%c0_164, %c0_165], %510 {strides = array<i32>} : memref<2x128xf32, #tpu.memory_space<vmem>>, vector<2x128xf32>,
    return
  }
  func.func @transform_0(%arg0: i32) -> (i32, i32, i32) {
    %c0_i32 = arith.constant 0 : i32
    %c0_i32_0 = arith.constant 0 : i32
    %c0_i32_1 = arith.constant 0 : i32
    %c0_i32_2 = arith.constant 0 : i32
    return %c0_i32, %c0_i32_0, %c0_i32_1 : i32, i32, i32
  }
  func.func @transform_1(%arg0: i32) -> (i32, i32, i32) {
    %c0_i32 = arith.constant 0 : i32
    %c0_i32_0 = arith.constant 0 : i32
    %c0_i32_1 = arith.constant 0 : i32
    %c0_i32_2 = arith.constant 0 : i32
    return %c0_i32, %c0_i32_0, %c0_i32_1 : i32, i32, i32
  }
  func.func @transform_2(%arg0: i32) -> (i32, i32) {
    %c0_i32 = arith.constant 0 : i32
    %c0_i32_0 = arith.constant 0 : i32
    %c0_i32_1 = arith.constant 0 : i32
    return %c0_i32, %c0_i32_0 : i32, i32
  }
  func.func @transform_3(%arg0: i32) -> (i32, i32) {
    %c0_i32 = arith.constant 0 : i32
    %c0_i32_0 = arith.constant 0 : i32
    %c0_i32_1 = arith.constant 0 : i32
    return %c0_i32, %c0_i32_0 : i32, i32
  }
  func.func @transform_4(%arg0: i32) -> (i32, i32) {
    %c0_i32 = arith.constant 0 : i32
    %c0_i32_0 = arith.constant 0 : i32
    %c0_i32_1 = arith.constant 0 : i32
    return %c0_i32, %c0_i32_0 : i32, i32
  }
  func.func @transform_5(%arg0: i32) -> (i32, i32) {
    %c0_i32 = arith.constant 0 : i32
    %c0_i32_0 = arith.constant 0 : i32
    %c0_i32_1 = arith.constant 0 : i32
    return %c0_i32, %c0_i32_0 : i32, i32
  }
  func.func @transform_6(%arg0: i32) -> (i32, i32) {
    %c0_i32 = arith.constant 0 : i32
    %c0_i32_0 = arith.constant 0 : i32
    %c0_i32_1 = arith.constant 0 : i32
    return %c0_i32, %c0_i32_0 : i32, i32
  }
  func.func @transform_7(%arg0: i32) -> (i32, i32) {
    %c0_i32 = arith.constant 0 : i32
    %c0_i32_0 = arith.constant 0 : i32
    %c0_i32_1 = arith.constant 0 : i32
    return %c0_i32, %c0_i32_0 : i32, i32
  }
  func.func @transform_8(%arg0: i32) -> (i32, i32) {
    %c0_i32 = arith.constant 0 : i32
    %c0_i32_0 = arith.constant 0 : i32
    %c0_i32_1 = arith.constant 0 : i32
    return %c0_i32, %c0_i32_0 : i32, i32
  }
  func.func @transform_9(%arg0: i32) -> (i32, i32) {
    %c0_i32 = arith.constant 0 : i32
    %c0_i32_0 = arith.constant 0 : i32
    %c0_i32_1 = arith.constant 0 : i32
    return %c0_i32, %c0_i32_0 : i32, i32
  }
  func.func @transform_10(%arg0: i32) -> (i32, i32) {
    %c0_i32 = arith.constant 0 : i32
    %c0_i32_0 = arith.constant 0 : i32
    %c0_i32_1 = arith.constant 0 : i32
    return %c0_i32, %c0_i32_0 : i32, i32
  }
  func.func @transform_11(%arg0: i32) -> (i32, i32) {
    %c0_i32 = arith.constant 0 : i32
    %c0_i32_0 = arith.constant 0 : i32
    %c0_i32_1 = arith.constant 0 : i32
    return %c0_i32, %c0_i32_0 : i32, i32
  }
  func.func @transform_12(%arg0: i32) -> (i32, i32) {
    %c0_i32 = arith.constant 0 : i32
    %c0_i32_0 = arith.constant 0 : i32
    %c0_i32_1 = arith.constant 0 : i32
    return %c0_i32, %c0_i32_0 : i32, i32
  }
  func.func @transform_13(%arg0: i32) -> (i32, i32) {
    %c0_i32 = arith.constant 0 : i32
    %c0_i32_0 = arith.constant 0 : i32
    %c0_i32_1 = arith.constant 0 : i32
    return %c0_i32, %c0_i32_0 : i32, i32
  }
  func.func @transform_14(%arg0: i32) -> (i32, i32) {
    %c0_i32 = arith.constant 0 : i32
    %c0_i32_0 = arith.constant 0 : i32
    %c0_i32_1 = arith.constant 0 : i32
    return %c0_i32, %c0_i32_0 : i32, i32
  }
  func.func @transform_15(%arg0: i32) -> (i32, i32) {
    %c0_i32 = arith.constant 0 : i32
    %c0_i32_0 = arith.constant 0 : i32
    %c0_i32_1 = arith.constant 0 : i32
    return %c0_i32, %c0_i32_0 : i32, i32
  }
  func.func @transform_16(%arg0: i32) -> (i32, i32) {
    %c0_i32 = arith.constant 0 : i32
    %c0_i32_0 = arith.constant 0 : i32
    %c0_i32_1 = arith.constant 0 : i32
    return %c0_i32, %c0_i32_0 : i32, i32
  }
  func.func @transform_17(%arg0: i32) -> (i32, i32) {
    %c0_i32 = arith.constant 0 : i32
    %c0_i32_0 = arith.constant 0 : i32
    %c0_i32_1 = arith.constant 0 : i32
    return %c0_i32, %c0_i32_0 : i32, i32
  }
  func.func @transform_18(%arg0: i32) -> (i32, i32) {
    %c0_i32 = arith.constant 0 : i32
    %c0_i32_0 = arith.constant 0 : i32
    %c0_i32_1 = arith.constant 0 : i32
    return %c0_i32, %c0_i32_0 : i32, i32
  }
  func.func @transform_19(%arg0: i32) -> (i32, i32) {
    %c0_i32 = arith.constant 0 : i32
    %c0_i32_0 = arith.constant 0 : i32
    %c0_i32_1 = arith.constant 0 : i32
    return %c0_i32, %c0_i32_0 : i32, i32
  }
  func.func @transform_20(%arg0: i32) -> (i32, i32) {
    %c0_i32 = arith.constant 0 : i32
    %c0_i32_0 = arith.constant 0 : i32
    %c0_i32_1 = arith.constant 0 : i32
    return %c0_i32, %c0_i32_0 : i32, i32
  }
  func.func @transform_21(%arg0: i32) -> (i32, i32) {
    %c0_i32 = arith.constant 0 : i32
    %c0_i32_0 = arith.constant 0 : i32
    %c0_i32_1 = arith.constant 0 : i32
    return %c0_i32, %c0_i32_0 : i32, i32
  }
  func.func @transform_22(%arg0: i32) -> (i32, i32, i32) {
    %c0_i32 = arith.constant 0 : i32
    %c0_i32_0 = arith.constant 0 : i32
    %c0_i32_1 = arith.constant 0 : i32
    %c0_i32_2 = arith.constant 0 : i32
    return %c0_i32, %c0_i32_0, %c0_i32_1 : i32, i32, i32
  }
}

</mosaic_0001>

<llo_original>
// kernel: text_encoder_forward.1
$region0: #{text_encoder_forward.1}
  #allocation0 [shape = 'u32[]', space=smem, size = 0x4, offset = 0x4, fixed_abs, tag = 'smem constant byte address 0x4 - core index']
  #allocation1 [shape = 'u32[72,128]{1,0:T(1,128)}', space=vmem, size = 0x9000, scoped, tag = 'internal scratch']
  %s0 = inlined_call_operand.vmem [shape: f32[2,8,16], index: 0, kind: input, shape index: {}]
  %s1 = inlined_call_operand.vmem [shape: f32[2,1,8], index: 1, kind: input, shape index: {}]
  %s2 = inlined_call_operand.vmem [shape: f32[2,16], index: 2, kind: input, shape index: {}]
  %s3 = inlined_call_operand.vmem [shape: bf16[16,32], index: 3, kind: input, shape index: {}]
  %s4 = inlined_call_operand.vmem [shape: f32[1,32], index: 4, kind: input, shape index: {}]
  %s5 = inlined_call_operand.vmem [shape: bf16[32,96], index: 5, kind: input, shape index: {}]
  %s6 = inlined_call_operand.vmem [shape: f32[1,96], index: 6, kind: input, shape index: {}]
  %s7 = inlined_call_operand.vmem [shape: f32[32,32], index: 7, kind: input, shape index: {}]
  %s8 = inlined_call_operand.vmem [shape: f32[1,32], index: 8, kind: input, shape index: {}]
  %s9 = inlined_call_operand.vmem [shape: f32[2,32], index: 9, kind: input, shape index: {}]
  %s10 = inlined_call_operand.vmem [shape: bf16[32,64], index: 10, kind: input, shape index: {}]
  %s11 = inlined_call_operand.vmem [shape: f32[1,64], index: 11, kind: input, shape index: {}]
  %s12 = inlined_call_operand.vmem [shape: bf16[64,32], index: 12, kind: input, shape index: {}]
  %s13 = inlined_call_operand.vmem [shape: f32[1,32], index: 13, kind: input, shape index: {}]
  %s14 = inlined_call_operand.vmem [shape: f32[2,32], index: 14, kind: input, shape index: {}]
  %s15 = inlined_call_operand.vmem [shape: f32[2,32], index: 15, kind: input, shape index: {}]
  %s16 = inlined_call_operand.vmem [shape: bf16[32,128], index: 16, kind: input, shape index: {}]
  %s17 = inlined_call_operand.vmem [shape: f32[1,128], index: 17, kind: input, shape index: {}]
  %s18 = inlined_call_operand.vmem [shape: f32[2,32], index: 18, kind: input, shape index: {}]
  %s19 = inlined_call_operand.vmem [shape: bf16[32,128], index: 19, kind: input, shape index: {}]
  %s20 = inlined_call_operand.vmem [shape: f32[1,128], index: 20, kind: input, shape index: {}]
  %s21 = inlined_call_operand.hbm [shape: f32[2,128], index: 21, kind: output, shape index: {0}]
  %s22 = inlined_call_operand.hbm [shape: f32[2,8,128], index: 22, kind: output, shape index: {1}]
  %23 = xla_tuple %s21, %s22
  %s24 = sld [smem:[#allocation0]]
  $region102: #{text_encoder_forward.1} parent=0
    _
  %s26 = ssub.s32 1, %s24
  %s27 = scalar_select 0, %s26, %s24
  $region1: #{text_encoder_forward.1} parent=0
    #allocation2 [shape = 'u8[1024]{0}', space=vmem, size = 0x400, scoped, tag = 'output window, operand 0, single buffered']
    #allocation3 [shape = 's32[1]{0}', space=sflag, size = 0x4, scoped, tag = 'scoped memory for text_encoder_forward.1']
    #allocation4 [shape = 'u8[8192]{0}', space=vmem, size = 0x2000, scoped, tag = 'output window, operand 1, single buffered']
    #allocation5 [shape = 's32[1]{0}', space=sflag, size = 0x4, scoped, tag = 'scoped memory for text_encoder_forward.1']
    %28 = vsyncpa [#allocation3], 0
    %29 = vsyncpa [#allocation5], 0
    // Predicated region
    $region2: #{text_encoder_forward.1} parent=1 // pred_check
      _
    $region3: #{text_encoder_forward.1} parent=1 // pred_check_branch
      %31 = sbr.rel (0) target = $region5
    $region4: #{text_encoder_forward.1} parent=1 // pred_region
      _
    $region5: #{text_encoder_forward.1} parent=1 // pred_fallthru
      _
    // Predicated region
    $region6: #{text_encoder_forward.1} parent=1 // pred_check
      _
    $region7: #{text_encoder_forward.1} parent=1 // pred_check_branch
      %33 = sbr.rel (0) target = $region9
    $region8: #{text_encoder_forward.1} parent=1 // pred_region
      _
    $region9: #{text_encoder_forward.1} parent=1 // pred_fallthru
      _
    // Predicated region
    $region10: #{text_encoder_forward.1} parent=1 // pred_check
      _
    $region11: #{text_encoder_forward.1} parent=1 // pred_check_branch
      %35 = sbr.rel (0) target = $region13
    $region12: #{text_encoder_forward.1} parent=1 // pred_region
      _
    $region13: #{text_encoder_forward.1} parent=1 // pred_fallthru
      _
    // Predicated region
    $region14: #{text_encoder_forward.1} parent=1 // pred_check
      _
    $region15: #{text_encoder_forward.1} parent=1 // pred_check_branch
      %37 = sbr.rel (0) target = $region17
    $region16: #{text_encoder_forward.1} parent=1 // pred_region
      _
    $region17: #{text_encoder_forward.1} parent=1 // pred_fallthru
      _
    // Predicated region
    $region18: #{text_encoder_forward.1} parent=1 // pred_check
      _
    $region19: #{text_encoder_forward.1} parent=1 // pred_check_branch
      %39 = sbr.rel (0) target = $region21
    $region20: #{text_encoder_forward.1} parent=1 // pred_region
      _
    $region21: #{text_encoder_forward.1} parent=1 // pred_fallthru
      _
    // Predicated region
    $region22: #{text_encoder_forward.1} parent=1 // pred_check
      _
    $region23: #{text_encoder_forward.1} parent=1 // pred_check_branch
      %41 = sbr.rel (0) target = $region25
    $region24: #{text_encoder_forward.1} parent=1 // pred_region
      _
    $region25: #{text_encoder_forward.1} parent=1 // pred_fallthru
      _
    // Predicated region
    $region26: #{text_encoder_forward.1} parent=1 // pred_check
      _
    $region27: #{text_encoder_forward.1} parent=1 // pred_check_branch
      %43 = sbr.rel (0) target = $region29
    $region28: #{text_encoder_forward.1} parent=1 // pred_region
      _
    $region29: #{text_encoder_forward.1} parent=1 // pred_fallthru
      _
    // Predicated region
    $region30: #{text_encoder_forward.1} parent=1 // pred_check
      _
    $region31: #{text_encoder_forward.1} parent=1 // pred_check_branch
      %45 = sbr.rel (0) target = $region33
    $region32: #{text_encoder_forward.1} parent=1 // pred_region
      _
    $region33: #{text_encoder_forward.1} parent=1 // pred_fallthru
      _
    // Predicated region
    $region34: #{text_encoder_forward.1} parent=1 // pred_check
      _
    $region35: #{text_encoder_forward.1} parent=1 // pred_check_branch
      %47 = sbr.rel (0) target = $region37
    $region36: #{text_encoder_forward.1} parent=1 // pred_region
      _
    $region37: #{text_encoder_forward.1} parent=1 // pred_fallthru
      _
    // Predicated region
    $region38: #{text_encoder_forward.1} parent=1 // pred_check
      _
    $region39: #{text_encoder_forward.1} parent=1 // pred_check_branch
      %49 = sbr.rel (0) target = $region41
    $region40: #{text_encoder_forward.1} parent=1 // pred_region
      _
    $region41: #{text_encoder_forward.1} parent=1 // pred_fallthru
      _
    // Predicated region
    $region42: #{text_encoder_forward.1} parent=1 // pred_check
      _
    $region43: #{text_encoder_forward.1} parent=1 // pred_check_branch
      %51 = sbr.rel (0) target = $region45
    $region44: #{text_encoder_forward.1} parent=1 // pred_region
      _
    $region45: #{text_encoder_forward.1} parent=1 // pred_fallthru
      _
    // Predicated region
    $region46: #{text_encoder_forward.1} parent=1 // pred_check
      _
    $region47: #{text_encoder_forward.1} parent=1 // pred_check_branch
      %53 = sbr.rel (0) target = $region49
    $region48: #{text_encoder_forward.1} parent=1 // pred_region
      _
    $region49: #{text_encoder_forward.1} parent=1 // pred_fallthru
      _
    // Predicated region
    $region50: #{text_encoder_forward.1} parent=1 // pred_check
      _
    $region51: #{text_encoder_forward.1} parent=1 // pred_check_branch
      %55 = sbr.rel (0) target = $region53
    $region52: #{text_encoder_forward.1} parent=1 // pred_region
      _
    $region53: #{text_encoder_forward.1} parent=1 // pred_fallthru
      _
    // Predicated region
    $region54: #{text_encoder_forward.1} parent=1 // pred_check
      _
    $region55: #{text_encoder_forward.1} parent=1 // pred_check_branch
      %57 = sbr.rel (0) target = $region57
    $region56: #{text_encoder_forward.1} parent=1 // pred_region
      _
    $region57: #{text_encoder_forward.1} parent=1 // pred_fallthru
      _
    // Predicated region
    $region58: #{text_encoder_forward.1} parent=1 // pred_check
      _
    $region59: #{text_encoder_forward.1} parent=1 // pred_check_branch
      %59 = sbr.rel (0) target = $region61
    $region60: #{text_encoder_forward.1} parent=1 // pred_region
      _
    $region61: #{text_encoder_forward.1} parent=1 // pred_fallthru
      _
    // Predicated region
    $region62: #{text_encoder_forward.1} parent=1 // pred_check
      _
    $region63: #{text_encoder_forward.1} parent=1 // pred_check_branch
      %61 = sbr.rel (0) target = $region65
    $region64: #{text_encoder_forward.1} parent=1 // pred_region
      _
    $region65: #{text_encoder_forward.1} parent=1 // pred_fallthru
      _
    // Predicated region
    $region66: #{text_encoder_forward.1} parent=1 // pred_check
      _
    $region67: #{text_encoder_forward.1} parent=1 // pred_check_branch
      %63 = sbr.rel (0) target = $region69
    $region68: #{text_encoder_forward.1} parent=1 // pred_region
      _
    $region69: #{text_encoder_forward.1} parent=1 // pred_fallthru
      _
    // Predicated region
    $region70: #{text_encoder_forward.1} parent=1 // pred_check
      _
    $region71: #{text_encoder_forward.1} parent=1 // pred_check_branch
      %65 = sbr.rel (0) target = $region73
    $region72: #{text_encoder_forward.1} parent=1 // pred_region
      _
    $region73: #{text_encoder_forward.1} parent=1 // pred_fallthru
      _
    // Predicated region
    $region74: #{text_encoder_forward.1} parent=1 // pred_check
      _
    $region75: #{text_encoder_forward.1} parent=1 // pred_check_branch
      %67 = sbr.rel (0) target = $region77
    $region76: #{text_encoder_forward.1} parent=1 // pred_region
      _
    $region77: #{text_encoder_forward.1} parent=1 // pred_fallthru
      _
    // Predicated region
    $region78: #{text_encoder_forward.1} parent=1 // pred_check
      _
    $region79: #{text_encoder_forward.1} parent=1 // pred_check_branch
      %69 = sbr.rel (0) target = $region81
    $region80: #{text_encoder_forward.1} parent=1 // pred_region
      _
    $region81: #{text_encoder_forward.1} parent=1 // pred_fallthru
      _
    // Predicated region
    $region82: #{text_encoder_forward.1} parent=1 // pred_check
      _
    $region83: #{text_encoder_forward.1} parent=1 // pred_check_branch
      %71 = sbr.rel (0) target = $region85
    $region84: #{text_encoder_forward.1} parent=1 // pred_region
      _
    $region85: #{text_encoder_forward.1} parent=1 // pred_fallthru
      _
    %v73 = vld [vmem:[%s0] sm:$0xff]
    %v74 = vld [vmem:[%s0 + $0x8] sm:$0xff]
    %v75 = vld [vmem:[%s2] sm:$0x1]
    %v76 = vld [vmem:[%s2 + $0x1] sm:$0x1]
    %vm77 = vcmask 130048
    %v78 = vsel %vm77, %v73, 0.0
    %79 = vadd.xlane.f32.xlu0 %v78
    %v80 = vpop.xlane.xlu0 %79
    %v81 = vsel %vm77, %v74, 0.0
    %82 = vadd.xlane.f32.xlu0 %v81
    %v83 = vpop.xlane.xlu0 %82
    %v84 = vrcp.pop 16.0
    %v85 = vmul.f32 16.0, %v84
    %v86 = vsub.f32 1.0, %v85
    %v87 = vmul.f32 %v84, %v86
    %v88 = vadd.f32 %v84, %v87
    %vm89 = vweird.f32 %v84
    %v90 = vsel %vm89, %v84, %v88
    %v91 = vmul.f32 %v80, %v90
    %v92 = vmul.f32 %v83, %v90
    %v93 = vsub.f32 %v73, %v91
    %v94 = vsub.f32 %v74, %v92
    %v95 = vmul.f32 %v93, %v93
    %v96 = vmul.f32 %v94, %v94
    %v97 = vsel %vm77, %v95, 0.0
    %98 = vadd.xlane.f32.xlu0 %v97
    %v99 = vpop.xlane.xlu0 %98
    %v100 = vsel %vm77, %v96, 0.0
    %101 = vadd.xlane.f32.xlu0 %v100
    %v102 = vpop.xlane.xlu0 %101
    %v103 = vmul.f32 %v99, %v90
    %v104 = vmul.f32 %v102, %v90
    %v105 = vadd.f32 %v103, 1e-12
    %v106 = vadd.f32 %v104, 1e-12
    %v107 = vrsqrt.pop %v105
    %v108 = vmul.f32 %v107, %v105
    %v109 = vmul.f32 %v108, %v107
    %v110 = vmul.f32 0.5, %v109
    %v111 = vsub.f32 1.5, %v110
    %v112 = vmul.f32 %v107, %v111
    %vm113 = vweird.f32 %v105
    %vm114 = vweird.f32 %v107
    %vm115 = vmor %vm113, %vm114
    %v116 = vsel %vm115, %v107, %v112
    %v117 = vrsqrt.pop %v106
    %v118 = vmul.f32 %v117, %v106
    %v119 = vmul.f32 %v118, %v117
    %v120 = vmul.f32 0.5, %v119
    %v121 = vsub.f32 1.5, %v120
    %v122 = vmul.f32 %v117, %v121
    %vm123 = vweird.f32 %v106
    %vm124 = vweird.f32 %v117
    %vm125 = vmor %vm123, %vm124
    %v126 = vsel %vm125, %v117, %v122
    %v127 = vmul.f32 %v93, %v116
    %v128 = vmul.f32 %v94, %v126
    %v129 = vperm.slane %v75, 0
    %v130 = vmul.f32 %v127, %v129
    %v131 = vmul.f32 %v128, %v129
    %v132 = vperm.slane %v76, 0
    %v133 = vadd.f32 %v130, %v132
    %v134 = vadd.f32 %v131, %v132
    %v135 = vld [vmem:[%s3] sm:$0xf]
    %v136 = vld [vmem:[%s3 + $0x4] sm:$0xf]
    %v137 = vpack.c.bf16 %v133, %v133
    %v138 = vpack.c.bf16 %v134, %v134
    %v139 = vld [vmem:[%s4] sm:$0x1]
    %v141 = vperm.slane %v139, 0
    %v145 = vunpack.c.l.b16 %v137
    %v146 = vunpack.c.l.b16 %v138
    %v147 = vpack.c.b16 %v146, %v145
    %v150 = vunpack.c.l.b16 %v135
    %v151 = vunpack.c.l.b16 %v136
    %v152 = vpack.c.b16 %v151, %v150
    %v155 = vsel %vm77, %v147, 0
    %157 = vmatpush.bf16.msra.mxu0 0
    %158 = vmatpush.bf16.msra.mxu0 0
    %159 = vmatpush.bf16.msra.mxu0 0
    %160 = vmatpush.bf16.msra.mxu0 0
    %161 = vmatpush.bf16.msra.mxu0 0
    %162 = vmatpush.bf16.msra.mxu0 0
    %163 = vmatpush.bf16.msra.mxu0 0
    %164 = vmatpush.bf16.msra.mxu0 %v152
    %165 = vmatmul.bf16.gmra.mxu0 %v155
    %v166 = vpop.f32.mrf.mxu0
    %v167 = vadd.f32 %v141, %v166
    %v168 = vpop.f32.mrf.mxu0
    %v169 = vadd.f32 %v141, %v168
    %170 = vdwg.mxu0
    %v171 = vld [vmem:[%s1] sm:$0x1]
    %v172 = vld [vmem:[%s1 + $0x1] sm:$0x1]
    %v173 = vld [vmem:[%s5] sm:$0xf]
    %v174 = vld [vmem:[%s5 + $0x4] sm:$0xf]
    %v175 = vld [vmem:[%s5 + $0x8] sm:$0xf]
    %v176 = vld [vmem:[%s5 + $0xc] sm:$0xf]
    %v177 = vld [vmem:[%s6] sm:$0x1]
    %v178 = vld [vmem:[%s7] sm:$0xff]
    %v179 = vld [vmem:[%s7 + $0x8] sm:$0xff]
    %v180 = vld [vmem:[%s7 + $0x10] sm:$0xff]
    %v181 = vld [vmem:[%s7 + $0x18] sm:$0xff]
    %v182 = vld [vmem:[%s8] sm:$0x1]
    %v183 = vld [vmem:[%s10] sm:$0xf]
    %v184 = vld [vmem:[%s10 + $0x4] sm:$0xf]
    %v185 = vld [vmem:[%s10 + $0x8] sm:$0xf]
    %v186 = vld [vmem:[%s10 + $0xc] sm:$0xf]
    %v187 = vld [vmem:[%s11] sm:$0x1]
    %v188 = vld [vmem:[%s12] sm:$0xf]
    %v189 = vld [vmem:[%s12 + $0x4] sm:$0xf]
    %v190 = vld [vmem:[%s12 + $0x8] sm:$0xf]
    %v191 = vld [vmem:[%s12 + $0xc] sm:$0xf]
    %v192 = vld [vmem:[%s12 + $0x10] sm:$0xf]
    %v193 = vld [vmem:[%s12 + $0x14] sm:$0xf]
    %v194 = vld [vmem:[%s12 + $0x18] sm:$0xf]
    %v195 = vld [vmem:[%s12 + $0x1c] sm:$0xf]
    %v196 = vld [vmem:[%s13] sm:$0x1]
    %v197 = vpack.c.bf16 %v167, %v167
    %v198 = vpack.c.bf16 %v169, %v169
    %v200 = vperm.slane %v177, 0
    %v204 = vunpack.c.l.b16 %v197
    %v205 = vunpack.c.l.b16 %v198
    %v206 = vpack.c.b16 %v205, %v204
    %v211 = vunpack.c.l.b16 %v173
    %v212 = vunpack.c.l.b16 %v174
    %v213 = vunpack.c.l.b16 %v175
    %v214 = vunpack.c.l.b16 %v176
    %v215 = vpack.c.b16 %v212, %v211
    %v216 = vpack.c.b16 %v214, %v213
    %vm219 = vcmask 261120
    %v221 = vsel %vm219, %v206, 0
    %223 = vmatpush.bf16.msra.mxu0 0
    %224 = vmatpush.bf16.msra.mxu0 0
    %225 = vmatpush.bf16.msra.mxu0 0
    %226 = vmatpush.bf16.msra.mxu0 0
    %227 = vmatpush.bf16.msra.mxu0 0
    %228 = vmatpush.bf16.msra.mxu0 0
    %229 = vmatpush.bf16.msra.mxu0 %v216
    %230 = vmatpush.bf16.msra.mxu0 %v215
    %231 = vmatmul.bf16.gmra.mxu0 %v221
    %v232 = vpop.f32.mrf.mxu0
    %v233 = vadd.f32 %v200, %v232
    %v234 = vpop.f32.mrf.mxu0
    %v235 = vadd.f32 %v200, %v234
    %236 = vdwg.mxu0
    %v237 = vpack.c.bf16 %v233, %v233
    %v238 = vpack.c.bf16 %v235, %v235
    %v240 = vunpack.c.l.b16 %v237
    %v241 = vpack.c.b16 %v240, %v240
    %242 = vrot.lane.b32.xlu0 %v241, 96
    %v243 = vpop.permute.xlu0 %242
    %vm244 = vcmask 64512
    %v246 = vsel %vm244, %v237, 0
    %v249 = vsel %vm244, %v243, 0
    %251 = vmatpush.bf16.xpose.msra.mxu0 0
    %252 = vmatpush.bf16.xpose.msra.mxu0 0
    %253 = vmatpush.bf16.xpose.msra.mxu0 0
    %254 = vmatpush.bf16.xpose.msra.mxu0 0
    %255 = vmatpush.bf16.xpose.msra.mxu0 0
    %256 = vmatpush.bf16.xpose.msra.mxu0 0
    %257 = vmatpush.bf16.xpose.msra.mxu0 0
    %258 = vmatpush.bf16.xpose.msra.mxu0 %v249
    %259 = vmatmul.bf16.gmra.mxu0 %v246
    %v260 = vpop.f32.mrf.mxu0
    %v261 = vadd.f32 0.0, %v260
    %v262 = vpop.f32.mrf.mxu0
    %263 = vdwg.mxu0
    %v265 = vunpack.c.l.b16 %v238
    %v266 = vpack.c.b16 %v265, %v265
    %267 = vrot.lane.b32.xlu0 %v266, 96
    %v268 = vpop.permute.xlu0 %267
    %v270 = vsel %vm244, %v238, 0
    %v273 = vsel %vm244, %v268, 0
    %275 = vmatpush.bf16.xpose.msra.mxu0 0
    %276 = vmatpush.bf16.xpose.msra.mxu0 0
    %277 = vmatpush.bf16.xpose.msra.mxu0 0
    %278 = vmatpush.bf16.xpose.msra.mxu0 0
    %279 = vmatpush.bf16.xpose.msra.mxu0 0
    %280 = vmatpush.bf16.xpose.msra.mxu0 0
    %281 = vmatpush.bf16.xpose.msra.mxu0 0
    %282 = vmatpush.bf16.xpose.msra.mxu0 %v273
    %283 = vmatmul.bf16.gmra.mxu0 %v270
    %v284 = vpop.f32.mrf.mxu0
    %v285 = vadd.f32 0.0, %v284
    %v286 = vpop.f32.mrf.mxu0
    %287 = vdwg.mxu0
    %v288 = vmul.f32 %v261, 0.35355338
    %v289 = vmul.f32 %v285, 0.35355338
    %v292 = vperm.slane %v171, 0
    %v293 = vperm.slane %v172, 0
    %v296 = vadd.f32 %v288, %v292
    %v297 = vadd.f32 %v289, %v293
    %v298 = vsel %vm244, %v296, -inf
    %299 = vmax.xlane.f32.xlu0 %v298
    %v300 = vpop.xlane.xlu0 %299
    %v301 = vsel %vm244, %v297, -inf
    %302 = vmax.xlane.f32.xlu0 %v301
    %v303 = vpop.xlane.xlu0 %302
    %v304 = vsub.f32 %v296, %v300
    %v305 = vsub.f32 %v297, %v303
    %v306 = vmul.f32 %v304, 1.442695
    %v307 = vpow.pop %v306
    %v308 = vmul.f32 %v305, 1.442695
    %v309 = vpow.pop %v308
    %v310 = vsel %vm244, %v307, 0.0
    %311 = vadd.xlane.f32.xlu0 %v310
    %v312 = vpop.xlane.xlu0 %311
    %v313 = vsel %vm244, %v309, 0.0
    %314 = vadd.xlane.f32.xlu0 %v313
    %v315 = vpop.xlane.xlu0 %314
    %v316 = vrcp.pop %v312
    %v317 = vrcp.pop %v315
    %v318 = vmul.f32 %v307, %v316
    %v319 = vmul.f32 %v309, %v317
    %v320 = vpack.c.bf16 %v318, %v318
    %v321 = vpack.c.bf16 %v319, %v319
    %322 = vrot.lane.b32.xlu0 %v241, 64
    %v323 = vpop.permute.xlu0 %322
    %v325 = vsel %vm244, %v320, 0
    %vm327 = vcmask 1043456
    %v329 = vsel %vm327, %v323, 0
    %331 = vmatpush.bf16.msra.mxu0 0
    %332 = vmatpush.bf16.msra.mxu0 0
    %333 = vmatpush.bf16.msra.mxu0 0
    %334 = vmatpush.bf16.msra.mxu0 0
    %335 = vmatpush.bf16.msra.mxu0 0
    %336 = vmatpush.bf16.msra.mxu0 0
    %337 = vmatpush.bf16.msra.mxu0 0
    %338 = vmatpush.bf16.msra.mxu0 %v329
    %339 = vmatmul.bf16.gmra.mxu0 %v325
    %v340 = vpop.f32.mrf.mxu0
    %v341 = vadd.f32 0.0, %v340
    %v342 = vpop.f32.mrf.mxu0
    %343 = vdwg.mxu0
    %344 = vrot.lane.b32.xlu0 %v266, 64
    %v345 = vpop.permute.xlu0 %344
    %v347 = vsel %vm244, %v321, 0
    %v350 = vsel %vm327, %v345, 0
    %352 = vmatpush.bf16.msra.mxu0 0
    %353 = vmatpush.bf16.msra.mxu0 0
    %354 = vmatpush.bf16.msra.mxu0 0
    %355 = vmatpush.bf16.msra.mxu0 0
    %356 = vmatpush.bf16.msra.mxu0 0
    %357 = vmatpush.bf16.msra.mxu0 0
    %358 = vmatpush.bf16.msra.mxu0 0
    %359 = vmatpush.bf16.msra.mxu0 %v350
    %360 = vmatmul.bf16.gmra.mxu0 %v347
    %v361 = vpop.f32.mrf.mxu0
    %v362 = vadd.f32 0.0, %v361
    %v363 = vpop.f32.mrf.mxu0
    %364 = vdwg.mxu0
    %v365 = vpack.c.bf16 %v341, %v341
    %v366 = vpack.c.bf16 %v362, %v362
    %v367 = vpack.c.bf16 %v178, %v178
    %368 = vrot.lane.b32.xlu0 %v241, 120
    %v369 = vpop.permute.xlu0 %368
    %370 = vrot.lane.b32.xlu0 %v241, 88
    %v371 = vpop.permute.xlu0 %370
    %v373 = vsel %vm244, %v369, 0
    %v376 = vsel %vm244, %v371, 0
    %378 = vmatpush.bf16.xpose.msra.mxu0 0
    %379 = vmatpush.bf16.xpose.msra.mxu0 0
    %380 = vmatpush.bf16.xpose.msra.mxu0 0
    %381 = vmatpush.bf16.xpose.msra.mxu0 0
    %382 = vmatpush.bf16.xpose.msra.mxu0 0
    %383 = vmatpush.bf16.xpose.msra.mxu0 0
    %384 = vmatpush.bf16.xpose.msra.mxu0 0
    %385 = vmatpush.bf16.xpose.msra.mxu0 %v376
    %386 = vmatmul.bf16.gmra.mxu0 %v373
    %v387 = vpop.f32.mrf.mxu0
    %v388 = vadd.f32 0.0, %v387
    %v389 = vpop.f32.mrf.mxu0
    %390 = vdwg.mxu0
    %391 = vrot.lane.b32.xlu0 %v266, 120
    %v392 = vpop.permute.xlu0 %391
    %393 = vrot.lane.b32.xlu0 %v266, 88
    %v394 = vpop.permute.xlu0 %393
    %v396 = vsel %vm244, %v392, 0
    %v399 = vsel %vm244, %v394, 0
    %401 = vmatpush.bf16.xpose.msra.mxu0 0
    %402 = vmatpush.bf16.xpose.msra.mxu0 0
    %403 = vmatpush.bf16.xpose.msra.mxu0 0
    %404 = vmatpush.bf16.xpose.msra.mxu0 0
    %405 = vmatpush.bf16.xpose.msra.mxu0 0
    %406 = vmatpush.bf16.xpose.msra.mxu0 0
    %407 = vmatpush.bf16.xpose.msra.mxu0 0
    %408 = vmatpush.bf16.xpose.msra.mxu0 %v399
    %409 = vmatmul.bf16.gmra.mxu0 %v396
    %v410 = vpop.f32.mrf.mxu0
    %v411 = vadd.f32 0.0, %v410
    %v412 = vpop.f32.mrf.mxu0
    %413 = vdwg.mxu0
    %v414 = vmul.f32 %v388, 0.35355338
    %v415 = vmul.f32 %v411, 0.35355338
    %v416 = vadd.f32 %v414, %v292
    %v417 = vadd.f32 %v415, %v293
    %v418 = vsel %vm244, %v416, -inf
    %419 = vmax.xlane.f32.xlu0 %v418
    %v420 = vpop.xlane.xlu0 %419
    %v421 = vsel %vm244, %v417, -inf
    %422 = vmax.xlane.f32.xlu0 %v421
    %v423 = vpop.xlane.xlu0 %422
    %v424 = vsub.f32 %v416, %v420
    %v425 = vsub.f32 %v417, %v423
    %v426 = vmul.f32 %v424, 1.442695
    %v427 = vpow.pop %v426
    %v428 = vmul.f32 %v425, 1.442695
    %v429 = vpow.pop %v428
    %v430 = vsel %vm244, %v427, 0.0
    %431 = vadd.xlane.f32.xlu0 %v430
    %v432 = vpop.xlane.xlu0 %431
    %v433 = vsel %vm244, %v429, 0.0
    %434 = vadd.xlane.f32.xlu0 %v433
    %v435 = vpop.xlane.xlu0 %434
    %v436 = vrcp.pop %v432
    %v437 = vrcp.pop %v435
    %v438 = vmul.f32 %v427, %v436
    %v439 = vmul.f32 %v429, %v437
    %v440 = vpack.c.bf16 %v438, %v438
    %v441 = vpack.c.bf16 %v439, %v439
    %442 = vrot.lane.b32.xlu0 %v241, 56
    %v443 = vpop.permute.xlu0 %442
    %v445 = vsel %vm244, %v440, 0
    %v448 = vsel %vm327, %v443, 0
    %450 = vmatpush.bf16.msra.mxu0 0
    %451 = vmatpush.bf16.msra.mxu0 0
    %452 = vmatpush.bf16.msra.mxu0 0
    %453 = vmatpush.bf16.msra.mxu0 0
    %454 = vmatpush.bf16.msra.mxu0 0
    %455 = vmatpush.bf16.msra.mxu0 0
    %456 = vmatpush.bf16.msra.mxu0 0
    %457 = vmatpush.bf16.msra.mxu0 %v448
    %458 = vmatmul.bf16.gmra.mxu0 %v445
    %v459 = vpop.f32.mrf.mxu0
    %v460 = vadd.f32 0.0, %v459
    %v461 = vpop.f32.mrf.mxu0
    %462 = vdwg.mxu0
    %463 = vrot.lane.b32.xlu0 %v266, 56
    %v464 = vpop.permute.xlu0 %463
    %v466 = vsel %vm244, %v441, 0
    %v469 = vsel %vm327, %v464, 0
    %471 = vmatpush.bf16.msra.mxu0 0
    %472 = vmatpush.bf16.msra.mxu0 0
    %473 = vmatpush.bf16.msra.mxu0 0
    %474 = vmatpush.bf16.msra.mxu0 0
    %475 = vmatpush.bf16.msra.mxu0 0
    %476 = vmatpush.bf16.msra.mxu0 0
    %477 = vmatpush.bf16.msra.mxu0 0
    %478 = vmatpush.bf16.msra.mxu0 %v469
    %479 = vmatmul.bf16.gmra.mxu0 %v466
    %v480 = vpop.f32.mrf.mxu0
    %v481 = vadd.f32 0.0, %v480
    %v482 = vpop.f32.mrf.mxu0
    %483 = vdwg.mxu0
    %v484 = vpack.c.bf16 %v460, %v460
    %v485 = vpack.c.bf16 %v481, %v481
    %v486 = vpack.c.bf16 %v179, %v179
    %v489 = vunpack.c.l.b16 %v484
    %v490 = vunpack.c.l.b16 %v485
    %v491 = vpack.c.b16 %v490, %v489
    %v493 = vsel %vm244, %v491, 0
    %v496 = vsel %vm327, %v486, 0
    %498 = vmatpush.bf16.msra.mxu0 0
    %499 = vmatpush.bf16.msra.mxu0 0
    %500 = vmatpush.bf16.msra.mxu0 0
    %501 = vmatpush.bf16.msra.mxu0 0
    %502 = vmatpush.bf16.msra.mxu0 0
    %503 = vmatpush.bf16.msra.mxu0 0
    %504 = vmatpush.bf16.msra.mxu0 0
    %505 = vmatpush.bf16.msra.mxu0 %v496
    %506 = vmatmul.bf16.gmra.mxu0 %v493
    %v507 = vpop.f32.mrf.mxu0
    %v508 = vadd.f32 0.0, %v507
    %v509 = vpop.f32.mrf.mxu0
    %v510 = vadd.f32 0.0, %v509
    %511 = vdwg.mxu0
    %v514 = vunpack.c.l.b16 %v365
    %v515 = vunpack.c.l.b16 %v366
    %v516 = vpack.c.b16 %v515, %v514
    %v518 = vsel %vm244, %v516, 0
    %v521 = vsel %vm327, %v367, 0
    %523 = vmatpush.bf16.msra.mxu0 0
    %524 = vmatpush.bf16.msra.mxu0 0
    %525 = vmatpush.bf16.msra.mxu0 0
    %526 = vmatpush.bf16.msra.mxu0 0
    %527 = vmatpush.bf16.msra.mxu0 0
    %528 = vmatpush.bf16.msra.mxu0 0
    %529 = vmatpush.bf16.msra.mxu0 0
    %530 = vmatpush.bf16.msra.mxu0 %v521
    %531 = vmatmul.bf16.gmra.mxu0 %v518
    %v532 = vpop.f32.mrf.mxu0
    %v533 = vadd.f32 %v508, %v532
    %v534 = vpop.f32.mrf.mxu0
    %v535 = vadd.f32 %v510, %v534
    %536 = vdwg.mxu0
    %537 = vrot.lane.b32.xlu0 %v241, 112
    %v538 = vpop.permute.xlu0 %537
    %539 = vrot.lane.b32.xlu0 %v241, 80
    %v540 = vpop.permute.xlu0 %539
    %v542 = vsel %vm244, %v538, 0
    %v545 = vsel %vm244, %v540, 0
    %547 = vmatpush.bf16.xpose.msra.mxu0 0
    %548 = vmatpush.bf16.xpose.msra.mxu0 0
    %549 = vmatpush.bf16.xpose.msra.mxu0 0
    %550 = vmatpush.bf16.xpose.msra.mxu0 0
    %551 = vmatpush.bf16.xpose.msra.mxu0 0
    %552 = vmatpush.bf16.xpose.msra.mxu0 0
    %553 = vmatpush.bf16.xpose.msra.mxu0 0
    %554 = vmatpush.bf16.xpose.msra.mxu0 %v545
    %555 = vmatmul.bf16.gmra.mxu0 %v542
    %v556 = vpop.f32.mrf.mxu0
    %v557 = vadd.f32 0.0, %v556
    %v558 = vpop.f32.mrf.mxu0
    %559 = vdwg.mxu0
    %560 = vrot.lane.b32.xlu0 %v266, 112
    %v561 = vpop.permute.xlu0 %560
    %562 = vrot.lane.b32.xlu0 %v266, 80
    %v563 = vpop.permute.xlu0 %562
    %v565 = vsel %vm244, %v561, 0
    %v568 = vsel %vm244, %v563, 0
    %570 = vmatpush.bf16.xpose.msra.mxu0 0
    %571 = vmatpush.bf16.xpose.msra.mxu0 0
    %572 = vmatpush.bf16.xpose.msra.mxu0 0
    %573 = vmatpush.bf16.xpose.msra.mxu0 0
    %574 = vmatpush.bf16.xpose.msra.mxu0 0
    %575 = vmatpush.bf16.xpose.msra.mxu0 0
    %576 = vmatpush.bf16.xpose.msra.mxu0 0
    %577 = vmatpush.bf16.xpose.msra.mxu0 %v568
    %578 = vmatmul.bf16.gmra.mxu0 %v565
    %v579 = vpop.f32.mrf.mxu0
    %v580 = vadd.f32 0.0, %v579
    %v581 = vpop.f32.mrf.mxu0
    %582 = vdwg.mxu0
    %v583 = vmul.f32 %v557, 0.35355338
    %v584 = vmul.f32 %v580, 0.35355338
    %v585 = vadd.f32 %v583, %v292
    %v586 = vadd.f32 %v584, %v293
    %v587 = vsel %vm244, %v585, -inf
    %588 = vmax.xlane.f32.xlu0 %v587
    %v589 = vpop.xlane.xlu0 %588
    %v590 = vsel %vm244, %v586, -inf
    %591 = vmax.xlane.f32.xlu0 %v590
    %v592 = vpop.xlane.xlu0 %591
    %v593 = vsub.f32 %v585, %v589
    %v594 = vsub.f32 %v586, %v592
    %v595 = vmul.f32 %v593, 1.442695
    %v596 = vpow.pop %v595
    %v597 = vmul.f32 %v594, 1.442695
    %v598 = vpow.pop %v597
    %v599 = vsel %vm244, %v596, 0.0
    %600 = vadd.xlane.f32.xlu0 %v599
    %v601 = vpop.xlane.xlu0 %600
    %v602 = vsel %vm244, %v598, 0.0
    %603 = vadd.xlane.f32.xlu0 %v602
    %v604 = vpop.xlane.xlu0 %603
    %v605 = vrcp.pop %v601
    %v606 = vrcp.pop %v604
    %v607 = vmul.f32 %v596, %v605
    %v608 = vmul.f32 %v598, %v606
    %v609 = vpack.c.bf16 %v607, %v607
    %v610 = vpack.c.bf16 %v608, %v608
    %611 = vrot.lane.b32.xlu0 %v241, 48
    %v612 = vpop.permute.xlu0 %611
    %v614 = vsel %vm244, %v609, 0
    %v617 = vsel %vm327, %v612, 0
    %619 = vmatpush.bf16.msra.mxu0 0
    %620 = vmatpush.bf16.msra.mxu0 0
    %621 = vmatpush.bf16.msra.mxu0 0
    %622 = vmatpush.bf16.msra.mxu0 0
    %623 = vmatpush.bf16.msra.mxu0 0
    %624 = vmatpush.bf16.msra.mxu0 0
    %625 = vmatpush.bf16.msra.mxu0 0
    %626 = vmatpush.bf16.msra.mxu0 %v617
    %627 = vmatmul.bf16.gmra.mxu0 %v614
    %v628 = vpop.f32.mrf.mxu0
    %v629 = vadd.f32 0.0, %v628
    %v630 = vpop.f32.mrf.mxu0
    %631 = vdwg.mxu0
    %632 = vrot.lane.b32.xlu0 %v266, 48
    %v633 = vpop.permute.xlu0 %632
    %v635 = vsel %vm244, %v610, 0
    %v638 = vsel %vm327, %v633, 0
    %640 = vmatpush.bf16.msra.mxu0 0
    %641 = vmatpush.bf16.msra.mxu0 0
    %642 = vmatpush.bf16.msra.mxu0 0
    %643 = vmatpush.bf16.msra.mxu0 0
    %644 = vmatpush.bf16.msra.mxu0 0
    %645 = vmatpush.bf16.msra.mxu0 0
    %646 = vmatpush.bf16.msra.mxu0 0
    %647 = vmatpush.bf16.msra.mxu0 %v638
    %648 = vmatmul.bf16.gmra.mxu0 %v635
    %v649 = vpop.f32.mrf.mxu0
    %v650 = vadd.f32 0.0, %v649
    %v651 = vpop.f32.mrf.mxu0
    %652 = vdwg.mxu0
    %v653 = vpack.c.bf16 %v629, %v629
    %v654 = vpack.c.bf16 %v650, %v650
    %v655 = vpack.c.bf16 %v180, %v180
    %v658 = vunpack.c.l.b16 %v653
    %v659 = vunpack.c.l.b16 %v654
    %v660 = vpack.c.b16 %v659, %v658
    %v662 = vsel %vm244, %v660, 0
    %v665 = vsel %vm327, %v655, 0
    %667 = vmatpush.bf16.msra.mxu0 0
    %668 = vmatpush.bf16.msra.mxu0 0
    %669 = vmatpush.bf16.msra.mxu0 0
    %670 = vmatpush.bf16.msra.mxu0 0
    %671 = vmatpush.bf16.msra.mxu0 0
    %672 = vmatpush.bf16.msra.mxu0 0
    %673 = vmatpush.bf16.msra.mxu0 0
    %674 = vmatpush.bf16.msra.mxu0 %v665
    %675 = vmatmul.bf16.gmra.mxu0 %v662
    %v676 = vpop.f32.mrf.mxu0
    %v677 = vadd.f32 0.0, %v676
    %v678 = vpop.f32.mrf.mxu0
    %v679 = vadd.f32 0.0, %v678
    %680 = vdwg.mxu0
    %v681 = vadd.f32 %v533, %v677
    %v682 = vadd.f32 %v535, %v679
    %683 = vrot.lane.b32.xlu0 %v241, 104
    %v684 = vpop.permute.xlu0 %683
    %685 = vrot.lane.b32.xlu0 %v241, 72
    %v686 = vpop.permute.xlu0 %685
    %v688 = vsel %vm244, %v684, 0
    %v691 = vsel %vm244, %v686, 0
    %693 = vmatpush.bf16.xpose.msra.mxu0 0
    %694 = vmatpush.bf16.xpose.msra.mxu0 0
    %695 = vmatpush.bf16.xpose.msra.mxu0 0
    %696 = vmatpush.bf16.xpose.msra.mxu0 0
    %697 = vmatpush.bf16.xpose.msra.mxu0 0
    %698 = vmatpush.bf16.xpose.msra.mxu0 0
    %699 = vmatpush.bf16.xpose.msra.mxu0 0
    %700 = vmatpush.bf16.xpose.msra.mxu0 %v691
    %701 = vmatmul.bf16.gmra.mxu0 %v688
    %v702 = vpop.f32.mrf.mxu0
    %v703 = vadd.f32 0.0, %v702
    %v704 = vpop.f32.mrf.mxu0
    %705 = vdwg.mxu0
    %706 = vrot.lane.b32.xlu0 %v266, 104
    %v707 = vpop.permute.xlu0 %706
    %708 = vrot.lane.b32.xlu0 %v266, 72
    %v709 = vpop.permute.xlu0 %708
    %v711 = vsel %vm244, %v707, 0
    %v714 = vsel %vm244, %v709, 0
    %716 = vmatpush.bf16.xpose.msra.mxu0 0
    %717 = vmatpush.bf16.xpose.msra.mxu0 0
    %718 = vmatpush.bf16.xpose.msra.mxu0 0
    %719 = vmatpush.bf16.xpose.msra.mxu0 0
    %720 = vmatpush.bf16.xpose.msra.mxu0 0
    %721 = vmatpush.bf16.xpose.msra.mxu0 0
    %722 = vmatpush.bf16.xpose.msra.mxu0 0
    %723 = vmatpush.bf16.xpose.msra.mxu0 %v714
    %724 = vmatmul.bf16.gmra.mxu0 %v711
    %v725 = vpop.f32.mrf.mxu0
    %v726 = vadd.f32 0.0, %v725
    %v727 = vpop.f32.mrf.mxu0
    %728 = vdwg.mxu0
    %v729 = vmul.f32 %v703, 0.35355338
    %v730 = vmul.f32 %v726, 0.35355338
    %v731 = vadd.f32 %v729, %v292
    %v732 = vadd.f32 %v730, %v293
    %v733 = vsel %vm244, %v731, -inf
    %734 = vmax.xlane.f32.xlu0 %v733
    %v735 = vpop.xlane.xlu0 %734
    %v736 = vsel %vm244, %v732, -inf
    %737 = vmax.xlane.f32.xlu0 %v736
    %v738 = vpop.xlane.xlu0 %737
    %v739 = vsub.f32 %v731, %v735
    %v740 = vsub.f32 %v732, %v738
    %v741 = vmul.f32 %v739, 1.442695
    %v742 = vpow.pop %v741
    %v743 = vmul.f32 %v740, 1.442695
    %v744 = vpow.pop %v743
    %v745 = vsel %vm244, %v742, 0.0
    %746 = vadd.xlane.f32.xlu0 %v745
    %v747 = vpop.xlane.xlu0 %746
    %v748 = vsel %vm244, %v744, 0.0
    %749 = vadd.xlane.f32.xlu0 %v748
    %v750 = vpop.xlane.xlu0 %749
    %v751 = vrcp.pop %v747
    %v752 = vrcp.pop %v750
    %v753 = vmul.f32 %v742, %v751
    %v754 = vmul.f32 %v744, %v752
    %v755 = vpack.c.bf16 %v753, %v753
    %v756 = vpack.c.bf16 %v754, %v754
    %757 = vrot.lane.b32.xlu0 %v241, 40
    %v758 = vpop.permute.xlu0 %757
    %v760 = vsel %vm244, %v755, 0
    %v763 = vsel %vm327, %v758, 0
    %765 = vmatpush.bf16.msra.mxu0 0
    %766 = vmatpush.bf16.msra.mxu0 0
    %767 = vmatpush.bf16.msra.mxu0 0
    %768 = vmatpush.bf16.msra.mxu0 0
    %769 = vmatpush.bf16.msra.mxu0 0
    %770 = vmatpush.bf16.msra.mxu0 0
    %771 = vmatpush.bf16.msra.mxu0 0
    %772 = vmatpush.bf16.msra.mxu0 %v763
    %773 = vmatmul.bf16.gmra.mxu0 %v760
    %v774 = vpop.f32.mrf.mxu0
    %v775 = vadd.f32 0.0, %v774
    %v776 = vpop.f32.mrf.mxu0
    %777 = vdwg.mxu0
    %778 = vrot.lane.b32.xlu0 %v266, 40
    %v779 = vpop.permute.xlu0 %778
    %v781 = vsel %vm244, %v756, 0
    %v784 = vsel %vm327, %v779, 0
    %786 = vmatpush.bf16.msra.mxu0 0
    %787 = vmatpush.bf16.msra.mxu0 0
    %788 = vmatpush.bf16.msra.mxu0 0
    %789 = vmatpush.bf16.msra.mxu0 0
    %790 = vmatpush.bf16.msra.mxu0 0
    %791 = vmatpush.bf16.msra.mxu0 0
    %792 = vmatpush.bf16.msra.mxu0 0
    %793 = vmatpush.bf16.msra.mxu0 %v784
    %794 = vmatmul.bf16.gmra.mxu0 %v781
    %v795 = vpop.f32.mrf.mxu0
    %v796 = vadd.f32 0.0, %v795
    %v797 = vpop.f32.mrf.mxu0
    %798 = vdwg.mxu0
    %v799 = vpack.c.bf16 %v775, %v775
    %v800 = vpack.c.bf16 %v796, %v796
    %v801 = vpack.c.bf16 %v181, %v181
    %v804 = vunpack.c.l.b16 %v799
    %v805 = vunpack.c.l.b16 %v800
    %v806 = vpack.c.b16 %v805, %v804
    %v808 = vsel %vm244, %v806, 0
    %v811 = vsel %vm327, %v801, 0
    %813 = vmatpush.bf16.msra.mxu0 0
    %814 = vmatpush.bf16.msra.mxu0 0
    %815 = vmatpush.bf16.msra.mxu0 0
    %816 = vmatpush.bf16.msra.mxu0 0
    %817 = vmatpush.bf16.msra.mxu0 0
    %818 = vmatpush.bf16.msra.mxu0 0
    %819 = vmatpush.bf16.msra.mxu0 0
    %820 = vmatpush.bf16.msra.mxu0 %v811
    %821 = vmatmul.bf16.gmra.mxu0 %v808
    %v822 = vpop.f32.mrf.mxu0
    %v823 = vadd.f32 0.0, %v822
    %v824 = vpop.f32.mrf.mxu0
    %v825 = vadd.f32 0.0, %v824
    %826 = vdwg.mxu0
    %v827 = vadd.f32 %v681, %v823
    %v828 = vadd.f32 %v682, %v825
    %v830 = vperm.slane %v182, 0
    %v832 = vadd.f32 %v827, %v830
    %v833 = vadd.f32 %v828, %v830
    %v834 = vadd.f32 %v167, %v832
    %v835 = vadd.f32 %v169, %v833
    %v836 = vld [vmem:[%s9] sm:$0x1]
    %v837 = vld [vmem:[%s9 + $0x1] sm:$0x1]
    %v838 = vsel %vm219, %v834, 0.0
    %839 = vadd.xlane.f32.xlu0 %v838
    %v840 = vpop.xlane.xlu0 %839
    %v841 = vsel %vm219, %v835, 0.0
    %842 = vadd.xlane.f32.xlu0 %v841
    %v843 = vpop.xlane.xlu0 %842
    %v844 = vrcp.pop 32.0
    %v845 = vmul.f32 32.0, %v844
    %v846 = vsub.f32 1.0, %v845
    %v847 = vmul.f32 %v844, %v846
    %v848 = vadd.f32 %v844, %v847
    %vm849 = vweird.f32 %v844
    %v850 = vsel %vm849, %v844, %v848
    %v851 = vmul.f32 %v840, %v850
    %v852 = vmul.f32 %v843, %v850
    %v853 = vsub.f32 %v834, %v851
    %v854 = vsub.f32 %v835, %v852
    %v855 = vmul.f32 %v853, %v853
    %v856 = vmul.f32 %v854, %v854
    %v857 = vsel %vm219, %v855, 0.0
    %858 = vadd.xlane.f32.xlu0 %v857
    %v859 = vpop.xlane.xlu0 %858
    %v860 = vsel %vm219, %v856, 0.0
    %861 = vadd.xlane.f32.xlu0 %v860
    %v862 = vpop.xlane.xlu0 %861
    %v863 = vmul.f32 %v859, %v850
    %v864 = vmul.f32 %v862, %v850
    %v865 = vadd.f32 %v863, 1e-12
    %v866 = vadd.f32 %v864, 1e-12
    %v867 = vrsqrt.pop %v865
    %v868 = vmul.f32 %v867, %v865
    %v869 = vmul.f32 %v868, %v867
    %v870 = vmul.f32 0.5, %v869
    %v871 = vsub.f32 1.5, %v870
    %v872 = vmul.f32 %v867, %v871
    %vm873 = vweird.f32 %v865
    %vm874 = vweird.f32 %v867
    %vm875 = vmor %vm873, %vm874
    %v876 = vsel %vm875, %v867, %v872
    %v877 = vrsqrt.pop %v866
    %v878 = vmul.f32 %v877, %v866
    %v879 = vmul.f32 %v878, %v877
    %v880 = vmul.f32 0.5, %v879
    %v881 = vsub.f32 1.5, %v880
    %v882 = vmul.f32 %v877, %v881
    %vm883 = vweird.f32 %v866
    %vm884 = vweird.f32 %v877
    %vm885 = vmor %vm883, %vm884
    %v886 = vsel %vm885, %v877, %v882
    %v887 = vmul.f32 %v853, %v876
    %v888 = vmul.f32 %v854, %v886
    %v889 = vperm.slane %v836, 0
    %v890 = vmul.f32 %v887, %v889
    %v891 = vmul.f32 %v888, %v889
    %v892 = vperm.slane %v837, 0
    %v893 = vadd.f32 %v890, %v892
    %v894 = vadd.f32 %v891, %v892
    %v895 = vpack.c.bf16 %v893, %v893
    %v896 = vpack.c.bf16 %v894, %v894
    %v898 = vperm.slane %v187, 0
    %v902 = vunpack.c.l.b16 %v895
    %v903 = vunpack.c.l.b16 %v896
    %v904 = vpack.c.b16 %v903, %v902
    %v909 = vunpack.c.l.b16 %v183
    %v910 = vunpack.c.l.b16 %v184
    %v911 = vunpack.c.l.b16 %v185
    %v912 = vunpack.c.l.b16 %v186
    %v913 = vpack.c.b16 %v910, %v909
    %v914 = vpack.c.b16 %v912, %v911
    %v918 = vsel %vm219, %v904, 0
    %920 = vmatpush.bf16.msra.mxu0 0
    %921 = vmatpush.bf16.msra.mxu0 0
    %922 = vmatpush.bf16.msra.mxu0 0
    %923 = vmatpush.bf16.msra.mxu0 0
    %924 = vmatpush.bf16.msra.mxu0 0
    %925 = vmatpush.bf16.msra.mxu0 0
    %926 = vmatpush.bf16.msra.mxu0 %v914
    %927 = vmatpush.bf16.msra.mxu0 %v913
    %928 = vmatmul.bf16.gmra.mxu0 %v918
    %v929 = vpop.f32.mrf.mxu0
    %v930 = vadd.f32 %v898, %v929
    %v931 = vpop.f32.mrf.mxu0
    %v932 = vadd.f32 %v898, %v931
    %933 = vdwg.mxu0
    %v934 = vmul.f32 %v930, 0.5
    %v935 = vmul.f32 %v932, 0.5
    %v936 = vmul.f32 %v930, 0.044715
    %v937 = vmul.f32 %v932, 0.044715
    %v938 = vmul.f32 %v936, %v930
    %v939 = vmul.f32 %v937, %v932
    %v940 = vmul.f32 %v938, %v930
    %v941 = vmul.f32 %v939, %v932
    %v942 = vadd.f32 %v930, %v940
    %v943 = vadd.f32 %v932, %v941
    %v944 = vmul.f32 %v942, 0.7978846
    %v945 = vmul.f32 %v943, 0.7978846
    %v946 = vtanh.pop %v944
    %v947 = vtanh.pop %v945
    %v948 = vadd.f32 %v946, 1.0
    %v949 = vadd.f32 %v947, 1.0
    %v950 = vmul.f32 %v934, %v948
    %v951 = vmul.f32 %v935, %v949
    %v952 = vpack.c.bf16 %v950, %v950
    %v953 = vpack.c.bf16 %v951, %v951
    %v955 = vperm.slane %v196, 0
    %v959 = vunpack.c.l.b16 %v952
    %v960 = vunpack.c.l.b16 %v953
    %v961 = vpack.c.b16 %v960, %v959
    %v970 = vunpack.c.l.b16 %v188
    %v971 = vunpack.c.l.b16 %v189
    %v972 = vunpack.c.l.b16 %v190
    %v973 = vunpack.c.l.b16 %v191
    %v974 = vunpack.c.l.b16 %v192
    %v975 = vunpack.c.l.b16 %v193
    %v976 = vunpack.c.l.b16 %v194
    %v977 = vunpack.c.l.b16 %v195
    %v978 = vpack.c.b16 %v971, %v970
    %v979 = vpack.c.b16 %v973, %v972
    %v980 = vpack.c.b16 %v975, %v974
    %v981 = vpack.c.b16 %v977, %v976
    %vm986 = vcmask 523264
    %v988 = vsel %vm986, %v961, 0
    %990 = vmatpush.bf16.msra.mxu0 0
    %991 = vmatpush.bf16.msra.mxu0 0
    %992 = vmatpush.bf16.msra.mxu0 0
    %993 = vmatpush.bf16.msra.mxu0 0
    %994 = vmatpush.bf16.msra.mxu0 %v981
    %995 = vmatpush.bf16.msra.mxu0 %v980
    %996 = vmatpush.bf16.msra.mxu0 %v979
    %997 = vmatpush.bf16.msra.mxu0 %v978
    %998 = vmatmul.bf16.gmra.mxu0 %v988
    %v999 = vpop.f32.mrf.mxu0
    %v1000 = vadd.f32 %v955, %v999
    %v1001 = vpop.f32.mrf.mxu0
    %v1002 = vadd.f32 %v955, %v1001
    %1003 = vdwg.mxu0
    %v1004 = vadd.f32 %v893, %v1000
    %v1005 = vadd.f32 %v894, %v1002
    %v1006 = vld [vmem:[%s14] sm:$0x1]
    %v1007 = vld [vmem:[%s14 + $0x1] sm:$0x1]
    %v1008 = vsel %vm219, %v1004, 0.0
    %1009 = vadd.xlane.f32.xlu0 %v1008
    %v1010 = vpop.xlane.xlu0 %1009
    %v1011 = vsel %vm219, %v1005, 0.0
    %1012 = vadd.xlane.f32.xlu0 %v1011
    %v1013 = vpop.xlane.xlu0 %1012
    %v1014 = vmul.f32 %v1010, %v850
    %v1015 = vmul.f32 %v1013, %v850
    %v1016 = vsub.f32 %v1004, %v1014
    %v1017 = vsub.f32 %v1005, %v1015
    %v1018 = vmul.f32 %v1016, %v1016
    %v1019 = vmul.f32 %v1017, %v1017
    %v1020 = vsel %vm219, %v1018, 0.0
    %1021 = vadd.xlane.f32.xlu0 %v1020
    %v1022 = vpop.xlane.xlu0 %1021
    %v1023 = vsel %vm219, %v1019, 0.0
    %1024 = vadd.xlane.f32.xlu0 %v1023
    %v1025 = vpop.xlane.xlu0 %1024
    %v1026 = vmul.f32 %v1022, %v850
    %v1027 = vmul.f32 %v1025, %v850
    %v1028 = vadd.f32 %v1026, 1e-12
    %v1029 = vadd.f32 %v1027, 1e-12
    %v1030 = vrsqrt.pop %v1028
    %v1031 = vmul.f32 %v1030, %v1028
    %v1032 = vmul.f32 %v1031, %v1030
    %v1033 = vmul.f32 0.5, %v1032
    %v1034 = vsub.f32 1.5, %v1033
    %v1035 = vmul.f32 %v1030, %v1034
    %vm1036 = vweird.f32 %v1028
    %vm1037 = vweird.f32 %v1030
    %vm1038 = vmor %vm1036, %vm1037
    %v1039 = vsel %vm1038, %v1030, %v1035
    %v1040 = vrsqrt.pop %v1029
    %v1041 = vmul.f32 %v1040, %v1029
    %v1042 = vmul.f32 %v1041, %v1040
    %v1043 = vmul.f32 0.5, %v1042
    %v1044 = vsub.f32 1.5, %v1043
    %v1045 = vmul.f32 %v1040, %v1044
    %vm1046 = vweird.f32 %v1029
    %vm1047 = vweird.f32 %v1040
    %vm1048 = vmor %vm1046, %vm1047
    %v1049 = vsel %vm1048, %v1040, %v1045
    %v1050 = vmul.f32 %v1016, %v1039
    %v1051 = vmul.f32 %v1017, %v1049
    %v1052 = vperm.slane %v1006, 0
    %v1053 = vmul.f32 %v1050, %v1052
    %v1054 = vmul.f32 %v1051, %v1052
    %v1055 = vperm.slane %v1007, 0
    %v1056 = vadd.f32 %v1053, %v1055
    %v1057 = vadd.f32 %v1054, %v1055
    %v1058 = vpack.c.bf16 %v1056, %v1056
    %v1059 = vpack.c.bf16 %v1057, %v1057
    %v1062 = vunpack.c.l.b16 %v1058
    %v1063 = vunpack.c.l.b16 %v1059
    %v1064 = vpack.c.b16 %v1063, %v1062
    %v1066 = vsel %vm219, %v1064, 0
    %1068 = vmatpush.bf16.msra.mxu0 0
    %1069 = vmatpush.bf16.msra.mxu0 0
    %1070 = vmatpush.bf16.msra.mxu0 0
    %1071 = vmatpush.bf16.msra.mxu0 0
    %1072 = vmatpush.bf16.msra.mxu0 0
    %1073 = vmatpush.bf16.msra.mxu0 0
    %1074 = vmatpush.bf16.msra.mxu0 %v216
    %1075 = vmatpush.bf16.msra.mxu0 %v215
    %1076 = vmatmul.bf16.gmra.mxu0 %v1066
    %v1077 = vpop.f32.mrf.mxu0
    %v1078 = vadd.f32 %v200, %v1077
    %v1079 = vpop.f32.mrf.mxu0
    %v1080 = vadd.f32 %v200, %v1079
    %1081 = vdwg.mxu0
    %v1082 = vpack.c.bf16 %v1078, %v1078
    %v1083 = vpack.c.bf16 %v1080, %v1080
    %v1085 = vunpack.c.l.b16 %v1082
    %v1086 = vpack.c.b16 %v1085, %v1085
    %1087 = vrot.lane.b32.xlu0 %v1086, 96
    %v1088 = vpop.permute.xlu0 %1087
    %v1090 = vsel %vm244, %v1082, 0
    %v1093 = vsel %vm244, %v1088, 0
    %1095 = vmatpush.bf16.xpose.msra.mxu0 0
    %1096 = vmatpush.bf16.xpose.msra.mxu0 0
    %1097 = vmatpush.bf16.xpose.msra.mxu0 0
    %1098 = vmatpush.bf16.xpose.msra.mxu0 0
    %1099 = vmatpush.bf16.xpose.msra.mxu0 0
    %1100 = vmatpush.bf16.xpose.msra.mxu0 0
    %1101 = vmatpush.bf16.xpose.msra.mxu0 0
    %1102 = vmatpush.bf16.xpose.msra.mxu0 %v1093
    %1103 = vmatmul.bf16.gmra.mxu0 %v1090
    %v1104 = vpop.f32.mrf.mxu0
    %v1105 = vadd.f32 0.0, %v1104
    %v1106 = vpop.f32.mrf.mxu0
    %1107 = vdwg.mxu0
    %v1109 = vunpack.c.l.b16 %v1083
    %v1110 = vpack.c.b16 %v1109, %v1109
    %1111 = vrot.lane.b32.xlu0 %v1110, 96
    %v1112 = vpop.permute.xlu0 %1111
    %v1114 = vsel %vm244, %v1083, 0
    %v1117 = vsel %vm244, %v1112, 0
    %1119 = vmatpush.bf16.xpose.msra.mxu0 0
    %1120 = vmatpush.bf16.xpose.msra.mxu0 0
    %1121 = vmatpush.bf16.xpose.msra.mxu0 0
    %1122 = vmatpush.bf16.xpose.msra.mxu0 0
    %1123 = vmatpush.bf16.xpose.msra.mxu0 0
    %1124 = vmatpush.bf16.xpose.msra.mxu0 0
    %1125 = vmatpush.bf16.xpose.msra.mxu0 0
    %1126 = vmatpush.bf16.xpose.msra.mxu0 %v1117
    %1127 = vmatmul.bf16.gmra.mxu0 %v1114
    %v1128 = vpop.f32.mrf.mxu0
    %v1129 = vadd.f32 0.0, %v1128
    %v1130 = vpop.f32.mrf.mxu0
    %1131 = vdwg.mxu0
    %v1132 = vmul.f32 %v1105, 0.35355338
    %v1133 = vmul.f32 %v1129, 0.35355338
    %v1134 = vadd.f32 %v1132, %v292
    %v1135 = vadd.f32 %v1133, %v293
    %v1136 = vsel %vm244, %v1134, -inf
    %1137 = vmax.xlane.f32.xlu0 %v1136
    %v1138 = vpop.xlane.xlu0 %1137
    %v1139 = vsel %vm244, %v1135, -inf
    %1140 = vmax.xlane.f32.xlu0 %v1139
    %v1141 = vpop.xlane.xlu0 %1140
    %v1142 = vsub.f32 %v1134, %v1138
    %v1143 = vsub.f32 %v1135, %v1141
    %v1144 = vmul.f32 %v1142, 1.442695
    %v1145 = vpow.pop %v1144
    %v1146 = vmul.f32 %v1143, 1.442695
    %v1147 = vpow.pop %v1146
    %v1148 = vsel %vm244, %v1145, 0.0
    %1149 = vadd.xlane.f32.xlu0 %v1148
    %v1150 = vpop.xlane.xlu0 %1149
    %v1151 = vsel %vm244, %v1147, 0.0
    %1152 = vadd.xlane.f32.xlu0 %v1151
    %v1153 = vpop.xlane.xlu0 %1152
    %v1154 = vrcp.pop %v1150
    %v1155 = vrcp.pop %v1153
    %v1156 = vmul.f32 %v1145, %v1154
    %v1157 = vmul.f32 %v1147, %v1155
    %v1158 = vpack.c.bf16 %v1156, %v1156
    %v1159 = vpack.c.bf16 %v1157, %v1157
    %1160 = vrot.lane.b32.xlu0 %v1086, 64
    %v1161 = vpop.permute.xlu0 %1160
    %v1163 = vsel %vm244, %v1158, 0
    %v1166 = vsel %vm327, %v1161, 0
    %1168 = vmatpush.bf16.msra.mxu0 0
    %1169 = vmatpush.bf16.msra.mxu0 0
    %1170 = vmatpush.bf16.msra.mxu0 0
    %1171 = vmatpush.bf16.msra.mxu0 0
    %1172 = vmatpush.bf16.msra.mxu0 0
    %1173 = vmatpush.bf16.msra.mxu0 0
    %1174 = vmatpush.bf16.msra.mxu0 0
    %1175 = vmatpush.bf16.msra.mxu0 %v1166
    %1176 = vmatmul.bf16.gmra.mxu0 %v1163
    %v1177 = vpop.f32.mrf.mxu0
    %v1178 = vadd.f32 0.0, %v1177
    %v1179 = vpop.f32.mrf.mxu0
    %1180 = vdwg.mxu0
    %1181 = vrot.lane.b32.xlu0 %v1110, 64
    %v1182 = vpop.permute.xlu0 %1181
    %v1184 = vsel %vm244, %v1159, 0
    %v1187 = vsel %vm327, %v1182, 0
    %1189 = vmatpush.bf16.msra.mxu0 0
    %1190 = vmatpush.bf16.msra.mxu0 0
    %1191 = vmatpush.bf16.msra.mxu0 0
    %1192 = vmatpush.bf16.msra.mxu0 0
    %1193 = vmatpush.bf16.msra.mxu0 0
    %1194 = vmatpush.bf16.msra.mxu0 0
    %1195 = vmatpush.bf16.msra.mxu0 0
    %1196 = vmatpush.bf16.msra.mxu0 %v1187
    %1197 = vmatmul.bf16.gmra.mxu0 %v1184
    %v1198 = vpop.f32.mrf.mxu0
    %v1199 = vadd.f32 0.0, %v1198
    %v1200 = vpop.f32.mrf.mxu0
    %1201 = vdwg.mxu0
    %v1202 = vpack.c.bf16 %v1178, %v1178
    %v1203 = vpack.c.bf16 %v1199, %v1199
    %1204 = vrot.lane.b32.xlu0 %v1086, 120
    %v1205 = vpop.permute.xlu0 %1204
    %1206 = vrot.lane.b32.xlu0 %v1086, 88
    %v1207 = vpop.permute.xlu0 %1206
    %v1209 = vsel %vm244, %v1205, 0
    %v1212 = vsel %vm244, %v1207, 0
    %1214 = vmatpush.bf16.xpose.msra.mxu0 0
    %1215 = vmatpush.bf16.xpose.msra.mxu0 0
    %1216 = vmatpush.bf16.xpose.msra.mxu0 0
    %1217 = vmatpush.bf16.xpose.msra.mxu0 0
    %1218 = vmatpush.bf16.xpose.msra.mxu0 0
    %1219 = vmatpush.bf16.xpose.msra.mxu0 0
    %1220 = vmatpush.bf16.xpose.msra.mxu0 0
    %1221 = vmatpush.bf16.xpose.msra.mxu0 %v1212
    %1222 = vmatmul.bf16.gmra.mxu0 %v1209
    %v1223 = vpop.f32.mrf.mxu0
    %v1224 = vadd.f32 0.0, %v1223
    %v1225 = vpop.f32.mrf.mxu0
    %1226 = vdwg.mxu0
    %1227 = vrot.lane.b32.xlu0 %v1110, 120
    %v1228 = vpop.permute.xlu0 %1227
    %1229 = vrot.lane.b32.xlu0 %v1110, 88
    %v1230 = vpop.permute.xlu0 %1229
    %v1232 = vsel %vm244, %v1228, 0
    %v1235 = vsel %vm244, %v1230, 0
    %1237 = vmatpush.bf16.xpose.msra.mxu0 0
    %1238 = vmatpush.bf16.xpose.msra.mxu0 0
    %1239 = vmatpush.bf16.xpose.msra.mxu0 0
    %1240 = vmatpush.bf16.xpose.msra.mxu0 0
    %1241 = vmatpush.bf16.xpose.msra.mxu0 0
    %1242 = vmatpush.bf16.xpose.msra.mxu0 0
    %1243 = vmatpush.bf16.xpose.msra.mxu0 0
    %1244 = vmatpush.bf16.xpose.msra.mxu0 %v1235
    %1245 = vmatmul.bf16.gmra.mxu0 %v1232
    %v1246 = vpop.f32.mrf.mxu0
    %v1247 = vadd.f32 0.0, %v1246
    %v1248 = vpop.f32.mrf.mxu0
    %1249 = vdwg.mxu0
    %v1250 = vmul.f32 %v1224, 0.35355338
    %v1251 = vmul.f32 %v1247, 0.35355338
    %v1252 = vadd.f32 %v1250, %v292
    %v1253 = vadd.f32 %v1251, %v293
    %v1254 = vsel %vm244, %v1252, -inf
    %1255 = vmax.xlane.f32.xlu0 %v1254
    %v1256 = vpop.xlane.xlu0 %1255
    %v1257 = vsel %vm244, %v1253, -inf
    %1258 = vmax.xlane.f32.xlu0 %v1257
    %v1259 = vpop.xlane.xlu0 %1258
    %v1260 = vsub.f32 %v1252, %v1256
    %v1261 = vsub.f32 %v1253, %v1259
    %v1262 = vmul.f32 %v1260, 1.442695
    %v1263 = vpow.pop %v1262
    %v1264 = vmul.f32 %v1261, 1.442695
    %v1265 = vpow.pop %v1264
    %v1266 = vsel %vm244, %v1263, 0.0
    %1267 = vadd.xlane.f32.xlu0 %v1266
    %v1268 = vpop.xlane.xlu0 %1267
    %v1269 = vsel %vm244, %v1265, 0.0
    %1270 = vadd.xlane.f32.xlu0 %v1269
    %v1271 = vpop.xlane.xlu0 %1270
    %v1272 = vrcp.pop %v1268
    %v1273 = vrcp.pop %v1271
    %v1274 = vmul.f32 %v1263, %v1272
    %v1275 = vmul.f32 %v1265, %v1273
    %v1276 = vpack.c.bf16 %v1274, %v1274
    %v1277 = vpack.c.bf16 %v1275, %v1275
    %1278 = vrot.lane.b32.xlu0 %v1086, 56
    %v1279 = vpop.permute.xlu0 %1278
    %v1281 = vsel %vm244, %v1276, 0
    %v1284 = vsel %vm327, %v1279, 0
    %1286 = vmatpush.bf16.msra.mxu0 0
    %1287 = vmatpush.bf16.msra.mxu0 0
    %1288 = vmatpush.bf16.msra.mxu0 0
    %1289 = vmatpush.bf16.msra.mxu0 0
    %1290 = vmatpush.bf16.msra.mxu0 0
    %1291 = vmatpush.bf16.msra.mxu0 0
    %1292 = vmatpush.bf16.msra.mxu0 0
    %1293 = vmatpush.bf16.msra.mxu0 %v1284
    %1294 = vmatmul.bf16.gmra.mxu0 %v1281
    %v1295 = vpop.f32.mrf.mxu0
    %v1296 = vadd.f32 0.0, %v1295
    %v1297 = vpop.f32.mrf.mxu0
    %1298 = vdwg.mxu0
    %1299 = vrot.lane.b32.xlu0 %v1110, 56
    %v1300 = vpop.permute.xlu0 %1299
    %v1302 = vsel %vm244, %v1277, 0
    %v1305 = vsel %vm327, %v1300, 0
    %1307 = vmatpush.bf16.msra.mxu0 0
    %1308 = vmatpush.bf16.msra.mxu0 0
    %1309 = vmatpush.bf16.msra.mxu0 0
    %1310 = vmatpush.bf16.msra.mxu0 0
    %1311 = vmatpush.bf16.msra.mxu0 0
    %1312 = vmatpush.bf16.msra.mxu0 0
    %1313 = vmatpush.bf16.msra.mxu0 0
    %1314 = vmatpush.bf16.msra.mxu0 %v1305
    %1315 = vmatmul.bf16.gmra.mxu0 %v1302
    %v1316 = vpop.f32.mrf.mxu0
    %v1317 = vadd.f32 0.0, %v1316
    %v1318 = vpop.f32.mrf.mxu0
    %1319 = vdwg.mxu0
    %v1320 = vpack.c.bf16 %v1296, %v1296
    %v1321 = vpack.c.bf16 %v1317, %v1317
    %v1324 = vunpack.c.l.b16 %v1320
    %v1325 = vunpack.c.l.b16 %v1321
    %v1326 = vpack.c.b16 %v1325, %v1324
    %v1328 = vsel %vm244, %v1326, 0
    %1330 = vmatpush.bf16.msra.mxu0 0
    %1331 = vmatpush.bf16.msra.mxu0 0
    %1332 = vmatpush.bf16.msra.mxu0 0
    %1333 = vmatpush.bf16.msra.mxu0 0
    %1334 = vmatpush.bf16.msra.mxu0 0
    %1335 = vmatpush.bf16.msra.mxu0 0
    %1336 = vmatpush.bf16.msra.mxu0 0
    %1337 = vmatpush.bf16.msra.mxu0 %v496
    %1338 = vmatmul.bf16.gmra.mxu0 %v1328
    %v1339 = vpop.f32.mrf.mxu0
    %v1340 = vadd.f32 0.0, %v1339
    %v1341 = vpop.f32.mrf.mxu0
    %v1342 = vadd.f32 0.0, %v1341
    %1343 = vdwg.mxu0
    %v1346 = vunpack.c.l.b16 %v1202
    %v1347 = vunpack.c.l.b16 %v1203
    %v1348 = vpack.c.b16 %v1347, %v1346
    %v1350 = vsel %vm244, %v1348, 0
    %1352 = vmatpush.bf16.msra.mxu0 0
    %1353 = vmatpush.bf16.msra.mxu0 0
    %1354 = vmatpush.bf16.msra.mxu0 0
    %1355 = vmatpush.bf16.msra.mxu0 0
    %1356 = vmatpush.bf16.msra.mxu0 0
    %1357 = vmatpush.bf16.msra.mxu0 0
    %1358 = vmatpush.bf16.msra.mxu0 0
    %1359 = vmatpush.bf16.msra.mxu0 %v521
    %1360 = vmatmul.bf16.gmra.mxu0 %v1350
    %v1361 = vpop.f32.mrf.mxu0
    %v1362 = vadd.f32 %v1340, %v1361
    %v1363 = vpop.f32.mrf.mxu0
    %v1364 = vadd.f32 %v1342, %v1363
    %1365 = vdwg.mxu0
    %1366 = vrot.lane.b32.xlu0 %v1086, 112
    %v1367 = vpop.permute.xlu0 %1366
    %1368 = vrot.lane.b32.xlu0 %v1086, 80
    %v1369 = vpop.permute.xlu0 %1368
    %v1371 = vsel %vm244, %v1367, 0
    %v1374 = vsel %vm244, %v1369, 0
    %1376 = vmatpush.bf16.xpose.msra.mxu0 0
    %1377 = vmatpush.bf16.xpose.msra.mxu0 0
    %1378 = vmatpush.bf16.xpose.msra.mxu0 0
    %1379 = vmatpush.bf16.xpose.msra.mxu0 0
    %1380 = vmatpush.bf16.xpose.msra.mxu0 0
    %1381 = vmatpush.bf16.xpose.msra.mxu0 0
    %1382 = vmatpush.bf16.xpose.msra.mxu0 0
    %1383 = vmatpush.bf16.xpose.msra.mxu0 %v1374
    %1384 = vmatmul.bf16.gmra.mxu0 %v1371
    %v1385 = vpop.f32.mrf.mxu0
    %v1386 = vadd.f32 0.0, %v1385
    %v1387 = vpop.f32.mrf.mxu0
    %1388 = vdwg.mxu0
    %1389 = vrot.lane.b32.xlu0 %v1110, 112
    %v1390 = vpop.permute.xlu0 %1389
    %1391 = vrot.lane.b32.xlu0 %v1110, 80
    %v1392 = vpop.permute.xlu0 %1391
    %v1394 = vsel %vm244, %v1390, 0
    %v1397 = vsel %vm244, %v1392, 0
    %1399 = vmatpush.bf16.xpose.msra.mxu0 0
    %1400 = vmatpush.bf16.xpose.msra.mxu0 0
    %1401 = vmatpush.bf16.xpose.msra.mxu0 0
    %1402 = vmatpush.bf16.xpose.msra.mxu0 0
    %1403 = vmatpush.bf16.xpose.msra.mxu0 0
    %1404 = vmatpush.bf16.xpose.msra.mxu0 0
    %1405 = vmatpush.bf16.xpose.msra.mxu0 0
    %1406 = vmatpush.bf16.xpose.msra.mxu0 %v1397
    %1407 = vmatmul.bf16.gmra.mxu0 %v1394
    %v1408 = vpop.f32.mrf.mxu0
    %v1409 = vadd.f32 0.0, %v1408
    %v1410 = vpop.f32.mrf.mxu0
    %1411 = vdwg.mxu0
    %v1412 = vmul.f32 %v1386, 0.35355338
    %v1413 = vmul.f32 %v1409, 0.35355338
    %v1414 = vadd.f32 %v1412, %v292
    %v1415 = vadd.f32 %v1413, %v293
    %v1416 = vsel %vm244, %v1414, -inf
    %1417 = vmax.xlane.f32.xlu0 %v1416
    %v1418 = vpop.xlane.xlu0 %1417
    %v1419 = vsel %vm244, %v1415, -inf
    %1420 = vmax.xlane.f32.xlu0 %v1419
    %v1421 = vpop.xlane.xlu0 %1420
    %v1422 = vsub.f32 %v1414, %v1418
    %v1423 = vsub.f32 %v1415, %v1421
    %v1424 = vmul.f32 %v1422, 1.442695
    %v1425 = vpow.pop %v1424
    %v1426 = vmul.f32 %v1423, 1.442695
    %v1427 = vpow.pop %v1426
    %v1428 = vsel %vm244, %v1425, 0.0
    %1429 = vadd.xlane.f32.xlu0 %v1428
    %v1430 = vpop.xlane.xlu0 %1429
    %v1431 = vsel %vm244, %v1427, 0.0
    %1432 = vadd.xlane.f32.xlu0 %v1431
    %v1433 = vpop.xlane.xlu0 %1432
    %v1434 = vrcp.pop %v1430
    %v1435 = vrcp.pop %v1433
    %v1436 = vmul.f32 %v1425, %v1434
    %v1437 = vmul.f32 %v1427, %v1435
    %v1438 = vpack.c.bf16 %v1436, %v1436
    %v1439 = vpack.c.bf16 %v1437, %v1437
    %1440 = vrot.lane.b32.xlu0 %v1086, 48
    %v1441 = vpop.permute.xlu0 %1440
    %v1443 = vsel %vm244, %v1438, 0
    %v1446 = vsel %vm327, %v1441, 0
    %1448 = vmatpush.bf16.msra.mxu0 0
    %1449 = vmatpush.bf16.msra.mxu0 0
    %1450 = vmatpush.bf16.msra.mxu0 0
    %1451 = vmatpush.bf16.msra.mxu0 0
    %1452 = vmatpush.bf16.msra.mxu0 0
    %1453 = vmatpush.bf16.msra.mxu0 0
    %1454 = vmatpush.bf16.msra.mxu0 0
    %1455 = vmatpush.bf16.msra.mxu0 %v1446
    %1456 = vmatmul.bf16.gmra.mxu0 %v1443
    %v1457 = vpop.f32.mrf.mxu0
    %v1458 = vadd.f32 0.0, %v1457
    %v1459 = vpop.f32.mrf.mxu0
    %1460 = vdwg.mxu0
    %1461 = vrot.lane.b32.xlu0 %v1110, 48
    %v1462 = vpop.permute.xlu0 %1461
    %v1464 = vsel %vm244, %v1439, 0
    %v1467 = vsel %vm327, %v1462, 0
    %1469 = vmatpush.bf16.msra.mxu0 0
    %1470 = vmatpush.bf16.msra.mxu0 0
    %1471 = vmatpush.bf16.msra.mxu0 0
    %1472 = vmatpush.bf16.msra.mxu0 0
    %1473 = vmatpush.bf16.msra.mxu0 0
    %1474 = vmatpush.bf16.msra.mxu0 0
    %1475 = vmatpush.bf16.msra.mxu0 0
    %1476 = vmatpush.bf16.msra.mxu0 %v1467
    %1477 = vmatmul.bf16.gmra.mxu0 %v1464
    %v1478 = vpop.f32.mrf.mxu0
    %v1479 = vadd.f32 0.0, %v1478
    %v1480 = vpop.f32.mrf.mxu0
    %1481 = vdwg.mxu0
    %v1482 = vpack.c.bf16 %v1458, %v1458
    %v1483 = vpack.c.bf16 %v1479, %v1479
    %v1486 = vunpack.c.l.b16 %v1482
    %v1487 = vunpack.c.l.b16 %v1483
    %v1488 = vpack.c.b16 %v1487, %v1486
    %v1490 = vsel %vm244, %v1488, 0
    %1492 = vmatpush.bf16.msra.mxu0 0
    %1493 = vmatpush.bf16.msra.mxu0 0
    %1494 = vmatpush.bf16.msra.mxu0 0
    %1495 = vmatpush.bf16.msra.mxu0 0
    %1496 = vmatpush.bf16.msra.mxu0 0
    %1497 = vmatpush.bf16.msra.mxu0 0
    %1498 = vmatpush.bf16.msra.mxu0 0
    %1499 = vmatpush.bf16.msra.mxu0 %v665
    %1500 = vmatmul.bf16.gmra.mxu0 %v1490
    %v1501 = vpop.f32.mrf.mxu0
    %v1502 = vadd.f32 0.0, %v1501
    %v1503 = vpop.f32.mrf.mxu0
    %v1504 = vadd.f32 0.0, %v1503
    %1505 = vdwg.mxu0
    %v1506 = vadd.f32 %v1362, %v1502
    %v1507 = vadd.f32 %v1364, %v1504
    %1508 = vrot.lane.b32.xlu0 %v1086, 104
    %v1509 = vpop.permute.xlu0 %1508
    %1510 = vrot.lane.b32.xlu0 %v1086, 72
    %v1511 = vpop.permute.xlu0 %1510
    %v1513 = vsel %vm244, %v1509, 0
    %v1516 = vsel %vm244, %v1511, 0
    %1518 = vmatpush.bf16.xpose.msra.mxu0 0
    %1519 = vmatpush.bf16.xpose.msra.mxu0 0
    %1520 = vmatpush.bf16.xpose.msra.mxu0 0
    %1521 = vmatpush.bf16.xpose.msra.mxu0 0
    %1522 = vmatpush.bf16.xpose.msra.mxu0 0
    %1523 = vmatpush.bf16.xpose.msra.mxu0 0
    %1524 = vmatpush.bf16.xpose.msra.mxu0 0
    %1525 = vmatpush.bf16.xpose.msra.mxu0 %v1516
    %1526 = vmatmul.bf16.gmra.mxu0 %v1513
    %v1527 = vpop.f32.mrf.mxu0
    %v1528 = vadd.f32 0.0, %v1527
    %v1529 = vpop.f32.mrf.mxu0
    %1530 = vdwg.mxu0
    %1531 = vrot.lane.b32.xlu0 %v1110, 104
    %v1532 = vpop.permute.xlu0 %1531
    %1533 = vrot.lane.b32.xlu0 %v1110, 72
    %v1534 = vpop.permute.xlu0 %1533
    %v1536 = vsel %vm244, %v1532, 0
    %v1539 = vsel %vm244, %v1534, 0
    %1541 = vmatpush.bf16.xpose.msra.mxu0 0
    %1542 = vmatpush.bf16.xpose.msra.mxu0 0
    %1543 = vmatpush.bf16.xpose.msra.mxu0 0
    %1544 = vmatpush.bf16.xpose.msra.mxu0 0
    %1545 = vmatpush.bf16.xpose.msra.mxu0 0
    %1546 = vmatpush.bf16.xpose.msra.mxu0 0
    %1547 = vmatpush.bf16.xpose.msra.mxu0 0
    %1548 = vmatpush.bf16.xpose.msra.mxu0 %v1539
    %1549 = vmatmul.bf16.gmra.mxu0 %v1536
    %v1550 = vpop.f32.mrf.mxu0
    %v1551 = vadd.f32 0.0, %v1550
    %v1552 = vpop.f32.mrf.mxu0
    %1553 = vdwg.mxu0
    %v1554 = vmul.f32 %v1528, 0.35355338
    %v1555 = vmul.f32 %v1551, 0.35355338
    %v1556 = vadd.f32 %v1554, %v292
    %v1557 = vadd.f32 %v1555, %v293
    %v1558 = vsel %vm244, %v1556, -inf
    %1559 = vmax.xlane.f32.xlu0 %v1558
    %v1560 = vpop.xlane.xlu0 %1559
    %v1561 = vsel %vm244, %v1557, -inf
    %1562 = vmax.xlane.f32.xlu0 %v1561
    %v1563 = vpop.xlane.xlu0 %1562
    %v1564 = vsub.f32 %v1556, %v1560
    %v1565 = vsub.f32 %v1557, %v1563
    %v1566 = vmul.f32 %v1564, 1.442695
    %v1567 = vpow.pop %v1566
    %v1568 = vmul.f32 %v1565, 1.442695
    %v1569 = vpow.pop %v1568
    %v1570 = vsel %vm244, %v1567, 0.0
    %1571 = vadd.xlane.f32.xlu0 %v1570
    %v1572 = vpop.xlane.xlu0 %1571
    %v1573 = vsel %vm244, %v1569, 0.0
    %1574 = vadd.xlane.f32.xlu0 %v1573
    %v1575 = vpop.xlane.xlu0 %1574
    %v1576 = vrcp.pop %v1572
    %v1577 = vrcp.pop %v1575
    %v1578 = vmul.f32 %v1567, %v1576
    %v1579 = vmul.f32 %v1569, %v1577
    %v1580 = vpack.c.bf16 %v1578, %v1578
    %v1581 = vpack.c.bf16 %v1579, %v1579
    %1582 = vrot.lane.b32.xlu0 %v1086, 40
    %v1583 = vpop.permute.xlu0 %1582
    %v1585 = vsel %vm244, %v1580, 0
    %v1588 = vsel %vm327, %v1583, 0
    %1590 = vmatpush.bf16.msra.mxu0 0
    %1591 = vmatpush.bf16.msra.mxu0 0
    %1592 = vmatpush.bf16.msra.mxu0 0
    %1593 = vmatpush.bf16.msra.mxu0 0
    %1594 = vmatpush.bf16.msra.mxu0 0
    %1595 = vmatpush.bf16.msra.mxu0 0
    %1596 = vmatpush.bf16.msra.mxu0 0
    %1597 = vmatpush.bf16.msra.mxu0 %v1588
    %1598 = vmatmul.bf16.gmra.mxu0 %v1585
    %v1599 = vpop.f32.mrf.mxu0
    %v1600 = vadd.f32 0.0, %v1599
    %v1601 = vpop.f32.mrf.mxu0
    %1602 = vdwg.mxu0
    %1603 = vrot.lane.b32.xlu0 %v1110, 40
    %v1604 = vpop.permute.xlu0 %1603
    %v1606 = vsel %vm244, %v1581, 0
    %v1609 = vsel %vm327, %v1604, 0
    %1611 = vmatpush.bf16.msra.mxu0 0
    %1612 = vmatpush.bf16.msra.mxu0 0
    %1613 = vmatpush.bf16.msra.mxu0 0
    %1614 = vmatpush.bf16.msra.mxu0 0
    %1615 = vmatpush.bf16.msra.mxu0 0
    %1616 = vmatpush.bf16.msra.mxu0 0
    %1617 = vmatpush.bf16.msra.mxu0 0
    %1618 = vmatpush.bf16.msra.mxu0 %v1609
    %1619 = vmatmul.bf16.gmra.mxu0 %v1606
    %v1620 = vpop.f32.mrf.mxu0
    %v1621 = vadd.f32 0.0, %v1620
    %v1622 = vpop.f32.mrf.mxu0
    %1623 = vdwg.mxu0
    %v1624 = vpack.c.bf16 %v1600, %v1600
    %v1625 = vpack.c.bf16 %v1621, %v1621
    %v1628 = vunpack.c.l.b16 %v1624
    %v1629 = vunpack.c.l.b16 %v1625
    %v1630 = vpack.c.b16 %v1629, %v1628
    %v1632 = vsel %vm244, %v1630, 0
    %1634 = vmatpush.bf16.msra.mxu0 0
    %1635 = vmatpush.bf16.msra.mxu0 0
    %1636 = vmatpush.bf16.msra.mxu0 0
    %1637 = vmatpush.bf16.msra.mxu0 0
    %1638 = vmatpush.bf16.msra.mxu0 0
    %1639 = vmatpush.bf16.msra.mxu0 0
    %1640 = vmatpush.bf16.msra.mxu0 0
    %1641 = vmatpush.bf16.msra.mxu0 %v811
    %1642 = vmatmul.bf16.gmra.mxu0 %v1632
    %v1643 = vpop.f32.mrf.mxu0
    %v1644 = vadd.f32 0.0, %v1643
    %v1645 = vpop.f32.mrf.mxu0
    %v1646 = vadd.f32 0.0, %v1645
    %1647 = vdwg.mxu0
    %v1648 = vadd.f32 %v1506, %v1644
    %v1649 = vadd.f32 %v1507, %v1646
    %v1650 = vadd.f32 %v1648, %v830
    %v1651 = vadd.f32 %v1649, %v830
    %v1652 = vadd.f32 %v1056, %v1650
    %v1653 = vadd.f32 %v1057, %v1651
    %v1654 = vld [vmem:[%s9] sm:$0x1]
    %v1655 = vld [vmem:[%s9 + $0x1] sm:$0x1]
    %v1656 = vsel %vm219, %v1652, 0.0
    %1657 = vadd.xlane.f32.xlu0 %v1656
    %v1658 = vpop.xlane.xlu0 %1657
    %v1659 = vsel %vm219, %v1653, 0.0
    %1660 = vadd.xlane.f32.xlu0 %v1659
    %v1661 = vpop.xlane.xlu0 %1660
    %v1662 = vmul.f32 %v1658, %v850
    %v1663 = vmul.f32 %v1661, %v850
    %v1664 = vsub.f32 %v1652, %v1662
    %v1665 = vsub.f32 %v1653, %v1663
    %v1666 = vmul.f32 %v1664, %v1664
    %v1667 = vmul.f32 %v1665, %v1665
    %v1668 = vsel %vm219, %v1666, 0.0
    %1669 = vadd.xlane.f32.xlu0 %v1668
    %v1670 = vpop.xlane.xlu0 %1669
    %v1671 = vsel %vm219, %v1667, 0.0
    %1672 = vadd.xlane.f32.xlu0 %v1671
    %v1673 = vpop.xlane.xlu0 %1672
    %v1674 = vmul.f32 %v1670, %v850
    %v1675 = vmul.f32 %v1673, %v850
    %v1676 = vadd.f32 %v1674, 1e-12
    %v1677 = vadd.f32 %v1675, 1e-12
    %v1678 = vrsqrt.pop %v1676
    %v1679 = vmul.f32 %v1678, %v1676
    %v1680 = vmul.f32 %v1679, %v1678
    %v1681 = vmul.f32 0.5, %v1680
    %v1682 = vsub.f32 1.5, %v1681
    %v1683 = vmul.f32 %v1678, %v1682
    %vm1684 = vweird.f32 %v1676
    %vm1685 = vweird.f32 %v1678
    %vm1686 = vmor %vm1684, %vm1685
    %v1687 = vsel %vm1686, %v1678, %v1683
    %v1688 = vrsqrt.pop %v1677
    %v1689 = vmul.f32 %v1688, %v1677
    %v1690 = vmul.f32 %v1689, %v1688
    %v1691 = vmul.f32 0.5, %v1690
    %v1692 = vsub.f32 1.5, %v1691
    %v1693 = vmul.f32 %v1688, %v1692
    %vm1694 = vweird.f32 %v1677
    %vm1695 = vweird.f32 %v1688
    %vm1696 = vmor %vm1694, %vm1695
    %v1697 = vsel %vm1696, %v1688, %v1693
    %v1698 = vmul.f32 %v1664, %v1687
    %v1699 = vmul.f32 %v1665, %v1697
    %v1700 = vperm.slane %v1654, 0
    %v1701 = vmul.f32 %v1698, %v1700
    %v1702 = vmul.f32 %v1699, %v1700
    %v1703 = vperm.slane %v1655, 0
    %v1704 = vadd.f32 %v1701, %v1703
    %v1705 = vadd.f32 %v1702, %v1703
    %v1706 = vpack.c.bf16 %v1704, %v1704
    %v1707 = vpack.c.bf16 %v1705, %v1705
    %v1710 = vunpack.c.l.b16 %v1706
    %v1711 = vunpack.c.l.b16 %v1707
    %v1712 = vpack.c.b16 %v1711, %v1710
    %v1714 = vsel %vm219, %v1712, 0
    %1716 = vmatpush.bf16.msra.mxu0 0
    %1717 = vmatpush.bf16.msra.mxu0 0
    %1718 = vmatpush.bf16.msra.mxu0 0
    %1719 = vmatpush.bf16.msra.mxu0 0
    %1720 = vmatpush.bf16.msra.mxu0 0
    %1721 = vmatpush.bf16.msra.mxu0 0
    %1722 = vmatpush.bf16.msra.mxu0 %v914
    %1723 = vmatpush.bf16.msra.mxu0 %v913
    %1724 = vmatmul.bf16.gmra.mxu0 %v1714
    %v1725 = vpop.f32.mrf.mxu0
    %v1726 = vadd.f32 %v898, %v1725
    %v1727 = vpop.f32.mrf.mxu0
    %v1728 = vadd.f32 %v898, %v1727
    %1729 = vdwg.mxu0
    %v1730 = vmul.f32 %v1726, 0.5
    %v1731 = vmul.f32 %v1728, 0.5
    %v1732 = vmul.f32 %v1726, 0.044715
    %v1733 = vmul.f32 %v1728, 0.044715
    %v1734 = vmul.f32 %v1732, %v1726
    %v1735 = vmul.f32 %v1733, %v1728
    %v1736 = vmul.f32 %v1734, %v1726
    %v1737 = vmul.f32 %v1735, %v1728
    %v1738 = vadd.f32 %v1726, %v1736
    %v1739 = vadd.f32 %v1728, %v1737
    %v1740 = vmul.f32 %v1738, 0.7978846
    %v1741 = vmul.f32 %v1739, 0.7978846
    %v1742 = vtanh.pop %v1740
    %v1743 = vtanh.pop %v1741
    %v1744 = vadd.f32 %v1742, 1.0
    %v1745 = vadd.f32 %v1743, 1.0
    %v1746 = vmul.f32 %v1730, %v1744
    %v1747 = vmul.f32 %v1731, %v1745
    %v1748 = vpack.c.bf16 %v1746, %v1746
    %v1749 = vpack.c.bf16 %v1747, %v1747
    %v1752 = vunpack.c.l.b16 %v1748
    %v1753 = vunpack.c.l.b16 %v1749
    %v1754 = vpack.c.b16 %v1753, %v1752
    %v1756 = vsel %vm986, %v1754, 0
    %1758 = vmatpush.bf16.msra.mxu0 0
    %1759 = vmatpush.bf16.msra.mxu0 0
    %1760 = vmatpush.bf16.msra.mxu0 0
    %1761 = vmatpush.bf16.msra.mxu0 0
    %1762 = vmatpush.bf16.msra.mxu0 %v981
    %1763 = vmatpush.bf16.msra.mxu0 %v980
    %1764 = vmatpush.bf16.msra.mxu0 %v979
    %1765 = vmatpush.bf16.msra.mxu0 %v978
    %1766 = vmatmul.bf16.gmra.mxu0 %v1756
    %v1767 = vpop.f32.mrf.mxu0
    %v1768 = vadd.f32 %v955, %v1767
    %v1769 = vpop.f32.mrf.mxu0
    %v1770 = vadd.f32 %v955, %v1769
    %1771 = vdwg.mxu0
    %v1772 = vadd.f32 %v1704, %v1768
    %v1773 = vadd.f32 %v1705, %v1770
    %v1774 = vld [vmem:[%s14] sm:$0x1]
    %v1775 = vld [vmem:[%s14 + $0x1] sm:$0x1]
    %v1776 = vsel %vm219, %v1772, 0.0
    %1777 = vadd.xlane.f32.xlu0 %v1776
    %v1778 = vpop.xlane.xlu0 %1777
    %v1779 = vsel %vm219, %v1773, 0.0
    %1780 = vadd.xlane.f32.xlu0 %v1779
    %v1781 = vpop.xlane.xlu0 %1780
    %v1782 = vmul.f32 %v1778, %v850
    %v1783 = vmul.f32 %v1781, %v850
    %v1784 = vsub.f32 %v1772, %v1782
    %v1785 = vsub.f32 %v1773, %v1783
    %v1786 = vmul.f32 %v1784, %v1784
    %v1787 = vmul.f32 %v1785, %v1785
    %v1788 = vsel %vm219, %v1786, 0.0
    %1789 = vadd.xlane.f32.xlu0 %v1788
    %v1790 = vpop.xlane.xlu0 %1789
    %v1791 = vsel %vm219, %v1787, 0.0
    %1792 = vadd.xlane.f32.xlu0 %v1791
    %v1793 = vpop.xlane.xlu0 %1792
    %v1794 = vmul.f32 %v1790, %v850
    %v1795 = vmul.f32 %v1793, %v850
    %v1796 = vadd.f32 %v1794, 1e-12
    %v1797 = vadd.f32 %v1795, 1e-12
    %v1798 = vrsqrt.pop %v1796
    %v1799 = vmul.f32 %v1798, %v1796
    %v1800 = vmul.f32 %v1799, %v1798
    %v1801 = vmul.f32 0.5, %v1800
    %v1802 = vsub.f32 1.5, %v1801
    %v1803 = vmul.f32 %v1798, %v1802
    %vm1804 = vweird.f32 %v1796
    %vm1805 = vweird.f32 %v1798
    %vm1806 = vmor %vm1804, %vm1805
    %v1807 = vsel %vm1806, %v1798, %v1803
    %v1808 = vrsqrt.pop %v1797
    %v1809 = vmul.f32 %v1808, %v1797
    %v1810 = vmul.f32 %v1809, %v1808
    %v1811 = vmul.f32 0.5, %v1810
    %v1812 = vsub.f32 1.5, %v1811
    %v1813 = vmul.f32 %v1808, %v1812
    %vm1814 = vweird.f32 %v1797
    %vm1815 = vweird.f32 %v1808
    %vm1816 = vmor %vm1814, %vm1815
    %v1817 = vsel %vm1816, %v1808, %v1813
    %v1818 = vmul.f32 %v1784, %v1807
    %v1819 = vmul.f32 %v1785, %v1817
    %v1820 = vperm.slane %v1774, 0
    %v1821 = vmul.f32 %v1818, %v1820
    %v1822 = vmul.f32 %v1819, %v1820
    %v1823 = vperm.slane %v1775, 0
    %v1824 = vadd.f32 %v1821, %v1823
    %v1825 = vadd.f32 %v1822, %v1823
    %v1826 = vld [vmem:[%s15] sm:$0x1]
    %v1827 = vld [vmem:[%s15 + $0x1] sm:$0x1]
    %v1828 = vsel %vm219, %v1824, 0.0
    %1829 = vadd.xlane.f32.xlu0 %v1828
    %v1830 = vpop.xlane.xlu0 %1829
    %v1831 = vsel %vm219, %v1825, 0.0
    %1832 = vadd.xlane.f32.xlu0 %v1831
    %v1833 = vpop.xlane.xlu0 %1832
    %v1834 = vmul.f32 %v1830, %v850
    %v1835 = vmul.f32 %v1833, %v850
    %v1836 = vsub.f32 %v1824, %v1834
    %v1837 = vsub.f32 %v1825, %v1835
    %v1838 = vmul.f32 %v1836, %v1836
    %v1839 = vmul.f32 %v1837, %v1837
    %v1840 = vsel %vm219, %v1838, 0.0
    %1841 = vadd.xlane.f32.xlu0 %v1840
    %v1842 = vpop.xlane.xlu0 %1841
    %v1843 = vsel %vm219, %v1839, 0.0
    %1844 = vadd.xlane.f32.xlu0 %v1843
    %v1845 = vpop.xlane.xlu0 %1844
    %v1846 = vmul.f32 %v1842, %v850
    %v1847 = vmul.f32 %v1845, %v850
    %v1848 = vadd.f32 %v1846, 1e-05
    %v1849 = vadd.f32 %v1847, 1e-05
    %v1850 = vrsqrt.pop %v1848
    %v1851 = vmul.f32 %v1850, %v1848
    %v1852 = vmul.f32 %v1851, %v1850
    %v1853 = vmul.f32 0.5, %v1852
    %v1854 = vsub.f32 1.5, %v1853
    %v1855 = vmul.f32 %v1850, %v1854
    %vm1856 = vweird.f32 %v1848
    %vm1857 = vweird.f32 %v1850
    %vm1858 = vmor %vm1856, %vm1857
    %v1859 = vsel %vm1858, %v1850, %v1855
    %v1860 = vrsqrt.pop %v1849
    %v1861 = vmul.f32 %v1860, %v1849
    %v1862 = vmul.f32 %v1861, %v1860
    %v1863 = vmul.f32 0.5, %v1862
    %v1864 = vsub.f32 1.5, %v1863
    %v1865 = vmul.f32 %v1860, %v1864
    %vm1866 = vweird.f32 %v1849
    %vm1867 = vweird.f32 %v1860
    %vm1868 = vmor %vm1866, %vm1867
    %v1869 = vsel %vm1868, %v1860, %v1865
    %v1870 = vmul.f32 %v1836, %v1859
    %v1871 = vmul.f32 %v1837, %v1869
    %v1872 = vperm.slane %v1826, 0
    %v1873 = vmul.f32 %v1870, %v1872
    %v1874 = vmul.f32 %v1871, %v1872
    %v1875 = vperm.slane %v1827, 0
    %v1876 = vadd.f32 %v1873, %v1875
    %v1877 = vadd.f32 %v1874, %v1875
    %v1878 = vld [vmem:[%s16] sm:$0xf]
    %v1879 = vld [vmem:[%s16 + $0x4] sm:$0xf]
    %v1880 = vld [vmem:[%s16 + $0x8] sm:$0xf]
    %v1881 = vld [vmem:[%s16 + $0xc] sm:$0xf]
    %v1882 = vpack.c.bf16 %v1876, %v1876
    %v1883 = vpack.c.bf16 %v1877, %v1877
    %v1884 = vld [vmem:[%s17] sm:$0x1]
    %v1886 = vperm.slane %v1884, 0
    %v1890 = vunpack.c.l.b16 %v1882
    %v1891 = vunpack.c.l.b16 %v1883
    %v1892 = vpack.c.b16 %v1891, %v1890
    %v1897 = vunpack.c.l.b16 %v1878
    %v1898 = vunpack.c.l.b16 %v1879
    %v1899 = vunpack.c.l.b16 %v1880
    %v1900 = vunpack.c.l.b16 %v1881
    %v1901 = vpack.c.b16 %v1898, %v1897
    %v1902 = vpack.c.b16 %v1900, %v1899
    %v1906 = vsel %vm219, %v1892, 0
    %1908 = vmatpush.bf16.msra.mxu0 0
    %1909 = vmatpush.bf16.msra.mxu0 0
    %1910 = vmatpush.bf16.msra.mxu0 0
    %1911 = vmatpush.bf16.msra.mxu0 0
    %1912 = vmatpush.bf16.msra.mxu0 0
    %1913 = vmatpush.bf16.msra.mxu0 0
    %1914 = vmatpush.bf16.msra.mxu0 %v1902
    %1915 = vmatpush.bf16.msra.mxu0 %v1901
    %1916 = vmatmul.bf16.gmra.mxu0 %v1906
    %v1917 = vpop.f32.mrf.mxu0
    %v1918 = vadd.f32 %v1886, %v1917
    %v1919 = vpop.f32.mrf.mxu0
    %v1920 = vadd.f32 %v1886, %v1919
    %1921 = vdwg.mxu0
    %1922 = vst [vmem:[#allocation4] sm:$0xff] %v1918
    %1923 = vst [vmem:[#allocation4 + $0x8] sm:$0xff] %v1920
    %v1924 = vld [vmem:[%s18] sm:$0x1]
    %v1925 = vld [vmem:[%s18 + $0x1] sm:$0x1]
    %v1928 = vrot.slane %v1825, 7
    %vm1929 = vcmask 1041409
    %v1930 = vsel %vm1929, %v1928, %v1824
    %vm1932 = vcmask 254976
    %v1933 = vsel %vm1932, %v1930, 0.0
    %1934 = vadd.xlane.f32.xlu0 %v1933
    %v1935 = vpop.xlane.xlu0 %1934
    %v1936 = vmul.f32 %v1935, %v850
    %v1938 = vrot.slane %v1936, 1
    %v1941 = vsub.f32 %v1824, %v1936
    %v1942 = vsub.f32 %v1825, %v1938
    %v1943 = vmul.f32 %v1941, %v1941
    %v1944 = vmul.f32 %v1942, %v1942
    %v1947 = vrot.slane %v1944, 7
    %v1948 = vsel %vm1929, %v1947, %v1943
    %v1950 = vsel %vm1932, %v1948, 0.0
    %1951 = vadd.xlane.f32.xlu0 %v1950
    %v1952 = vpop.xlane.xlu0 %1951
    %v1953 = vmul.f32 %v1952, %v850
    %v1954 = vadd.f32 %v1953, 1e-05
    %v1955 = vrsqrt.pop %v1954
    %v1956 = vmul.f32 %v1955, %v1954
    %v1957 = vmul.f32 %v1956, %v1955
    %v1958 = vmul.f32 0.5, %v1957
    %v1959 = vsub.f32 1.5, %v1958
    %v1960 = vmul.f32 %v1955, %v1959
    %vm1961 = vweird.f32 %v1954
    %vm1962 = vweird.f32 %v1955
    %vm1963 = vmor %vm1961, %vm1962
    %v1964 = vsel %vm1963, %v1955, %v1960
    %v1966 = vrot.slane %v1964, 1
    %v1969 = vmul.f32 %v1941, %v1964
    %v1970 = vmul.f32 %v1942, %v1966
    %v1971 = vperm.slane %v1924, 0
    %v1972 = vmul.f32 %v1969, %v1971
    %v1973 = vmul.f32 %v1970, %v1971
    %v1974 = vperm.slane %v1925, 0
    %v1975 = vadd.f32 %v1972, %v1974
    %v1976 = vadd.f32 %v1973, %v1974
    %v1977 = vld [vmem:[%s19] sm:$0xf]
    %v1978 = vld [vmem:[%s19 + $0x4] sm:$0xf]
    %v1979 = vld [vmem:[%s19 + $0x8] sm:$0xf]
    %v1980 = vld [vmem:[%s19 + $0xc] sm:$0xf]
    %v1981 = vpack.c.bf16 %v1975, %v1975
    %v1982 = vpack.c.bf16 %v1976, %v1976
    %v1983 = vld [vmem:[%s20] sm:$0x1]
    %v1985 = vperm.slane %v1983, 0
    %v1989 = vunpack.c.l.b16 %v1981
    %v1990 = vunpack.c.l.b16 %v1982
    %v1991 = vrot.slane %v1990, 7
    %v1992 = vsel %vm1929, %v1991, %v1989
    %v1993 = vpack.c.b16 %v1992, %v1992
    %v1998 = vunpack.c.l.b16 %v1977
    %v1999 = vunpack.c.l.b16 %v1978
    %v2000 = vunpack.c.l.b16 %v1979
    %v2001 = vunpack.c.l.b16 %v1980
    %v2002 = vpack.c.b16 %v1999, %v1998
    %v2003 = vpack.c.b16 %v2001, %v2000
    %v2007 = vsel %vm219, %v1993, 0
    %2009 = vmatpush.bf16.msra.mxu0 0
    %2010 = vmatpush.bf16.msra.mxu0 0
    %2011 = vmatpush.bf16.msra.mxu0 0
    %2012 = vmatpush.bf16.msra.mxu0 0
    %2013 = vmatpush.bf16.msra.mxu0 0
    %2014 = vmatpush.bf16.msra.mxu0 0
    %2015 = vmatpush.bf16.msra.mxu0 %v2003
    %2016 = vmatpush.bf16.msra.mxu0 %v2002
    %2017 = vmatmul.bf16.gmra.mxu0 %v2007
    %v2018 = vpop.f32.mrf.mxu0
    %v2019 = vadd.f32 %v1985, %v2018
    %v2020 = vpop.f32.mrf.mxu0
    %2021 = vdwg.mxu0
    %2022 = vst [vmem:[#allocation2] sm:$0x3] %v2019
    // Predicated region
    $region86: #{text_encoder_forward.1} parent=1 // pred_check
      _
    $region87: #{text_encoder_forward.1} parent=1 // pred_check_branch
      %2024 = sbr.rel (0) target = $region89
    $region88: #{text_encoder_forward.1} parent=1 // pred_region
      %2026 = vsyncadd [#allocation3], 0
      %s2028 = sshll.u32 [#allocation2], 4
      %s2029 = int_to_ptr.vmem [resolvable:$true] %s2028
      %s2030 = sshll.u32 %s21, 4
      %s2031 = int_to_ptr.hbm [resolvable:$true] %s2030
      %2033 = dma.vmem_to_hbm [thread:$0]  %s2029, 32, %s2031, [#allocation3]
    $region89: #{text_encoder_forward.1} parent=1 // pred_fallthru
      _
    // Predicated region
    $region90: #{text_encoder_forward.1} parent=1 // pred_check
      _
    $region91: #{text_encoder_forward.1} parent=1 // pred_check_branch
      %2035 = sbr.rel (0) target = $region93
    $region92: #{text_encoder_forward.1} parent=1 // pred_region
      %2037 = vsyncadd [#allocation5], 0
      %s2038 = sshll.u32 [#allocation4], 4
      %s2039 = int_to_ptr.vmem [resolvable:$true] %s2038
      %s2040 = sshll.u32 %s22, 4
      %s2041 = int_to_ptr.hbm [resolvable:$true] %s2040
      %2046 = dma.vmem_to_hbm [thread:$0]  %s2039, 256, %s2041, [#allocation5], 128, 128, 8
    $region93: #{text_encoder_forward.1} parent=1 // pred_fallthru
      _
    // Predicated region
    $region94: #{text_encoder_forward.1} parent=1 // pred_check
      _
    $region95: #{text_encoder_forward.1} parent=1 // pred_check_branch
      %2048 = sbr.rel (0) target = $region97
    $region96: #{text_encoder_forward.1} parent=1 // pred_region
      %2050 = dma.done [#allocation3], 32
    $region97: #{text_encoder_forward.1} parent=1 // pred_fallthru
      _
    // Predicated region
    $region98: #{text_encoder_forward.1} parent=1 // pred_check
      _
    $region99: #{text_encoder_forward.1} parent=1 // pred_check_branch
      %2052 = sbr.rel (0) target = $region101
    $region100: #{text_encoder_forward.1} parent=1 // pred_region
      %2054 = dma.done [#allocation5], 256
    $region101: #{text_encoder_forward.1} parent=1 // pred_fallthru
      _
    %2055 = vsyncpa [#allocation3], 1
    %2056 = vsyncpa [#allocation5], 1

</llo_original>
